<compile_context>
chip_gen: v6e
topology: v6e:2x2x1
jax: 0.10.0
libtpu: 0.0.40
codegen_flags: <defaults>
</compile_context>

<pallas_src>
import functools

import jax
import jax.numpy as jnp
from jax.experimental import pallas as pl
from jax.experimental.pallas import tpu as pltpu


# ----------------------------------------------------------------------------
# Helpers
# ----------------------------------------------------------------------------
def _round_up(x, m):
    return (x + m - 1) // m * m


def _pad_gate_cols(a, H, Hp):
    """Pad the trailing gate dim (..., 3H) -> (..., 3Hp); each r/z/n block H -> Hp."""
    lead = a.shape[:-1]
    a3 = a.reshape(lead + (3, H))
    pad = [(0, 0)] * len(lead) + [(0, 0), (0, Hp - H)]
    return jnp.pad(a3, pad).reshape(lead + (3 * Hp,))


def _vmem_limit_bytes(T, tb, Hp, L, compute_dtype, out_dtype):
    """Size the VMEM window from the actual resident buffers (not a fixed 32 MiB)."""
    G = 3 * Hp
    wb = jnp.dtype(compute_dtype).itemsize
    ob = jnp.dtype(out_dtype).itemsize
    blocks = (T * tb * G * 4        # gi0 block (f32)
              + L * tb * Hp * 4     # h0 block (f32)
              + T * tb * Hp * ob    # sequence-output block (compute dtype)
              + L * tb * Hp * 4)    # final-hidden block (f32)
    weights = L * Hp * G * wb + L * Hp * 4
    scratch = 0
    if L > 1:
        weights += (L - 1) * (Hp * G * wb + G * 4)
        scratch = T * tb * G * 4    # gi scratch for layers > 0
    need = 2 * blocks + weights + scratch + (4 << 20)   # double-buffering + headroom
    cap = 100 * 1024 * 1024                             # v5e/v6e: 128 MiB physical
    try:
        info = pltpu.get_tpu_info()
        cap = min(cap, int(getattr(info, "vmem_capacity_bytes") * 3 // 4))  # v7x: 64 MiB
    except Exception:
        pass
    return int(min(max(need, 32 * 1024 * 1024), cap))


# ----------------------------------------------------------------------------
# Pallas kernel: the full GRU stack (all layers, all time steps) per batch block
# ----------------------------------------------------------------------------
def _gru_stack_kernel(gi0_ref, h0_ref, whh_ref, bhhn_ref, *rest,
                      num_layers, seq_len):
    if num_layers > 1:
        wih_ref, bih_ref, out_ref, hT_ref, gi_sc = rest
    else:
        out_ref, hT_ref = rest
        wih_ref = bih_ref = gi_sc = None

    T = seq_len
    Bt, Hp = hT_ref.shape[1], hT_ref.shape[2]

    # Partial unroll: full for short T; modest fixed unroll for long T / large Hp so the
    # LLO scheduler still sees the step body without entering the vreg-spill regime.
    if T <= 16:
        unroll = T
    elif Hp <= 256:
        unroll = 8
    else:
        unroll = 4

    def run_layer(l, gi_src):
        whh = whh_ref[l]                                   # (Hp, 3Hp), compute dtype
        # Hoisted out of the time loop: JAX does not CSE broadcast_in_dim.
        bhn_b = jnp.broadcast_to(bhhn_ref[l].astype(jnp.float32), (Bt, Hp))
        h_init = h0_ref[l].astype(jnp.float32)             # (Bt, Hp)

        def step(t, h):
            gi = gi_src[t]                                 # (Bt, 3Hp) f32, hoisted gates
            # TODO(synk): weight-stationary MXU (matmul_push_rhs/acc_lhs/pop) so W_hh is
            # not re-streamed through the systolic array on every serial step.
            gh = jnp.dot(h.astype(whh.dtype), whh,
                         preferred_element_type=jnp.float32)   # (Bt, 3Hp) f32 accum
            r = jax.nn.sigmoid(gi[:, 0:Hp] + gh[:, 0:Hp])
            z = jax.nn.sigmoid(gi[:, Hp:2 * Hp] + gh[:, Hp:2 * Hp])
            n = jnp.tanh(gi[:, 2 * Hp:] + r * (gh[:, 2 * Hp:] + bhn_b))
            h_new = (1.0 - z) * n + z * h
            out_ref[t] = h_new.astype(out_ref.dtype)       # lane-dense (Bt, Hp) store
            return h_new

        h_T = jax.lax.fori_loop(0, T, step, h_init, unroll=unroll)
        hT_ref[l] = h_T.astype(hT_ref.dtype)               # final hidden, once per layer

    # Layer 0: input gates precomputed outside the kernel (one big matmul).
    run_layer(0, gi0_ref)

    # Layers 1..L-1: one full-sequence input-gate matmul from the previous layer's
    # activations (resident in out_ref, compute dtype), then the time recurrence.
    for l in range(1, num_layers):
        # TODO(synk): chunk over T (or layer-wavefront) for large T to bound VMEM.
        w = wih_ref[l - 1]                                       # (Hp, 3Hp)
        act = out_ref[...].reshape(T * Bt, Hp).astype(w.dtype)   # no-op cast (same dtype)
        gi = jnp.dot(act, w, preferred_element_type=jnp.float32)
        gi = gi + bih_ref[l - 1].astype(jnp.float32)             # folded biases
        gi_sc[...] = gi.reshape(T, Bt, 3 * Hp)
        run_layer(l, gi_sc)


def _gru_stack_pallas(gi0, h0, whh_all, bhhn_all, wih_rest, bih_rest,
                      *, num_layers, seq_len, batch_block, out_dtype):
    T, Bp, G = gi0.shape
    Hp = G // 3
    L = num_layers
    tb = batch_block
    nb = Bp // tb

    kernel = functools.partial(_gru_stack_kernel, num_layers=L, seq_len=T)

    in_specs = [
        pl.BlockSpec((T, tb, G), lambda b: (0, b, 0)),            # gi0: batch-split
        pl.BlockSpec((L, tb, Hp), lambda b: (0, b, 0)),           # h0: batch-split
        pl.BlockSpec(tuple(whh_all.shape), lambda b: (0, 0, 0)),  # weights: replicated
        pl.BlockSpec(tuple(bhhn_all.shape), lambda b: (0, 0, 0)),
    ]
    inputs = [gi0, h0, whh_all, bhhn_all]
    scratch_shapes = []
    if L > 1:
        in_specs += [pl.BlockSpec(tuple(wih_rest.shape), lambda b: (0, 0, 0)),
                     pl.BlockSpec(tuple(bih_rest.shape), lambda b: (0, 0, 0))]
        inputs += [wih_rest, bih_rest]
        # gi scratch only exists for multi-layer stacks.
        scratch_shapes = [pltpu.VMEM((T, tb, G), jnp.float32)]

    out_specs = (pl.BlockSpec((T, tb, Hp), lambda b: (0, b, 0)),
                 pl.BlockSpec((L, tb, Hp), lambda b: (0, b, 0)))
    out_shape = (jax.ShapeDtypeStruct((T, Bp, Hp), out_dtype),    # per-step outputs
                 jax.ShapeDtypeStruct((L, Bp, Hp), jnp.float32))  # final hidden per layer

    return pl.pallas_call(
        kernel,
        out_shape=out_shape,
        grid_spec=pltpu.PrefetchScalarGridSpec(
            num_scalar_prefetch=0, grid=(nb,),
            in_specs=in_specs, out_specs=out_specs,
            scratch_shapes=scratch_shapes),
        compiler_params=pltpu.CompilerParams(
            dimension_semantics=("parallel",),   # batch blocks -> megacore on v7x
            vmem_limit_bytes=_vmem_limit_bytes(T, tb, Hp, L, whh_all.dtype, out_dtype)),
    )(*inputs)


# ----------------------------------------------------------------------------
# Parameters: init (matches PyTorch GRU layout, stored transposed) + TPU prep
# ----------------------------------------------------------------------------
def init_params(key, vocab_size, embed_dim, hidden_dim, num_layers):
    params = {}
    k_emb, key = jax.random.split(key)
    params["embedding"] = jax.random.normal(k_emb, (vocab_size, embed_dim), jnp.float32)
    bound = 1.0 / jnp.sqrt(hidden_dim)
    layers = []
    for l in range(num_layers):
        in_dim = embed_dim if l == 0 else hidden_dim
        key, k1, k2, k3, k4 = jax.random.split(key, 5)
        layers.append({
            # stored already transposed: (in, 3H) so forward does x @ W
            "w_ih": jax.random.uniform(k1, (in_dim, 3 * hidden_dim), jnp.float32, -bound, bound),
            "w_hh": jax.random.uniform(k2, (hidden_dim, 3 * hidden_dim), jnp.float32, -bound, bound),
            "b_ih": jax.random.uniform(k3, (1, 3 * hidden_dim), jnp.float32, -bound, bound),
            "b_hh": jax.random.uniform(k4, (1, 3 * hidden_dim), jnp.float32, -bound, bound),
        })
    params["layers"] = layers
    return params


def prepare_params(params, compute_dtype=jnp.float32):
    """Pad gates to lane width, fold r/z hidden biases into the input bias, stack layers.
    compute_dtype=bf16 is recommended on ALL TPU gens (v5e/v6e/v7x MXUs are bf16-native);
    f32 accumulation and f32 gate elementwise math are kept regardless."""
    layers = params["layers"]
    H = layers[0]["w_hh"].shape[0]
    Hp = _round_up(H, 128)

    whh, bhhn, wih_rest, bih_rest = [], [], [], []
    wih0 = bih0 = None
    for l, lp in enumerate(layers):
        b_ih, b_hh = lp["b_ih"], lp["b_hh"]                       # (1, 3H)
        b_hh_r, b_hh_z, b_hh_n = jnp.split(b_hh, 3, axis=-1)
        # fold r/z hidden biases into the (hoisted) input-gate bias; n stays (gated by r)
        b_ih_eff = b_ih + jnp.concatenate(
            [b_hh_r, b_hh_z, jnp.zeros_like(b_hh_n)], axis=-1)

        w_ih = lp["w_ih"]                                         # (in, 3H)
        if l > 0:
            w_ih = jnp.pad(w_ih, ((0, Hp - H), (0, 0)))           # input rows H -> Hp
        w_ih_p = _pad_gate_cols(w_ih, H, Hp)
        b_ih_p = _pad_gate_cols(b_ih_eff, H, Hp)

        w_hh_p = _pad_gate_cols(jnp.pad(lp["w_hh"], ((0, Hp - H), (0, 0))), H, Hp)
        b_hh_n_p = jnp.pad(b_hh_n, ((0, 0), (0, Hp - H)))

        whh.append(w_hh_p.astype(compute_dtype))
        bhhn.append(b_hh_n_p.astype(jnp.float32))
        if l == 0:
            wih0 = w_ih_p.astype(compute_dtype)                   # (E, 3Hp)
            bih0 = b_ih_p.astype(jnp.float32)                     # (1, 3Hp)
        else:
            wih_rest.append(w_ih_p.astype(compute_dtype))
            bih_rest.append(b_ih_p.astype(jnp.float32))

    return {
        "embedding": params["embedding"],
        "wih0": wih0, "bih0": bih0,
        "whh_all": jnp.stack(whh, 0),                              # (L, Hp, 3Hp)
        "bhhn_all": jnp.stack(bhhn, 0),                            # (L, 1, Hp)
        "wih_rest": jnp.stack(wih_rest, 0) if wih_rest else None,  # (L-1, Hp, 3Hp) or None
        "bih_rest": jnp.stack(bih_rest, 0) if bih_rest else None,  # (L-1, 1, 3Hp) or None
    }


# ----------------------------------------------------------------------------
# SequenceEncoder forward (Embedding + stacked GRU), matching PyTorch semantics
# ----------------------------------------------------------------------------
def sequence_encoder_forward(prep, x_tokens, hidden_state):
    """x_tokens: (B, T) int32; hidden_state: (num_layers, B, H).
    Returns (outputs (B, T, H) f32, hidden (num_layers, B, H) f32) -- same as nn.Module."""
    B, T = x_tokens.shape
    L, _, H = hidden_state.shape
    Hp = prep["whh_all"].shape[1]
    cdt = prep["whh_all"].dtype

    # Sublane-align the batch; for B > 8, pad so it splits into 2 "parallel" grid blocks
    # (v7x: 2 TensorCores; on v5e/v6e the extra grid step is negligible overhead).
    if B <= 8:
        Bp = _round_up(B, 8)
        tb = Bp
    else:
        Bp = _round_up(B, 16)
        tb = Bp // 2

    # Embedding gather: plain-JAX glue (cheap at these sizes).
    emb = prep["embedding"][x_tokens]                    # (B, T, E)
    emb = jnp.transpose(emb, (1, 0, 2))                  # (T, B, E) time-major
    emb = jnp.pad(emb, ((0, 0), (0, Bp - B), (0, 0)))    # sublane-align batch
    E = emb.shape[-1]

    # Hoisted layer-0 input-gate matmul: one (T*Bp, E) x (E, 3Hp) matmul at default
    # precision (HIGHEST cost 3-6x MXU passes on the largest matmul in the model).
    gi0 = jnp.dot(emb.reshape(T * Bp, E).astype(cdt), prep["wih0"],
                  preferred_element_type=jnp.float32) + prep["bih0"]
    gi0 = gi0.reshape(T, Bp, 3 * Hp)

    h0 = jnp.pad(hidden_state.astype(jnp.float32),
                 ((0, 0), (0, Bp - B), (0, Hp - H)))     # (L, Bp, Hp)

    out_seq, h_final = _gru_stack_pallas(
        gi0, h0, prep["whh_all"], prep["bhhn_all"],
        prep["wih_rest"], prep["bih_rest"],
        num_layers=L, seq_len=T, batch_block=tb, out_dtype=cdt)

    outputs = jnp.transpose(out_seq[:, :B, :H], (1, 0, 2)).astype(jnp.float32)
    hidden = h_final[:, :B, :H]                          # (L, B, H)
    return outputs, hidden


# ----------------------------------------------------------------------------
# Pure-JAX reference (lax.scan, HIGHEST precision) for a correctness check
# ----------------------------------------------------------------------------
def _gru_layer_ref(x_tm, h0, w_ih, w_hh, b_ih, b_hh):
    H = h0.shape[-1]
    hi = jax.lax.Precision.HIGHEST

    def step(h, x_t):
        gi = jnp.dot(x_t, w_ih, precision=hi) + b_ih
        gh = jnp.dot(h, w_hh, precision=hi) + b_hh
        r = jax.nn.sigmoid(gi[:, :H] + gh[:, :H])
        z = jax.nn.sigmoid(gi[:, H:2 * H] + gh[:, H:2 * H])
        n = jnp.tanh(gi[:, 2 * H:] + r * gh[:, 2 * H:])
        h_new = (1.0 - z) * n + z * h
        return h_new, h_new

    hT, outs = jax.lax.scan(step, h0, x_tm)
    return outs, hT


def sequence_encoder_ref(params, x_tokens, hidden_state):
    layer_in = jnp.transpose(params["embedding"][x_tokens], (1, 0, 2))
    h_finals = []
    for l, lp in enumerate(params["layers"]):
        layer_in, hT = _gru_layer_ref(layer_in, hidden_state[l],
                                      lp["w_ih"], lp["w_hh"], lp["b_ih"], lp["b_hh"])
        h_finals.append(hT)
    return jnp.transpose(layer_in, (1, 0, 2)), jnp.stack(h_finals, 0)


if __name__ == "__main__":
    vocab_size, embed_dim, hidden_dim, num_layers = 50, 32, 32, 2
    batch, seq_len = 2, 8

    key = jax.random.PRNGKey(0)
    k_params, k_tokens = jax.random.split(key)
    params = init_params(k_params, vocab_size, embed_dim, hidden_dim, num_layers)

    x_tokens = jax.random.randint(k_tokens, (batch, seq_len), 0, vocab_size, jnp.int32)
    hidden0 = jnp.zeros((num_layers, batch, hidden_dim), jnp.float32)  # init_hidden()

    fwd = jax.jit(sequence_encoder_forward)
    ref_out, ref_hid = sequence_encoder_ref(params, x_tokens, hidden0)

    # f32-weight path (default matmul precision -> looser, but still tight, tolerance).
    prep_f32 = prepare_params(params, compute_dtype=jnp.float32)
    outputs, hidden = fwd(prep_f32, x_tokens, hidden0)
    outputs = jax.block_until_ready(outputs)
    hidden = jax.block_until_ready(hidden)
    assert outputs.shape == (batch, seq_len, hidden_dim)
    assert hidden.shape == (num_layers, batch, hidden_dim)
    assert jnp.allclose(outputs, ref_out, atol=3e-2, rtol=3e-2)
    assert jnp.allclose(hidden, ref_hid, atol=3e-2, rtol=3e-2)

    # bf16-weight path (recommended on v5e/v6e/v7x): bf16 MXU + bf16 activation buffer,
    # f32 accumulation and f32 gate math.
    prep_bf16 = prepare_params(params, compute_dtype=jnp.bfloat16)
    out_bf, hid_bf = fwd(prep_bf16, x_tokens, hidden0)
    out_bf = jax.block_until_ready(out_bf)
    assert jnp.allclose(out_bf, ref_out, atol=8e-2, rtol=8e-2)

    print("KERNEL_OK")
</pallas_src>

<mosaic_0001>
module attributes {stable_mosaic.version = 11 : i64} {
  func.func @_gru_stack_kernel(%arg0: i32, %arg1: memref<8x8x384xf32, #tpu.memory_space<vmem>>, %arg2: memref<2x8x128xf32, #tpu.memory_space<vmem>>, %arg3: memref<2x128x384xf32, #tpu.memory_space<vmem>>, %arg4: memref<2x1x128xf32, #tpu.memory_space<vmem>>, %arg5: memref<1x128x384xf32, #tpu.memory_space<vmem>>, %arg6: memref<1x1x384xf32, #tpu.memory_space<vmem>>, %arg7: memref<8x8x128xf32, #tpu.memory_space<vmem>>, %arg8: memref<2x8x128xf32, #tpu.memory_space<vmem>>, %arg9: memref<8x8x384xf32, #tpu.memory_space<vmem>>) attributes {dimension_semantics = [#tpu.dimension_semantics<parallel>], iteration_bounds = array<i64: 1>, scalar_prefetch = 0 : i64, scratch_operands = 1 : i64, tpu.core_type = #tpu.core_type<tc>, window_params = [{transform_indices = @transform_0, window_bounds = array<i64: 8, 8, 384>}, {transform_indices = @transform_1, window_bounds = array<i64: 2, 8, 128>}, {pipeline_mode = #tpu.pipeline_mode<synchronous>, transform_indices = @transform_2, window_bounds = array<i64: 2, 128, 384>}, {pipeline_mode = #tpu.pipeline_mode<synchronous>, transform_indices = @transform_3, window_bounds = array<i64: 2, 1, 128>}, {pipeline_mode = #tpu.pipeline_mode<synchronous>, transform_indices = @transform_4, window_bounds = array<i64: 1, 128, 384>}, {pipeline_mode = #tpu.pipeline_mode<synchronous>, transform_indices = @transform_5, window_bounds = array<i64: 1, 1, 384>}, {transform_indices = @transform_6, window_bounds = array<i64: 8, 8, 128>}, {transform_indices = @transform_7, window_bounds = array<i64: 2, 8, 128>}]} {
    %c0 = arith.constant 0 : index
    %c0_0 = arith.constant 0 : index
    %c0_1 = arith.constant 0 : index
    %0 = vector.load %arg3[%c0, %c0_0, %c0_1] : memref<2x128x384xf32, #tpu.memory_space<vmem>>, vector<1x128x384xf32>
    %1 = vector.shape_cast %0 : vector<1x128x384xf32> to vector<128x384xf32>
    %c0_2 = arith.constant 0 : index
    %c0_3 = arith.constant 0 : index
    %c0_4 = arith.constant 0 : index
    %2 = vector.load %arg4[%c0_2, %c0_3, %c0_4] : memref<2x1x128xf32, #tpu.memory_space<vmem>>, vector<1x1x128xf32>
    %3 = vector.shape_cast %2 : vector<1x1x128xf32> to vector<1x128xf32>
    %4 = vector.shape_cast %3 : vector<1x128xf32> to vector<1x128xf32>
    %5 = vector.broadcast %4 : vector<1x128xf32> to vector<8x128xf32>
    %c0_5 = arith.constant 0 : index
    %c0_6 = arith.constant 0 : index
    %c0_7 = arith.constant 0 : index
    %6 = vector.load %arg2[%c0_5, %c0_6, %c0_7] : memref<2x8x128xf32, #tpu.memory_space<vmem>>, vector<1x8x128xf32>
    %7 = vector.shape_cast %6 : vector<1x8x128xf32> to vector<8x128xf32>
    %c0_i32 = arith.constant 0 : i32
    %8 = arith.index_cast %c0_i32 : i32 to index
    %c0_8 = arith.constant 0 : index
    %c0_9 = arith.constant 0 : index
    %9 = vector.load %arg1[%8, %c0_8, %c0_9] : memref<8x8x384xf32, #tpu.memory_space<vmem>>, vector<1x8x384xf32>
    %10 = vector.shape_cast %9 : vector<1x8x384xf32> to vector<8x384xf32>
    %cst = arith.constant dense<0.000000e+00> : vector<8x384xf32>
    %11 = tpu.matmul %7, %1, %cst {dimension_numbers = #tpu.dot_dimension_numbers<[1], [0], [0], [1], [0, 0, 1, 1], [], []>} : vector<8x128xf32>, vector<128x384xf32>, vector<8x384xf32> -> vector<8x384xf32>
    %12 = vector.extract_strided_slice %10 {offsets = [0, 0], sizes = [8, 128], strides = [1, 1]} : vector<8x384xf32> to vector<8x128xf32>
    %13 = vector.extract_strided_slice %11 {offsets = [0, 0], sizes = [8, 128], strides = [1, 1]} : vector<8x384xf32> to vector<8x128xf32>
    %14 = arith.addf %12, %13 : vector<8x128xf32>
    %15 = arith.negf %14 : vector<8x128xf32>
    %16 = math.exp %15 : vector<8x128xf32>
    %cst_10 = arith.constant 1.000000e+00 : f32
    %17 = vector.broadcast %cst_10 : f32 to vector<8x128xf32>
    %18 = arith.addf %17, %16 : vector<8x128xf32>
    %19 = arith.divf %17, %18 : vector<8x128xf32>
    %20 = vector.extract_strided_slice %10 {offsets = [0, 128], sizes = [8, 128], strides = [1, 1]} : vector<8x384xf32> to vector<8x128xf32>
    %21 = vector.extract_strided_slice %11 {offsets = [0, 128], sizes = [8, 128], strides = [1, 1]} : vector<8x384xf32> to vector<8x128xf32>
    %22 = arith.addf %20, %21 : vector<8x128xf32>
    %23 = arith.negf %22 : vector<8x128xf32>
    %24 = math.exp %23 : vector<8x128xf32>
    %cst_11 = arith.constant 1.000000e+00 : f32
    %25 = vector.broadcast %cst_11 : f32 to vector<8x128xf32>
    %26 = arith.addf %25, %24 : vector<8x128xf32>
    %27 = arith.divf %25, %26 : vector<8x128xf32>
    %28 = vector.extract_strided_slice %10 {offsets = [0, 256], sizes = [8, 128], strides = [1, 1]} : vector<8x384xf32> to vector<8x128xf32>
    %29 = vector.extract_strided_slice %11 {offsets = [0, 256], sizes = [8, 128], strides = [1, 1]} : vector<8x384xf32> to vector<8x128xf32>
    %30 = arith.addf %29, %5 : vector<8x128xf32>
    %31 = arith.mulf %19, %30 : vector<8x128xf32>
    %32 = arith.addf %28, %31 : vector<8x128xf32>
    %33 = math.tanh %32 : vector<8x128xf32>
    %cst_12 = arith.constant 1.000000e+00 : f32
    %34 = vector.broadcast %cst_12 : f32 to vector<8x128xf32>
    %35 = arith.subf %34, %27 : vector<8x128xf32>
    %36 = arith.mulf %35, %33 : vector<8x128xf32>
    %37 = arith.mulf %27, %7 : vector<8x128xf32>
    %38 = arith.addf %36, %37 : vector<8x128xf32>
    %39 = arith.index_cast %c0_i32 : i32 to index
    %c0_13 = arith.constant 0 : index
    %c0_14 = arith.constant 0 : index
    %40 = vector.load %arg7[%39, %c0_13, %c0_14] : memref<8x8x128xf32, #tpu.memory_space<vmem>>, vector<1x8x128xf32>
    %41 = vector.shape_cast %40 : vector<1x8x128xf32> to vector<8x128xf32>
    %42 = vector.shape_cast %38 : vector<8x128xf32> to vector<1x8x128xf32>
    tpu.vector_store %arg7[%39, %c0_13, %c0_14], %42 {strides = array<i32>} : memref<8x8x128xf32, #tpu.memory_space<vmem>>, vector<1x8x128xf32>,
    %c1_i32 = arith.constant 1 : i32
    %43 = arith.index_cast %c1_i32 : i32 to index
    %c0_15 = arith.constant 0 : index
    %c0_16 = arith.constant 0 : index
    %44 = vector.load %arg1[%43, %c0_15, %c0_16] : memref<8x8x384xf32, #tpu.memory_space<vmem>>, vector<1x8x384xf32>
    %45 = vector.shape_cast %44 : vector<1x8x384xf32> to vector<8x384xf32>
    %cst_17 = arith.constant dense<0.000000e+00> : vector<8x384xf32>
    %46 = tpu.matmul %38, %1, %cst_17 {dimension_numbers = #tpu.dot_dimension_numbers<[1], [0], [0], [1], [0, 0, 1, 1], [], []>} : vector<8x128xf32>, vector<128x384xf32>, vector<8x384xf32> -> vector<8x384xf32>
    %47 = vector.extract_strided_slice %45 {offsets = [0, 0], sizes = [8, 128], strides = [1, 1]} : vector<8x384xf32> to vector<8x128xf32>
    %48 = vector.extract_strided_slice %46 {offsets = [0, 0], sizes = [8, 128], strides = [1, 1]} : vector<8x384xf32> to vector<8x128xf32>
    %49 = arith.addf %47, %48 : vector<8x128xf32>
    %50 = arith.negf %49 : vector<8x128xf32>
    %51 = math.exp %50 : vector<8x128xf32>
    %cst_18 = arith.constant 1.000000e+00 : f32
    %52 = vector.broadcast %cst_18 : f32 to vector<8x128xf32>
    %53 = arith.addf %52, %51 : vector<8x128xf32>
    %54 = arith.divf %52, %53 : vector<8x128xf32>
    %55 = vector.extract_strided_slice %45 {offsets = [0, 128], sizes = [8, 128], strides = [1, 1]} : vector<8x384xf32> to vector<8x128xf32>
    %56 = vector.extract_strided_slice %46 {offsets = [0, 128], sizes = [8, 128], strides = [1, 1]} : vector<8x384xf32> to vector<8x128xf32>
    %57 = arith.addf %55, %56 : vector<8x128xf32>
    %58 = arith.negf %57 : vector<8x128xf32>
    %59 = math.exp %58 : vector<8x128xf32>
    %cst_19 = arith.constant 1.000000e+00 : f32
    %60 = vector.broadcast %cst_19 : f32 to vector<8x128xf32>
    %61 = arith.addf %60, %59 : vector<8x128xf32>
    %62 = arith.divf %60, %61 : vector<8x128xf32>
    %63 = vector.extract_strided_slice %45 {offsets = [0, 256], sizes = [8, 128], strides = [1, 1]} : vector<8x384xf32> to vector<8x128xf32>
    %64 = vector.extract_strided_slice %46 {offsets = [0, 256], sizes = [8, 128], strides = [1, 1]} : vector<8x384xf32> to vector<8x128xf32>
    %65 = arith.addf %64, %5 : vector<8x128xf32>
    %66 = arith.mulf %54, %65 : vector<8x128xf32>
    %67 = arith.addf %63, %66 : vector<8x128xf32>
    %68 = math.tanh %67 : vector<8x128xf32>
    %cst_20 = arith.constant 1.000000e+00 : f32
    %69 = vector.broadcast %cst_20 : f32 to vector<8x128xf32>
    %70 = arith.subf %69, %62 : vector<8x128xf32>
    %71 = arith.mulf %70, %68 : vector<8x128xf32>
    %72 = arith.mulf %62, %38 : vector<8x128xf32>
    %73 = arith.addf %71, %72 : vector<8x128xf32>
    %74 = arith.index_cast %c1_i32 : i32 to index
    %c0_21 = arith.constant 0 : index
    %c0_22 = arith.constant 0 : index
    %75 = vector.load %arg7[%74, %c0_21, %c0_22] : memref<8x8x128xf32, #tpu.memory_space<vmem>>, vector<1x8x128xf32>
    %76 = vector.shape_cast %75 : vector<1x8x128xf32> to vector<8x128xf32>
    %77 = vector.shape_cast %73 : vector<8x128xf32> to vector<1x8x128xf32>
    tpu.vector_store %arg7[%74, %c0_21, %c0_22], %77 {strides = array<i32>} : memref<8x8x128xf32, #tpu.memory_space<vmem>>, vector<1x8x128xf32>,
    %c2_i32 = arith.constant 2 : i32
    %78 = arith.index_cast %c2_i32 : i32 to index
    %c0_23 = arith.constant 0 : index
    %c0_24 = arith.constant 0 : index
    %79 = vector.load %arg1[%78, %c0_23, %c0_24] : memref<8x8x384xf32, #tpu.memory_space<vmem>>, vector<1x8x384xf32>
    %80 = vector.shape_cast %79 : vector<1x8x384xf32> to vector<8x384xf32>
    %cst_25 = arith.constant dense<0.000000e+00> : vector<8x384xf32>
    %81 = tpu.matmul %73, %1, %cst_25 {dimension_numbers = #tpu.dot_dimension_numbers<[1], [0], [0], [1], [0, 0, 1, 1], [], []>} : vector<8x128xf32>, vector<128x384xf32>, vector<8x384xf32> -> vector<8x384xf32>
    %82 = vector.extract_strided_slice %80 {offsets = [0, 0], sizes = [8, 128], strides = [1, 1]} : vector<8x384xf32> to vector<8x128xf32>
    %83 = vector.extract_strided_slice %81 {offsets = [0, 0], sizes = [8, 128], strides = [1, 1]} : vector<8x384xf32> to vector<8x128xf32>
    %84 = arith.addf %82, %83 : vector<8x128xf32>
    %85 = arith.negf %84 : vector<8x128xf32>
    %86 = math.exp %85 : vector<8x128xf32>
    %cst_26 = arith.constant 1.000000e+00 : f32
    %87 = vector.broadcast %cst_26 : f32 to vector<8x128xf32>
    %88 = arith.addf %87, %86 : vector<8x128xf32>
    %89 = arith.divf %87, %88 : vector<8x128xf32>
    %90 = vector.extract_strided_slice %80 {offsets = [0, 128], sizes = [8, 128], strides = [1, 1]} : vector<8x384xf32> to vector<8x128xf32>
    %91 = vector.extract_strided_slice %81 {offsets = [0, 128], sizes = [8, 128], strides = [1, 1]} : vector<8x384xf32> to vector<8x128xf32>
    %92 = arith.addf %90, %91 : vector<8x128xf32>
    %93 = arith.negf %92 : vector<8x128xf32>
    %94 = math.exp %93 : vector<8x128xf32>
    %cst_27 = arith.constant 1.000000e+00 : f32
    %95 = vector.broadcast %cst_27 : f32 to vector<8x128xf32>
    %96 = arith.addf %95, %94 : vector<8x128xf32>
    %97 = arith.divf %95, %96 : vector<8x128xf32>
    %98 = vector.extract_strided_slice %80 {offsets = [0, 256], sizes = [8, 128], strides = [1, 1]} : vector<8x384xf32> to vector<8x128xf32>
    %99 = vector.extract_strided_slice %81 {offsets = [0, 256], sizes = [8, 128], strides = [1, 1]} : vector<8x384xf32> to vector<8x128xf32>
    %100 = arith.addf %99, %5 : vector<8x128xf32>
    %101 = arith.mulf %89, %100 : vector<8x128xf32>
    %102 = arith.addf %98, %101 : vector<8x128xf32>
    %103 = math.tanh %102 : vector<8x128xf32>
    %cst_28 = arith.constant 1.000000e+00 : f32
    %104 = vector.broadcast %cst_28 : f32 to vector<8x128xf32>
    %105 = arith.subf %104, %97 : vector<8x128xf32>
    %106 = arith.mulf %105, %103 : vector<8x128xf32>
    %107 = arith.mulf %97, %73 : vector<8x128xf32>
    %108 = arith.addf %106, %107 : vector<8x128xf32>
    %109 = arith.index_cast %c2_i32 : i32 to index
    %c0_29 = arith.constant 0 : index
    %c0_30 = arith.constant 0 : index
    %110 = vector.load %arg7[%109, %c0_29, %c0_30] : memref<8x8x128xf32, #tpu.memory_space<vmem>>, vector<1x8x128xf32>
    %111 = vector.shape_cast %110 : vector<1x8x128xf32> to vector<8x128xf32>
    %112 = vector.shape_cast %108 : vector<8x128xf32> to vector<1x8x128xf32>
    tpu.vector_store %arg7[%109, %c0_29, %c0_30], %112 {strides = array<i32>} : memref<8x8x128xf32, #tpu.memory_space<vmem>>, vector<1x8x128xf32>,
    %c3_i32 = arith.constant 3 : i32
    %113 = arith.index_cast %c3_i32 : i32 to index
    %c0_31 = arith.constant 0 : index
    %c0_32 = arith.constant 0 : index
    %114 = vector.load %arg1[%113, %c0_31, %c0_32] : memref<8x8x384xf32, #tpu.memory_space<vmem>>, vector<1x8x384xf32>
    %115 = vector.shape_cast %114 : vector<1x8x384xf32> to vector<8x384xf32>
    %cst_33 = arith.constant dense<0.000000e+00> : vector<8x384xf32>
    %116 = tpu.matmul %108, %1, %cst_33 {dimension_numbers = #tpu.dot_dimension_numbers<[1], [0], [0], [1], [0, 0, 1, 1], [], []>} : vector<8x128xf32>, vector<128x384xf32>, vector<8x384xf32> -> vector<8x384xf32>
    %117 = vector.extract_strided_slice %115 {offsets = [0, 0], sizes = [8, 128], strides = [1, 1]} : vector<8x384xf32> to vector<8x128xf32>
    %118 = vector.extract_strided_slice %116 {offsets = [0, 0], sizes = [8, 128], strides = [1, 1]} : vector<8x384xf32> to vector<8x128xf32>
    %119 = arith.addf %117, %118 : vector<8x128xf32>
    %120 = arith.negf %119 : vector<8x128xf32>
    %121 = math.exp %120 : vector<8x128xf32>
    %cst_34 = arith.constant 1.000000e+00 : f32
    %122 = vector.broadcast %cst_34 : f32 to vector<8x128xf32>
    %123 = arith.addf %122, %121 : vector<8x128xf32>
    %124 = arith.divf %122, %123 : vector<8x128xf32>
    %125 = vector.extract_strided_slice %115 {offsets = [0, 128], sizes = [8, 128], strides = [1, 1]} : vector<8x384xf32> to vector<8x128xf32>
    %126 = vector.extract_strided_slice %116 {offsets = [0, 128], sizes = [8, 128], strides = [1, 1]} : vector<8x384xf32> to vector<8x128xf32>
    %127 = arith.addf %125, %126 : vector<8x128xf32>
    %128 = arith.negf %127 : vector<8x128xf32>
    %129 = math.exp %128 : vector<8x128xf32>
    %cst_35 = arith.constant 1.000000e+00 : f32
    %130 = vector.broadcast %cst_35 : f32 to vector<8x128xf32>
    %131 = arith.addf %130, %129 : vector<8x128xf32>
    %132 = arith.divf %130, %131 : vector<8x128xf32>
    %133 = vector.extract_strided_slice %115 {offsets = [0, 256], sizes = [8, 128], strides = [1, 1]} : vector<8x384xf32> to vector<8x128xf32>
    %134 = vector.extract_strided_slice %116 {offsets = [0, 256], sizes = [8, 128], strides = [1, 1]} : vector<8x384xf32> to vector<8x128xf32>
    %135 = arith.addf %134, %5 : vector<8x128xf32>
    %136 = arith.mulf %124, %135 : vector<8x128xf32>
    %137 = arith.addf %133, %136 : vector<8x128xf32>
    %138 = math.tanh %137 : vector<8x128xf32>
    %cst_36 = arith.constant 1.000000e+00 : f32
    %139 = vector.broadcast %cst_36 : f32 to vector<8x128xf32>
    %140 = arith.subf %139, %132 : vector<8x128xf32>
    %141 = arith.mulf %140, %138 : vector<8x128xf32>
    %142 = arith.mulf %132, %108 : vector<8x128xf32>
    %143 = arith.addf %141, %142 : vector<8x128xf32>
    %144 = arith.index_cast %c3_i32 : i32 to index
    %c0_37 = arith.constant 0 : index
    %c0_38 = arith.constant 0 : index
    %145 = vector.load %arg7[%144, %c0_37, %c0_38] : memref<8x8x128xf32, #tpu.memory_space<vmem>>, vector<1x8x128xf32>
    %146 = vector.shape_cast %145 : vector<1x8x128xf32> to vector<8x128xf32>
    %147 = vector.shape_cast %143 : vector<8x128xf32> to vector<1x8x128xf32>
    tpu.vector_store %arg7[%144, %c0_37, %c0_38], %147 {strides = array<i32>} : memref<8x8x128xf32, #tpu.memory_space<vmem>>, vector<1x8x128xf32>,
    %c4_i32 = arith.constant 4 : i32
    %148 = arith.index_cast %c4_i32 : i32 to index
    %c0_39 = arith.constant 0 : index
    %c0_40 = arith.constant 0 : index
    %149 = vector.load %arg1[%148, %c0_39, %c0_40] : memref<8x8x384xf32, #tpu.memory_space<vmem>>, vector<1x8x384xf32>
    %150 = vector.shape_cast %149 : vector<1x8x384xf32> to vector<8x384xf32>
    %cst_41 = arith.constant dense<0.000000e+00> : vector<8x384xf32>
    %151 = tpu.matmul %143, %1, %cst_41 {dimension_numbers = #tpu.dot_dimension_numbers<[1], [0], [0], [1], [0, 0, 1, 1], [], []>} : vector<8x128xf32>, vector<128x384xf32>, vector<8x384xf32> -> vector<8x384xf32>
    %152 = vector.extract_strided_slice %150 {offsets = [0, 0], sizes = [8, 128], strides = [1, 1]} : vector<8x384xf32> to vector<8x128xf32>
    %153 = vector.extract_strided_slice %151 {offsets = [0, 0], sizes = [8, 128], strides = [1, 1]} : vector<8x384xf32> to vector<8x128xf32>
    %154 = arith.addf %152, %153 : vector<8x128xf32>
    %155 = arith.negf %154 : vector<8x128xf32>
    %156 = math.exp %155 : vector<8x128xf32>
    %cst_42 = arith.constant 1.000000e+00 : f32
    %157 = vector.broadcast %cst_42 : f32 to vector<8x128xf32>
    %158 = arith.addf %157, %156 : vector<8x128xf32>
    %159 = arith.divf %157, %158 : vector<8x128xf32>
    %160 = vector.extract_strided_slice %150 {offsets = [0, 128], sizes = [8, 128], strides = [1, 1]} : vector<8x384xf32> to vector<8x128xf32>
    %161 = vector.extract_strided_slice %151 {offsets = [0, 128], sizes = [8, 128], strides = [1, 1]} : vector<8x384xf32> to vector<8x128xf32>
    %162 = arith.addf %160, %161 : vector<8x128xf32>
    %163 = arith.negf %162 : vector<8x128xf32>
    %164 = math.exp %163 : vector<8x128xf32>
    %cst_43 = arith.constant 1.000000e+00 : f32
    %165 = vector.broadcast %cst_43 : f32 to vector<8x128xf32>
    %166 = arith.addf %165, %164 : vector<8x128xf32>
    %167 = arith.divf %165, %166 : vector<8x128xf32>
    %168 = vector.extract_strided_slice %150 {offsets = [0, 256], sizes = [8, 128], strides = [1, 1]} : vector<8x384xf32> to vector<8x128xf32>
    %169 = vector.extract_strided_slice %151 {offsets = [0, 256], sizes = [8, 128], strides = [1, 1]} : vector<8x384xf32> to vector<8x128xf32>
    %170 = arith.addf %169, %5 : vector<8x128xf32>
    %171 = arith.mulf %159, %170 : vector<8x128xf32>
    %172 = arith.addf %168, %171 : vector<8x128xf32>
    %173 = math.tanh %172 : vector<8x128xf32>
    %cst_44 = arith.constant 1.000000e+00 : f32
    %174 = vector.broadcast %cst_44 : f32 to vector<8x128xf32>
    %175 = arith.subf %174, %167 : vector<8x128xf32>
    %176 = arith.mulf %175, %173 : vector<8x128xf32>
    %177 = arith.mulf %167, %143 : vector<8x128xf32>
    %178 = arith.addf %176, %177 : vector<8x128xf32>
    %179 = arith.index_cast %c4_i32 : i32 to index
    %c0_45 = arith.constant 0 : index
    %c0_46 = arith.constant 0 : index
    %180 = vector.load %arg7[%179, %c0_45, %c0_46] : memref<8x8x128xf32, #tpu.memory_space<vmem>>, vector<1x8x128xf32>
    %181 = vector.shape_cast %180 : vector<1x8x128xf32> to vector<8x128xf32>
    %182 = vector.shape_cast %178 : vector<8x128xf32> to vector<1x8x128xf32>
    tpu.vector_store %arg7[%179, %c0_45, %c0_46], %182 {strides = array<i32>} : memref<8x8x128xf32, #tpu.memory_space<vmem>>, vector<1x8x128xf32>,
    %c5_i32 = arith.constant 5 : i32
    %183 = arith.index_cast %c5_i32 : i32 to index
    %c0_47 = arith.constant 0 : index
    %c0_48 = arith.constant 0 : index
    %184 = vector.load %arg1[%183, %c0_47, %c0_48] : memref<8x8x384xf32, #tpu.memory_space<vmem>>, vector<1x8x384xf32>
    %185 = vector.shape_cast %184 : vector<1x8x384xf32> to vector<8x384xf32>
    %cst_49 = arith.constant dense<0.000000e+00> : vector<8x384xf32>
    %186 = tpu.matmul %178, %1, %cst_49 {dimension_numbers = #tpu.dot_dimension_numbers<[1], [0], [0], [1], [0, 0, 1, 1], [], []>} : vector<8x128xf32>, vector<128x384xf32>, vector<8x384xf32> -> vector<8x384xf32>
    %187 = vector.extract_strided_slice %185 {offsets = [0, 0], sizes = [8, 128], strides = [1, 1]} : vector<8x384xf32> to vector<8x128xf32>
    %188 = vector.extract_strided_slice %186 {offsets = [0, 0], sizes = [8, 128], strides = [1, 1]} : vector<8x384xf32> to vector<8x128xf32>
    %189 = arith.addf %187, %188 : vector<8x128xf32>
    %190 = arith.negf %189 : vector<8x128xf32>
    %191 = math.exp %190 : vector<8x128xf32>
    %cst_50 = arith.constant 1.000000e+00 : f32
    %192 = vector.broadcast %cst_50 : f32 to vector<8x128xf32>
    %193 = arith.addf %192, %191 : vector<8x128xf32>
    %194 = arith.divf %192, %193 : vector<8x128xf32>
    %195 = vector.extract_strided_slice %185 {offsets = [0, 128], sizes = [8, 128], strides = [1, 1]} : vector<8x384xf32> to vector<8x128xf32>
    %196 = vector.extract_strided_slice %186 {offsets = [0, 128], sizes = [8, 128], strides = [1, 1]} : vector<8x384xf32> to vector<8x128xf32>
    %197 = arith.addf %195, %196 : vector<8x128xf32>
    %198 = arith.negf %197 : vector<8x128xf32>
    %199 = math.exp %198 : vector<8x128xf32>
    %cst_51 = arith.constant 1.000000e+00 : f32
    %200 = vector.broadcast %cst_51 : f32 to vector<8x128xf32>
    %201 = arith.addf %200, %199 : vector<8x128xf32>
    %202 = arith.divf %200, %201 : vector<8x128xf32>
    %203 = vector.extract_strided_slice %185 {offsets = [0, 256], sizes = [8, 128], strides = [1, 1]} : vector<8x384xf32> to vector<8x128xf32>
    %204 = vector.extract_strided_slice %186 {offsets = [0, 256], sizes = [8, 128], strides = [1, 1]} : vector<8x384xf32> to vector<8x128xf32>
    %205 = arith.addf %204, %5 : vector<8x128xf32>
    %206 = arith.mulf %194, %205 : vector<8x128xf32>
    %207 = arith.addf %203, %206 : vector<8x128xf32>
    %208 = math.tanh %207 : vector<8x128xf32>
    %cst_52 = arith.constant 1.000000e+00 : f32
    %209 = vector.broadcast %cst_52 : f32 to vector<8x128xf32>
    %210 = arith.subf %209, %202 : vector<8x128xf32>
    %211 = arith.mulf %210, %208 : vector<8x128xf32>
    %212 = arith.mulf %202, %178 : vector<8x128xf32>
    %213 = arith.addf %211, %212 : vector<8x128xf32>
    %214 = arith.index_cast %c5_i32 : i32 to index
    %c0_53 = arith.constant 0 : index
    %c0_54 = arith.constant 0 : index
    %215 = vector.load %arg7[%214, %c0_53, %c0_54] : memref<8x8x128xf32, #tpu.memory_space<vmem>>, vector<1x8x128xf32>
    %216 = vector.shape_cast %215 : vector<1x8x128xf32> to vector<8x128xf32>
    %217 = vector.shape_cast %213 : vector<8x128xf32> to vector<1x8x128xf32>
    tpu.vector_store %arg7[%214, %c0_53, %c0_54], %217 {strides = array<i32>} : memref<8x8x128xf32, #tpu.memory_space<vmem>>, vector<1x8x128xf32>,
    %c6_i32 = arith.constant 6 : i32
    %218 = arith.index_cast %c6_i32 : i32 to index
    %c0_55 = arith.constant 0 : index
    %c0_56 = arith.constant 0 : index
    %219 = vector.load %arg1[%218, %c0_55, %c0_56] : memref<8x8x384xf32, #tpu.memory_space<vmem>>, vector<1x8x384xf32>
    %220 = vector.shape_cast %219 : vector<1x8x384xf32> to vector<8x384xf32>
    %cst_57 = arith.constant dense<0.000000e+00> : vector<8x384xf32>
    %221 = tpu.matmul %213, %1, %cst_57 {dimension_numbers = #tpu.dot_dimension_numbers<[1], [0], [0], [1], [0, 0, 1, 1], [], []>} : vector<8x128xf32>, vector<128x384xf32>, vector<8x384xf32> -> vector<8x384xf32>
    %222 = vector.extract_strided_slice %220 {offsets = [0, 0], sizes = [8, 128], strides = [1, 1]} : vector<8x384xf32> to vector<8x128xf32>
    %223 = vector.extract_strided_slice %221 {offsets = [0, 0], sizes = [8, 128], strides = [1, 1]} : vector<8x384xf32> to vector<8x128xf32>
    %224 = arith.addf %222, %223 : vector<8x128xf32>
    %225 = arith.negf %224 : vector<8x128xf32>
    %226 = math.exp %225 : vector<8x128xf32>
    %cst_58 = arith.constant 1.000000e+00 : f32
    %227 = vector.broadcast %cst_58 : f32 to vector<8x128xf32>
    %228 = arith.addf %227, %226 : vector<8x128xf32>
    %229 = arith.divf %227, %228 : vector<8x128xf32>
    %230 = vector.extract_strided_slice %220 {offsets = [0, 128], sizes = [8, 128], strides = [1, 1]} : vector<8x384xf32> to vector<8x128xf32>
    %231 = vector.extract_strided_slice %221 {offsets = [0, 128], sizes = [8, 128], strides = [1, 1]} : vector<8x384xf32> to vector<8x128xf32>
    %232 = arith.addf %230, %231 : vector<8x128xf32>
    %233 = arith.negf %232 : vector<8x128xf32>
    %234 = math.exp %233 : vector<8x128xf32>
    %cst_59 = arith.constant 1.000000e+00 : f32
    %235 = vector.broadcast %cst_59 : f32 to vector<8x128xf32>
    %236 = arith.addf %235, %234 : vector<8x128xf32>
    %237 = arith.divf %235, %236 : vector<8x128xf32>
    %238 = vector.extract_strided_slice %220 {offsets = [0, 256], sizes = [8, 128], strides = [1, 1]} : vector<8x384xf32> to vector<8x128xf32>
    %239 = vector.extract_strided_slice %221 {offsets = [0, 256], sizes = [8, 128], strides = [1, 1]} : vector<8x384xf32> to vector<8x128xf32>
    %240 = arith.addf %239, %5 : vector<8x128xf32>
    %241 = arith.mulf %229, %240 : vector<8x128xf32>
    %242 = arith.addf %238, %241 : vector<8x128xf32>
    %243 = math.tanh %242 : vector<8x128xf32>
    %cst_60 = arith.constant 1.000000e+00 : f32
    %244 = vector.broadcast %cst_60 : f32 to vector<8x128xf32>
    %245 = arith.subf %244, %237 : vector<8x128xf32>
    %246 = arith.mulf %245, %243 : vector<8x128xf32>
    %247 = arith.mulf %237, %213 : vector<8x128xf32>
    %248 = arith.addf %246, %247 : vector<8x128xf32>
    %249 = arith.index_cast %c6_i32 : i32 to index
    %c0_61 = arith.constant 0 : index
    %c0_62 = arith.constant 0 : index
    %250 = vector.load %arg7[%249, %c0_61, %c0_62] : memref<8x8x128xf32, #tpu.memory_space<vmem>>, vector<1x8x128xf32>
    %251 = vector.shape_cast %250 : vector<1x8x128xf32> to vector<8x128xf32>
    %252 = vector.shape_cast %248 : vector<8x128xf32> to vector<1x8x128xf32>
    tpu.vector_store %arg7[%249, %c0_61, %c0_62], %252 {strides = array<i32>} : memref<8x8x128xf32, #tpu.memory_space<vmem>>, vector<1x8x128xf32>,
    %c7_i32 = arith.constant 7 : i32
    %253 = arith.index_cast %c7_i32 : i32 to index
    %c0_63 = arith.constant 0 : index
    %c0_64 = arith.constant 0 : index
    %254 = vector.load %arg1[%253, %c0_63, %c0_64] : memref<8x8x384xf32, #tpu.memory_space<vmem>>, vector<1x8x384xf32>
    %255 = vector.shape_cast %254 : vector<1x8x384xf32> to vector<8x384xf32>
    %cst_65 = arith.constant dense<0.000000e+00> : vector<8x384xf32>
    %256 = tpu.matmul %248, %1, %cst_65 {dimension_numbers = #tpu.dot_dimension_numbers<[1], [0], [0], [1], [0, 0, 1, 1], [], []>} : vector<8x128xf32>, vector<128x384xf32>, vector<8x384xf32> -> vector<8x384xf32>
    %257 = vector.extract_strided_slice %255 {offsets = [0, 0], sizes = [8, 128], strides = [1, 1]} : vector<8x384xf32> to vector<8x128xf32>
    %258 = vector.extract_strided_slice %256 {offsets = [0, 0], sizes = [8, 128], strides = [1, 1]} : vector<8x384xf32> to vector<8x128xf32>
    %259 = arith.addf %257, %258 : vector<8x128xf32>
    %260 = arith.negf %259 : vector<8x128xf32>
    %261 = math.exp %260 : vector<8x128xf32>
    %cst_66 = arith.constant 1.000000e+00 : f32
    %262 = vector.broadcast %cst_66 : f32 to vector<8x128xf32>
    %263 = arith.addf %262, %261 : vector<8x128xf32>
    %264 = arith.divf %262, %263 : vector<8x128xf32>
    %265 = vector.extract_strided_slice %255 {offsets = [0, 128], sizes = [8, 128], strides = [1, 1]} : vector<8x384xf32> to vector<8x128xf32>
    %266 = vector.extract_strided_slice %256 {offsets = [0, 128], sizes = [8, 128], strides = [1, 1]} : vector<8x384xf32> to vector<8x128xf32>
    %267 = arith.addf %265, %266 : vector<8x128xf32>
    %268 = arith.negf %267 : vector<8x128xf32>
    %269 = math.exp %268 : vector<8x128xf32>
    %cst_67 = arith.constant 1.000000e+00 : f32
    %270 = vector.broadcast %cst_67 : f32 to vector<8x128xf32>
    %271 = arith.addf %270, %269 : vector<8x128xf32>
    %272 = arith.divf %270, %271 : vector<8x128xf32>
    %273 = vector.extract_strided_slice %255 {offsets = [0, 256], sizes = [8, 128], strides = [1, 1]} : vector<8x384xf32> to vector<8x128xf32>
    %274 = vector.extract_strided_slice %256 {offsets = [0, 256], sizes = [8, 128], strides = [1, 1]} : vector<8x384xf32> to vector<8x128xf32>
    %275 = arith.addf %274, %5 : vector<8x128xf32>
    %276 = arith.mulf %264, %275 : vector<8x128xf32>
    %277 = arith.addf %273, %276 : vector<8x128xf32>
    %278 = math.tanh %277 : vector<8x128xf32>
    %cst_68 = arith.constant 1.000000e+00 : f32
    %279 = vector.broadcast %cst_68 : f32 to vector<8x128xf32>
    %280 = arith.subf %279, %272 : vector<8x128xf32>
    %281 = arith.mulf %280, %278 : vector<8x128xf32>
    %282 = arith.mulf %272, %248 : vector<8x128xf32>
    %283 = arith.addf %281, %282 : vector<8x128xf32>
    %284 = arith.index_cast %c7_i32 : i32 to index
    %c0_69 = arith.constant 0 : index
    %c0_70 = arith.constant 0 : index
    %285 = vector.load %arg7[%284, %c0_69, %c0_70] : memref<8x8x128xf32, #tpu.memory_space<vmem>>, vector<1x8x128xf32>
    %286 = vector.shape_cast %285 : vector<1x8x128xf32> to vector<8x128xf32>
    %287 = vector.shape_cast %283 : vector<8x128xf32> to vector<1x8x128xf32>
    tpu.vector_store %arg7[%284, %c0_69, %c0_70], %287 {strides = array<i32>} : memref<8x8x128xf32, #tpu.memory_space<vmem>>, vector<1x8x128xf32>,
    %c8_i32 = arith.constant 8 : i32
    %c0_71 = arith.constant 0 : index
    %c0_72 = arith.constant 0 : index
    %c0_73 = arith.constant 0 : index
    %288 = vector.load %arg8[%c0_71, %c0_72, %c0_73] : memref<2x8x128xf32, #tpu.memory_space<vmem>>, vector<1x8x128xf32>
    %289 = vector.shape_cast %288 : vector<1x8x128xf32> to vector<8x128xf32>
    %290 = vector.shape_cast %283 : vector<8x128xf32> to vector<1x8x128xf32>
    tpu.vector_store %arg8[%c0_71, %c0_72, %c0_73], %290 {strides = array<i32>} : memref<2x8x128xf32, #tpu.memory_space<vmem>>, vector<1x8x128xf32>,
    %c0_74 = arith.constant 0 : index
    %c0_75 = arith.constant 0 : index
    %c0_76 = arith.constant 0 : index
    %291 = vector.load %arg5[%c0_74, %c0_75, %c0_76] : memref<1x128x384xf32, #tpu.memory_space<vmem>>, vector<1x128x384xf32>
    %292 = vector.shape_cast %291 : vector<1x128x384xf32> to vector<128x384xf32>
    %c0_77 = arith.constant 0 : index
    %c0_78 = arith.constant 0 : index
    %c0_79 = arith.constant 0 : index
    %293 = vector.load %arg7[%c0_77, %c0_78, %c0_79] : memref<8x8x128xf32, #tpu.memory_space<vmem>>, vector<8x8x128xf32>
    %294 = vector.shape_cast %293 : vector<8x8x128xf32> to vector<64x128xf32>
    %cst_80 = arith.constant dense<0.000000e+00> : vector<64x384xf32>
    %295 = tpu.matmul %294, %292, %cst_80 {dimension_numbers = #tpu.dot_dimension_numbers<[1], [0], [0], [1], [0, 0, 1, 1], [], []>} : vector<64x128xf32>, vector<128x384xf32>, vector<64x384xf32> -> vector<64x384xf32>
    %c0_81 = arith.constant 0 : index
    %c0_82 = arith.constant 0 : index
    %c0_83 = arith.constant 0 : index
    %296 = vector.load %arg6[%c0_81, %c0_82, %c0_83] : memref<1x1x384xf32, #tpu.memory_space<vmem>>, vector<1x1x384xf32>
    %297 = vector.shape_cast %296 : vector<1x1x384xf32> to vector<1x384xf32>
    %298 = vector.broadcast %297 : vector<1x384xf32> to vector<64x384xf32>
    %299 = arith.addf %295, %298 : vector<64x384xf32>
    %300 = vector.shape_cast %299 : vector<64x384xf32> to vector<8x8x384xf32>
    %c0_84 = arith.constant 0 : index
    %c0_85 = arith.constant 0 : index
    %c0_86 = arith.constant 0 : index
    %301 = vector.load %arg9[%c0_84, %c0_85, %c0_86] : memref<8x8x384xf32, #tpu.memory_space<vmem>>, vector<8x8x384xf32>
    tpu.vector_store %arg9[%c0_84, %c0_85, %c0_86], %300 {strides = array<i32>} : memref<8x8x384xf32, #tpu.memory_space<vmem>>, vector<8x8x384xf32>,
    %c1 = arith.constant 1 : index
    %c0_87 = arith.constant 0 : index
    %c0_88 = arith.constant 0 : index
    %302 = vector.load %arg3[%c1, %c0_87, %c0_88] : memref<2x128x384xf32, #tpu.memory_space<vmem>>, vector<1x128x384xf32>
    %303 = vector.shape_cast %302 : vector<1x128x384xf32> to vector<128x384xf32>
    %c1_89 = arith.constant 1 : index
    %c0_90 = arith.constant 0 : index
    %c0_91 = arith.constant 0 : index
    %304 = vector.load %arg4[%c1_89, %c0_90, %c0_91] : memref<2x1x128xf32, #tpu.memory_space<vmem>>, vector<1x1x128xf32>
    %305 = vector.shape_cast %304 : vector<1x1x128xf32> to vector<1x128xf32>
    %306 = vector.shape_cast %305 : vector<1x128xf32> to vector<1x128xf32>
    %307 = vector.broadcast %306 : vector<1x128xf32> to vector<8x128xf32>
    %c1_92 = arith.constant 1 : index
    %c0_93 = arith.constant 0 : index
    %c0_94 = arith.constant 0 : index
    %308 = vector.load %arg2[%c1_92, %c0_93, %c0_94] : memref<2x8x128xf32, #tpu.memory_space<vmem>>, vector<1x8x128xf32>
    %309 = vector.shape_cast %308 : vector<1x8x128xf32> to vector<8x128xf32>
    %c0_i32_95 = arith.constant 0 : i32
    %310 = arith.index_cast %c0_i32_95 : i32 to index
    %c0_96 = arith.constant 0 : index
    %c0_97 = arith.constant 0 : index
    %311 = vector.load %arg9[%310, %c0_96, %c0_97] : memref<8x8x384xf32, #tpu.memory_space<vmem>>, vector<1x8x384xf32>
    %312 = vector.shape_cast %311 : vector<1x8x384xf32> to vector<8x384xf32>
    %cst_98 = arith.constant dense<0.000000e+00> : vector<8x384xf32>
    %313 = tpu.matmul %309, %303, %cst_98 {dimension_numbers = #tpu.dot_dimension_numbers<[1], [0], [0], [1], [0, 0, 1, 1], [], []>} : vector<8x128xf32>, vector<128x384xf32>, vector<8x384xf32> -> vector<8x384xf32>
    %314 = vector.extract_strided_slice %312 {offsets = [0, 0], sizes = [8, 128], strides = [1, 1]} : vector<8x384xf32> to vector<8x128xf32>
    %315 = vector.extract_strided_slice %313 {offsets = [0, 0], sizes = [8, 128], strides = [1, 1]} : vector<8x384xf32> to vector<8x128xf32>
    %316 = arith.addf %314, %315 : vector<8x128xf32>
    %317 = arith.negf %316 : vector<8x128xf32>
    %318 = math.exp %317 : vector<8x128xf32>
    %cst_99 = arith.constant 1.000000e+00 : f32
    %319 = vector.broadcast %cst_99 : f32 to vector<8x128xf32>
    %320 = arith.addf %319, %318 : vector<8x128xf32>
    %321 = arith.divf %319, %320 : vector<8x128xf32>
    %322 = vector.extract_strided_slice %312 {offsets = [0, 128], sizes = [8, 128], strides = [1, 1]} : vector<8x384xf32> to vector<8x128xf32>
    %323 = vector.extract_strided_slice %313 {offsets = [0, 128], sizes = [8, 128], strides = [1, 1]} : vector<8x384xf32> to vector<8x128xf32>
    %324 = arith.addf %322, %323 : vector<8x128xf32>
    %325 = arith.negf %324 : vector<8x128xf32>
    %326 = math.exp %325 : vector<8x128xf32>
    %cst_100 = arith.constant 1.000000e+00 : f32
    %327 = vector.broadcast %cst_100 : f32 to vector<8x128xf32>
    %328 = arith.addf %327, %326 : vector<8x128xf32>
    %329 = arith.divf %327, %328 : vector<8x128xf32>
    %330 = vector.extract_strided_slice %312 {offsets = [0, 256], sizes = [8, 128], strides = [1, 1]} : vector<8x384xf32> to vector<8x128xf32>
    %331 = vector.extract_strided_slice %313 {offsets = [0, 256], sizes = [8, 128], strides = [1, 1]} : vector<8x384xf32> to vector<8x128xf32>
    %332 = arith.addf %331, %307 : vector<8x128xf32>
    %333 = arith.mulf %321, %332 : vector<8x128xf32>
    %334 = arith.addf %330, %333 : vector<8x128xf32>
    %335 = math.tanh %334 : vector<8x128xf32>
    %cst_101 = arith.constant 1.000000e+00 : f32
    %336 = vector.broadcast %cst_101 : f32 to vector<8x128xf32>
    %337 = arith.subf %336, %329 : vector<8x128xf32>
    %338 = arith.mulf %337, %335 : vector<8x128xf32>
    %339 = arith.mulf %329, %309 : vector<8x128xf32>
    %340 = arith.addf %338, %339 : vector<8x128xf32>
    %341 = arith.index_cast %c0_i32_95 : i32 to index
    %c0_102 = arith.constant 0 : index
    %c0_103 = arith.constant 0 : index
    %342 = vector.load %arg7[%341, %c0_102, %c0_103] : memref<8x8x128xf32, #tpu.memory_space<vmem>>, vector<1x8x128xf32>
    %343 = vector.shape_cast %342 : vector<1x8x128xf32> to vector<8x128xf32>
    %344 = vector.shape_cast %340 : vector<8x128xf32> to vector<1x8x128xf32>
    tpu.vector_store %arg7[%341, %c0_102, %c0_103], %344 {strides = array<i32>} : memref<8x8x128xf32, #tpu.memory_space<vmem>>, vector<1x8x128xf32>,
    %c1_i32_104 = arith.constant 1 : i32
    %345 = arith.index_cast %c1_i32_104 : i32 to index
    %c0_105 = arith.constant 0 : index
    %c0_106 = arith.constant 0 : index
    %346 = vector.load %arg9[%345, %c0_105, %c0_106] : memref<8x8x384xf32, #tpu.memory_space<vmem>>, vector<1x8x384xf32>
    %347 = vector.shape_cast %346 : vector<1x8x384xf32> to vector<8x384xf32>
    %cst_107 = arith.constant dense<0.000000e+00> : vector<8x384xf32>
    %348 = tpu.matmul %340, %303, %cst_107 {dimension_numbers = #tpu.dot_dimension_numbers<[1], [0], [0], [1], [0, 0, 1, 1], [], []>} : vector<8x128xf32>, vector<128x384xf32>, vector<8x384xf32> -> vector<8x384xf32>
    %349 = vector.extract_strided_slice %347 {offsets = [0, 0], sizes = [8, 128], strides = [1, 1]} : vector<8x384xf32> to vector<8x128xf32>
    %350 = vector.extract_strided_slice %348 {offsets = [0, 0], sizes = [8, 128], strides = [1, 1]} : vector<8x384xf32> to vector<8x128xf32>
    %351 = arith.addf %349, %350 : vector<8x128xf32>
    %352 = arith.negf %351 : vector<8x128xf32>
    %353 = math.exp %352 : vector<8x128xf32>
    %cst_108 = arith.constant 1.000000e+00 : f32
    %354 = vector.broadcast %cst_108 : f32 to vector<8x128xf32>
    %355 = arith.addf %354, %353 : vector<8x128xf32>
    %356 = arith.divf %354, %355 : vector<8x128xf32>
    %357 = vector.extract_strided_slice %347 {offsets = [0, 128], sizes = [8, 128], strides = [1, 1]} : vector<8x384xf32> to vector<8x128xf32>
    %358 = vector.extract_strided_slice %348 {offsets = [0, 128], sizes = [8, 128], strides = [1, 1]} : vector<8x384xf32> to vector<8x128xf32>
    %359 = arith.addf %357, %358 : vector<8x128xf32>
    %360 = arith.negf %359 : vector<8x128xf32>
    %361 = math.exp %360 : vector<8x128xf32>
    %cst_109 = arith.constant 1.000000e+00 : f32
    %362 = vector.broadcast %cst_109 : f32 to vector<8x128xf32>
    %363 = arith.addf %362, %361 : vector<8x128xf32>
    %364 = arith.divf %362, %363 : vector<8x128xf32>
    %365 = vector.extract_strided_slice %347 {offsets = [0, 256], sizes = [8, 128], strides = [1, 1]} : vector<8x384xf32> to vector<8x128xf32>
    %366 = vector.extract_strided_slice %348 {offsets = [0, 256], sizes = [8, 128], strides = [1, 1]} : vector<8x384xf32> to vector<8x128xf32>
    %367 = arith.addf %366, %307 : vector<8x128xf32>
    %368 = arith.mulf %356, %367 : vector<8x128xf32>
    %369 = arith.addf %365, %368 : vector<8x128xf32>
    %370 = math.tanh %369 : vector<8x128xf32>
    %cst_110 = arith.constant 1.000000e+00 : f32
    %371 = vector.broadcast %cst_110 : f32 to vector<8x128xf32>
    %372 = arith.subf %371, %364 : vector<8x128xf32>
    %373 = arith.mulf %372, %370 : vector<8x128xf32>
    %374 = arith.mulf %364, %340 : vector<8x128xf32>
    %375 = arith.addf %373, %374 : vector<8x128xf32>
    %376 = arith.index_cast %c1_i32_104 : i32 to index
    %c0_111 = arith.constant 0 : index
    %c0_112 = arith.constant 0 : index
    %377 = vector.load %arg7[%376, %c0_111, %c0_112] : memref<8x8x128xf32, #tpu.memory_space<vmem>>, vector<1x8x128xf32>
    %378 = vector.shape_cast %377 : vector<1x8x128xf32> to vector<8x128xf32>
    %379 = vector.shape_cast %375 : vector<8x128xf32> to vector<1x8x128xf32>
    tpu.vector_store %arg7[%376, %c0_111, %c0_112], %379 {strides = array<i32>} : memref<8x8x128xf32, #tpu.memory_space<vmem>>, vector<1x8x128xf32>,
    %c2_i32_113 = arith.constant 2 : i32
    %380 = arith.index_cast %c2_i32_113 : i32 to index
    %c0_114 = arith.constant 0 : index
    %c0_115 = arith.constant 0 : index
    %381 = vector.load %arg9[%380, %c0_114, %c0_115] : memref<8x8x384xf32, #tpu.memory_space<vmem>>, vector<1x8x384xf32>
    %382 = vector.shape_cast %381 : vector<1x8x384xf32> to vector<8x384xf32>
    %cst_116 = arith.constant dense<0.000000e+00> : vector<8x384xf32>
    %383 = tpu.matmul %375, %303, %cst_116 {dimension_numbers = #tpu.dot_dimension_numbers<[1], [0], [0], [1], [0, 0, 1, 1], [], []>} : vector<8x128xf32>, vector<128x384xf32>, vector<8x384xf32> -> vector<8x384xf32>
    %384 = vector.extract_strided_slice %382 {offsets = [0, 0], sizes = [8, 128], strides = [1, 1]} : vector<8x384xf32> to vector<8x128xf32>
    %385 = vector.extract_strided_slice %383 {offsets = [0, 0], sizes = [8, 128], strides = [1, 1]} : vector<8x384xf32> to vector<8x128xf32>
    %386 = arith.addf %384, %385 : vector<8x128xf32>
    %387 = arith.negf %386 : vector<8x128xf32>
    %388 = math.exp %387 : vector<8x128xf32>
    %cst_117 = arith.constant 1.000000e+00 : f32
    %389 = vector.broadcast %cst_117 : f32 to vector<8x128xf32>
    %390 = arith.addf %389, %388 : vector<8x128xf32>
    %391 = arith.divf %389, %390 : vector<8x128xf32>
    %392 = vector.extract_strided_slice %382 {offsets = [0, 128], sizes = [8, 128], strides = [1, 1]} : vector<8x384xf32> to vector<8x128xf32>
    %393 = vector.extract_strided_slice %383 {offsets = [0, 128], sizes = [8, 128], strides = [1, 1]} : vector<8x384xf32> to vector<8x128xf32>
    %394 = arith.addf %392, %393 : vector<8x128xf32>
    %395 = arith.negf %394 : vector<8x128xf32>
    %396 = math.exp %395 : vector<8x128xf32>
    %cst_118 = arith.constant 1.000000e+00 : f32
    %397 = vector.broadcast %cst_118 : f32 to vector<8x128xf32>
    %398 = arith.addf %397, %396 : vector<8x128xf32>
    %399 = arith.divf %397, %398 : vector<8x128xf32>
    %400 = vector.extract_strided_slice %382 {offsets = [0, 256], sizes = [8, 128], strides = [1, 1]} : vector<8x384xf32> to vector<8x128xf32>
    %401 = vector.extract_strided_slice %383 {offsets = [0, 256], sizes = [8, 128], strides = [1, 1]} : vector<8x384xf32> to vector<8x128xf32>
    %402 = arith.addf %401, %307 : vector<8x128xf32>
    %403 = arith.mulf %391, %402 : vector<8x128xf32>
    %404 = arith.addf %400, %403 : vector<8x128xf32>
    %405 = math.tanh %404 : vector<8x128xf32>
    %cst_119 = arith.constant 1.000000e+00 : f32
    %406 = vector.broadcast %cst_119 : f32 to vector<8x128xf32>
    %407 = arith.subf %406, %399 : vector<8x128xf32>
    %408 = arith.mulf %407, %405 : vector<8x128xf32>
    %409 = arith.mulf %399, %375 : vector<8x128xf32>
    %410 = arith.addf %408, %409 : vector<8x128xf32>
    %411 = arith.index_cast %c2_i32_113 : i32 to index
    %c0_120 = arith.constant 0 : index
    %c0_121 = arith.constant 0 : index
    %412 = vector.load %arg7[%411, %c0_120, %c0_121] : memref<8x8x128xf32, #tpu.memory_space<vmem>>, vector<1x8x128xf32>
    %413 = vector.shape_cast %412 : vector<1x8x128xf32> to vector<8x128xf32>
    %414 = vector.shape_cast %410 : vector<8x128xf32> to vector<1x8x128xf32>
    tpu.vector_store %arg7[%411, %c0_120, %c0_121], %414 {strides = array<i32>} : memref<8x8x128xf32, #tpu.memory_space<vmem>>, vector<1x8x128xf32>,
    %c3_i32_122 = arith.constant 3 : i32
    %415 = arith.index_cast %c3_i32_122 : i32 to index
    %c0_123 = arith.constant 0 : index
    %c0_124 = arith.constant 0 : index
    %416 = vector.load %arg9[%415, %c0_123, %c0_124] : memref<8x8x384xf32, #tpu.memory_space<vmem>>, vector<1x8x384xf32>
    %417 = vector.shape_cast %416 : vector<1x8x384xf32> to vector<8x384xf32>
    %cst_125 = arith.constant dense<0.000000e+00> : vector<8x384xf32>
    %418 = tpu.matmul %410, %303, %cst_125 {dimension_numbers = #tpu.dot_dimension_numbers<[1], [0], [0], [1], [0, 0, 1, 1], [], []>} : vector<8x128xf32>, vector<128x384xf32>, vector<8x384xf32> -> vector<8x384xf32>
    %419 = vector.extract_strided_slice %417 {offsets = [0, 0], sizes = [8, 128], strides = [1, 1]} : vector<8x384xf32> to vector<8x128xf32>
    %420 = vector.extract_strided_slice %418 {offsets = [0, 0], sizes = [8, 128], strides = [1, 1]} : vector<8x384xf32> to vector<8x128xf32>
    %421 = arith.addf %419, %420 : vector<8x128xf32>
    %422 = arith.negf %421 : vector<8x128xf32>
    %423 = math.exp %422 : vector<8x128xf32>
    %cst_126 = arith.constant 1.000000e+00 : f32
    %424 = vector.broadcast %cst_126 : f32 to vector<8x128xf32>
    %425 = arith.addf %424, %423 : vector<8x128xf32>
    %426 = arith.divf %424, %425 : vector<8x128xf32>
    %427 = vector.extract_strided_slice %417 {offsets = [0, 128], sizes = [8, 128], strides = [1, 1]} : vector<8x384xf32> to vector<8x128xf32>
    %428 = vector.extract_strided_slice %418 {offsets = [0, 128], sizes = [8, 128], strides = [1, 1]} : vector<8x384xf32> to vector<8x128xf32>
    %429 = arith.addf %427, %428 : vector<8x128xf32>
    %430 = arith.negf %429 : vector<8x128xf32>
    %431 = math.exp %430 : vector<8x128xf32>
    %cst_127 = arith.constant 1.000000e+00 : f32
    %432 = vector.broadcast %cst_127 : f32 to vector<8x128xf32>
    %433 = arith.addf %432, %431 : vector<8x128xf32>
    %434 = arith.divf %432, %433 : vector<8x128xf32>
    %435 = vector.extract_strided_slice %417 {offsets = [0, 256], sizes = [8, 128], strides = [1, 1]} : vector<8x384xf32> to vector<8x128xf32>
    %436 = vector.extract_strided_slice %418 {offsets = [0, 256], sizes = [8, 128], strides = [1, 1]} : vector<8x384xf32> to vector<8x128xf32>
    %437 = arith.addf %436, %307 : vector<8x128xf32>
    %438 = arith.mulf %426, %437 : vector<8x128xf32>
    %439 = arith.addf %435, %438 : vector<8x128xf32>
    %440 = math.tanh %439 : vector<8x128xf32>
    %cst_128 = arith.constant 1.000000e+00 : f32
    %441 = vector.broadcast %cst_128 : f32 to vector<8x128xf32>
    %442 = arith.subf %441, %434 : vector<8x128xf32>
    %443 = arith.mulf %442, %440 : vector<8x128xf32>
    %444 = arith.mulf %434, %410 : vector<8x128xf32>
    %445 = arith.addf %443, %444 : vector<8x128xf32>
    %446 = arith.index_cast %c3_i32_122 : i32 to index
    %c0_129 = arith.constant 0 : index
    %c0_130 = arith.constant 0 : index
    %447 = vector.load %arg7[%446, %c0_129, %c0_130] : memref<8x8x128xf32, #tpu.memory_space<vmem>>, vector<1x8x128xf32>
    %448 = vector.shape_cast %447 : vector<1x8x128xf32> to vector<8x128xf32>
    %449 = vector.shape_cast %445 : vector<8x128xf32> to vector<1x8x128xf32>
    tpu.vector_store %arg7[%446, %c0_129, %c0_130], %449 {strides = array<i32>} : memref<8x8x128xf32, #tpu.memory_space<vmem>>, vector<1x8x128xf32>,
    %c4_i32_131 = arith.constant 4 : i32
    %450 = arith.index_cast %c4_i32_131 : i32 to index
    %c0_132 = arith.constant 0 : index
    %c0_133 = arith.constant 0 : index
    %451 = vector.load %arg9[%450, %c0_132, %c0_133] : memref<8x8x384xf32, #tpu.memory_space<vmem>>, vector<1x8x384xf32>
    %452 = vector.shape_cast %451 : vector<1x8x384xf32> to vector<8x384xf32>
    %cst_134 = arith.constant dense<0.000000e+00> : vector<8x384xf32>
    %453 = tpu.matmul %445, %303, %cst_134 {dimension_numbers = #tpu.dot_dimension_numbers<[1], [0], [0], [1], [0, 0, 1, 1], [], []>} : vector<8x128xf32>, vector<128x384xf32>, vector<8x384xf32> -> vector<8x384xf32>
    %454 = vector.extract_strided_slice %452 {offsets = [0, 0], sizes = [8, 128], strides = [1, 1]} : vector<8x384xf32> to vector<8x128xf32>
    %455 = vector.extract_strided_slice %453 {offsets = [0, 0], sizes = [8, 128], strides = [1, 1]} : vector<8x384xf32> to vector<8x128xf32>
    %456 = arith.addf %454, %455 : vector<8x128xf32>
    %457 = arith.negf %456 : vector<8x128xf32>
    %458 = math.exp %457 : vector<8x128xf32>
    %cst_135 = arith.constant 1.000000e+00 : f32
    %459 = vector.broadcast %cst_135 : f32 to vector<8x128xf32>
    %460 = arith.addf %459, %458 : vector<8x128xf32>
    %461 = arith.divf %459, %460 : vector<8x128xf32>
    %462 = vector.extract_strided_slice %452 {offsets = [0, 128], sizes = [8, 128], strides = [1, 1]} : vector<8x384xf32> to vector<8x128xf32>
    %463 = vector.extract_strided_slice %453 {offsets = [0, 128], sizes = [8, 128], strides = [1, 1]} : vector<8x384xf32> to vector<8x128xf32>
    %464 = arith.addf %462, %463 : vector<8x128xf32>
    %465 = arith.negf %464 : vector<8x128xf32>
    %466 = math.exp %465 : vector<8x128xf32>
    %cst_136 = arith.constant 1.000000e+00 : f32
    %467 = vector.broadcast %cst_136 : f32 to vector<8x128xf32>
    %468 = arith.addf %467, %466 : vector<8x128xf32>
    %469 = arith.divf %467, %468 : vector<8x128xf32>
    %470 = vector.extract_strided_slice %452 {offsets = [0, 256], sizes = [8, 128], strides = [1, 1]} : vector<8x384xf32> to vector<8x128xf32>
    %471 = vector.extract_strided_slice %453 {offsets = [0, 256], sizes = [8, 128], strides = [1, 1]} : vector<8x384xf32> to vector<8x128xf32>
    %472 = arith.addf %471, %307 : vector<8x128xf32>
    %473 = arith.mulf %461, %472 : vector<8x128xf32>
    %474 = arith.addf %470, %473 : vector<8x128xf32>
    %475 = math.tanh %474 : vector<8x128xf32>
    %cst_137 = arith.constant 1.000000e+00 : f32
    %476 = vector.broadcast %cst_137 : f32 to vector<8x128xf32>
    %477 = arith.subf %476, %469 : vector<8x128xf32>
    %478 = arith.mulf %477, %475 : vector<8x128xf32>
    %479 = arith.mulf %469, %445 : vector<8x128xf32>
    %480 = arith.addf %478, %479 : vector<8x128xf32>
    %481 = arith.index_cast %c4_i32_131 : i32 to index
    %c0_138 = arith.constant 0 : index
    %c0_139 = arith.constant 0 : index
    %482 = vector.load %arg7[%481, %c0_138, %c0_139] : memref<8x8x128xf32, #tpu.memory_space<vmem>>, vector<1x8x128xf32>
    %483 = vector.shape_cast %482 : vector<1x8x128xf32> to vector<8x128xf32>
    %484 = vector.shape_cast %480 : vector<8x128xf32> to vector<1x8x128xf32>
    tpu.vector_store %arg7[%481, %c0_138, %c0_139], %484 {strides = array<i32>} : memref<8x8x128xf32, #tpu.memory_space<vmem>>, vector<1x8x128xf32>,
    %c5_i32_140 = arith.constant 5 : i32
    %485 = arith.index_cast %c5_i32_140 : i32 to index
    %c0_141 = arith.constant 0 : index
    %c0_142 = arith.constant 0 : index
    %486 = vector.load %arg9[%485, %c0_141, %c0_142] : memref<8x8x384xf32, #tpu.memory_space<vmem>>, vector<1x8x384xf32>
    %487 = vector.shape_cast %486 : vector<1x8x384xf32> to vector<8x384xf32>
    %cst_143 = arith.constant dense<0.000000e+00> : vector<8x384xf32>
    %488 = tpu.matmul %480, %303, %cst_143 {dimension_numbers = #tpu.dot_dimension_numbers<[1], [0], [0], [1], [0, 0, 1, 1], [], []>} : vector<8x128xf32>, vector<128x384xf32>, vector<8x384xf32> -> vector<8x384xf32>
    %489 = vector.extract_strided_slice %487 {offsets = [0, 0], sizes = [8, 128], strides = [1, 1]} : vector<8x384xf32> to vector<8x128xf32>
    %490 = vector.extract_strided_slice %488 {offsets = [0, 0], sizes = [8, 128], strides = [1, 1]} : vector<8x384xf32> to vector<8x128xf32>
    %491 = arith.addf %489, %490 : vector<8x128xf32>
    %492 = arith.negf %491 : vector<8x128xf32>
    %493 = math.exp %492 : vector<8x128xf32>
    %cst_144 = arith.constant 1.000000e+00 : f32
    %494 = vector.broadcast %cst_144 : f32 to vector<8x128xf32>
    %495 = arith.addf %494, %493 : vector<8x128xf32>
    %496 = arith.divf %494, %495 : vector<8x128xf32>
    %497 = vector.extract_strided_slice %487 {offsets = [0, 128], sizes = [8, 128], strides = [1, 1]} : vector<8x384xf32> to vector<8x128xf32>
    %498 = vector.extract_strided_slice %488 {offsets = [0, 128], sizes = [8, 128], strides = [1, 1]} : vector<8x384xf32> to vector<8x128xf32>
    %499 = arith.addf %497, %498 : vector<8x128xf32>
    %500 = arith.negf %499 : vector<8x128xf32>
    %501 = math.exp %500 : vector<8x128xf32>
    %cst_145 = arith.constant 1.000000e+00 : f32
    %502 = vector.broadcast %cst_145 : f32 to vector<8x128xf32>
    %503 = arith.addf %502, %501 : vector<8x128xf32>
    %504 = arith.divf %502, %503 : vector<8x128xf32>
    %505 = vector.extract_strided_slice %487 {offsets = [0, 256], sizes = [8, 128], strides = [1, 1]} : vector<8x384xf32> to vector<8x128xf32>
    %506 = vector.extract_strided_slice %488 {offsets = [0, 256], sizes = [8, 128], strides = [1, 1]} : vector<8x384xf32> to vector<8x128xf32>
    %507 = arith.addf %506, %307 : vector<8x128xf32>
    %508 = arith.mulf %496, %507 : vector<8x128xf32>
    %509 = arith.addf %505, %508 : vector<8x128xf32>
    %510 = math.tanh %509 : vector<8x128xf32>
    %cst_146 = arith.constant 1.000000e+00 : f32
    %511 = vector.broadcast %cst_146 : f32 to vector<8x128xf32>
    %512 = arith.subf %511, %504 : vector<8x128xf32>
    %513 = arith.mulf %512, %510 : vector<8x128xf32>
    %514 = arith.mulf %504, %480 : vector<8x128xf32>
    %515 = arith.addf %513, %514 : vector<8x128xf32>
    %516 = arith.index_cast %c5_i32_140 : i32 to index
    %c0_147 = arith.constant 0 : index
    %c0_148 = arith.constant 0 : index
    %517 = vector.load %arg7[%516, %c0_147, %c0_148] : memref<8x8x128xf32, #tpu.memory_space<vmem>>, vector<1x8x128xf32>
    %518 = vector.shape_cast %517 : vector<1x8x128xf32> to vector<8x128xf32>
    %519 = vector.shape_cast %515 : vector<8x128xf32> to vector<1x8x128xf32>
    tpu.vector_store %arg7[%516, %c0_147, %c0_148], %519 {strides = array<i32>} : memref<8x8x128xf32, #tpu.memory_space<vmem>>, vector<1x8x128xf32>,
    %c6_i32_149 = arith.constant 6 : i32
    %520 = arith.index_cast %c6_i32_149 : i32 to index
    %c0_150 = arith.constant 0 : index
    %c0_151 = arith.constant 0 : index
    %521 = vector.load %arg9[%520, %c0_150, %c0_151] : memref<8x8x384xf32, #tpu.memory_space<vmem>>, vector<1x8x384xf32>
    %522 = vector.shape_cast %521 : vector<1x8x384xf32> to vector<8x384xf32>
    %cst_152 = arith.constant dense<0.000000e+00> : vector<8x384xf32>
    %523 = tpu.matmul %515, %303, %cst_152 {dimension_numbers = #tpu.dot_dimension_numbers<[1], [0], [0], [1], [0, 0, 1, 1], [], []>} : vector<8x128xf32>, vector<128x384xf32>, vector<8x384xf32> -> vector<8x384xf32>
    %524 = vector.extract_strided_slice %522 {offsets = [0, 0], sizes = [8, 128], strides = [1, 1]} : vector<8x384xf32> to vector<8x128xf32>
    %525 = vector.extract_strided_slice %523 {offsets = [0, 0], sizes = [8, 128], strides = [1, 1]} : vector<8x384xf32> to vector<8x128xf32>
    %526 = arith.addf %524, %525 : vector<8x128xf32>
    %527 = arith.negf %526 : vector<8x128xf32>
    %528 = math.exp %527 : vector<8x128xf32>
    %cst_153 = arith.constant 1.000000e+00 : f32
    %529 = vector.broadcast %cst_153 : f32 to vector<8x128xf32>
    %530 = arith.addf %529, %528 : vector<8x128xf32>
    %531 = arith.divf %529, %530 : vector<8x128xf32>
    %532 = vector.extract_strided_slice %522 {offsets = [0, 128], sizes = [8, 128], strides = [1, 1]} : vector<8x384xf32> to vector<8x128xf32>
    %533 = vector.extract_strided_slice %523 {offsets = [0, 128], sizes = [8, 128], strides = [1, 1]} : vector<8x384xf32> to vector<8x128xf32>
    %534 = arith.addf %532, %533 : vector<8x128xf32>
    %535 = arith.negf %534 : vector<8x128xf32>
    %536 = math.exp %535 : vector<8x128xf32>
    %cst_154 = arith.constant 1.000000e+00 : f32
    %537 = vector.broadcast %cst_154 : f32 to vector<8x128xf32>
    %538 = arith.addf %537, %536 : vector<8x128xf32>
    %539 = arith.divf %537, %538 : vector<8x128xf32>
    %540 = vector.extract_strided_slice %522 {offsets = [0, 256], sizes = [8, 128], strides = [1, 1]} : vector<8x384xf32> to vector<8x128xf32>
    %541 = vector.extract_strided_slice %523 {offsets = [0, 256], sizes = [8, 128], strides = [1, 1]} : vector<8x384xf32> to vector<8x128xf32>
    %542 = arith.addf %541, %307 : vector<8x128xf32>
    %543 = arith.mulf %531, %542 : vector<8x128xf32>
    %544 = arith.addf %540, %543 : vector<8x128xf32>
    %545 = math.tanh %544 : vector<8x128xf32>
    %cst_155 = arith.constant 1.000000e+00 : f32
    %546 = vector.broadcast %cst_155 : f32 to vector<8x128xf32>
    %547 = arith.subf %546, %539 : vector<8x128xf32>
    %548 = arith.mulf %547, %545 : vector<8x128xf32>
    %549 = arith.mulf %539, %515 : vector<8x128xf32>
    %550 = arith.addf %548, %549 : vector<8x128xf32>
    %551 = arith.index_cast %c6_i32_149 : i32 to index
    %c0_156 = arith.constant 0 : index
    %c0_157 = arith.constant 0 : index
    %552 = vector.load %arg7[%551, %c0_156, %c0_157] : memref<8x8x128xf32, #tpu.memory_space<vmem>>, vector<1x8x128xf32>
    %553 = vector.shape_cast %552 : vector<1x8x128xf32> to vector<8x128xf32>
    %554 = vector.shape_cast %550 : vector<8x128xf32> to vector<1x8x128xf32>
    tpu.vector_store %arg7[%551, %c0_156, %c0_157], %554 {strides = array<i32>} : memref<8x8x128xf32, #tpu.memory_space<vmem>>, vector<1x8x128xf32>,
    %c7_i32_158 = arith.constant 7 : i32
    %555 = arith.index_cast %c7_i32_158 : i32 to index
    %c0_159 = arith.constant 0 : index
    %c0_160 = arith.constant 0 : index
    %556 = vector.load %arg9[%555, %c0_159, %c0_160] : memref<8x8x384xf32, #tpu.memory_space<vmem>>, vector<1x8x384xf32>
    %557 = vector.shape_cast %556 : vector<1x8x384xf32> to vector<8x384xf32>
    %cst_161 = arith.constant dense<0.000000e+00> : vector<8x384xf32>
    %558 = tpu.matmul %550, %303, %cst_161 {dimension_numbers = #tpu.dot_dimension_numbers<[1], [0], [0], [1], [0, 0, 1, 1], [], []>} : vector<8x128xf32>, vector<128x384xf32>, vector<8x384xf32> -> vector<8x384xf32>
    %559 = vector.extract_strided_slice %557 {offsets = [0, 0], sizes = [8, 128], strides = [1, 1]} : vector<8x384xf32> to vector<8x128xf32>
    %560 = vector.extract_strided_slice %558 {offsets = [0, 0], sizes = [8, 128], strides = [1, 1]} : vector<8x384xf32> to vector<8x128xf32>
    %561 = arith.addf %559, %560 : vector<8x128xf32>
    %562 = arith.negf %561 : vector<8x128xf32>
    %563 = math.exp %562 : vector<8x128xf32>
    %cst_162 = arith.constant 1.000000e+00 : f32
    %564 = vector.broadcast %cst_162 : f32 to vector<8x128xf32>
    %565 = arith.addf %564, %563 : vector<8x128xf32>
    %566 = arith.divf %564, %565 : vector<8x128xf32>
    %567 = vector.extract_strided_slice %557 {offsets = [0, 128], sizes = [8, 128], strides = [1, 1]} : vector<8x384xf32> to vector<8x128xf32>
    %568 = vector.extract_strided_slice %558 {offsets = [0, 128], sizes = [8, 128], strides = [1, 1]} : vector<8x384xf32> to vector<8x128xf32>
    %569 = arith.addf %567, %568 : vector<8x128xf32>
    %570 = arith.negf %569 : vector<8x128xf32>
    %571 = math.exp %570 : vector<8x128xf32>
    %cst_163 = arith.constant 1.000000e+00 : f32
    %572 = vector.broadcast %cst_163 : f32 to vector<8x128xf32>
    %573 = arith.addf %572, %571 : vector<8x128xf32>
    %574 = arith.divf %572, %573 : vector<8x128xf32>
    %575 = vector.extract_strided_slice %557 {offsets = [0, 256], sizes = [8, 128], strides = [1, 1]} : vector<8x384xf32> to vector<8x128xf32>
    %576 = vector.extract_strided_slice %558 {offsets = [0, 256], sizes = [8, 128], strides = [1, 1]} : vector<8x384xf32> to vector<8x128xf32>
    %577 = arith.addf %576, %307 : vector<8x128xf32>
    %578 = arith.mulf %566, %577 : vector<8x128xf32>
    %579 = arith.addf %575, %578 : vector<8x128xf32>
    %580 = math.tanh %579 : vector<8x128xf32>
    %cst_164 = arith.constant 1.000000e+00 : f32
    %581 = vector.broadcast %cst_164 : f32 to vector<8x128xf32>
    %582 = arith.subf %581, %574 : vector<8x128xf32>
    %583 = arith.mulf %582, %580 : vector<8x128xf32>
    %584 = arith.mulf %574, %550 : vector<8x128xf32>
    %585 = arith.addf %583, %584 : vector<8x128xf32>
    %586 = arith.index_cast %c7_i32_158 : i32 to index
    %c0_165 = arith.constant 0 : index
    %c0_166 = arith.constant 0 : index
    %587 = vector.load %arg7[%586, %c0_165, %c0_166] : memref<8x8x128xf32, #tpu.memory_space<vmem>>, vector<1x8x128xf32>
    %588 = vector.shape_cast %587 : vector<1x8x128xf32> to vector<8x128xf32>
    %589 = vector.shape_cast %585 : vector<8x128xf32> to vector<1x8x128xf32>
    tpu.vector_store %arg7[%586, %c0_165, %c0_166], %589 {strides = array<i32>} : memref<8x8x128xf32, #tpu.memory_space<vmem>>, vector<1x8x128xf32>,
    %c8_i32_167 = arith.constant 8 : i32
    %c1_168 = arith.constant 1 : index
    %c0_169 = arith.constant 0 : index
    %c0_170 = arith.constant 0 : index
    %590 = vector.load %arg8[%c1_168, %c0_169, %c0_170] : memref<2x8x128xf32, #tpu.memory_space<vmem>>, vector<1x8x128xf32>
    %591 = vector.shape_cast %590 : vector<1x8x128xf32> to vector<8x128xf32>
    %592 = vector.shape_cast %585 : vector<8x128xf32> to vector<1x8x128xf32>
    tpu.vector_store %arg8[%c1_168, %c0_169, %c0_170], %592 {strides = array<i32>} : memref<2x8x128xf32, #tpu.memory_space<vmem>>, vector<1x8x128xf32>,
    return
  }
  func.func @transform_0(%arg0: i32) -> (i32, i32, i32) {
    %c0_i32 = arith.constant 0 : i32
    %c0_i32_0 = arith.constant 0 : i32
    %c0_i32_1 = arith.constant 0 : i32
    return %c0_i32, %arg0, %c0_i32_0 : i32, i32, i32
  }
  func.func @transform_1(%arg0: i32) -> (i32, i32, i32) {
    %c0_i32 = arith.constant 0 : i32
    %c0_i32_0 = arith.constant 0 : i32
    %c0_i32_1 = arith.constant 0 : i32
    return %c0_i32, %arg0, %c0_i32_0 : i32, i32, i32
  }
  func.func @transform_2(%arg0: i32) -> (i32, i32, i32) {
    %c0_i32 = arith.constant 0 : i32
    %c0_i32_0 = arith.constant 0 : i32
    %c0_i32_1 = arith.constant 0 : i32
    %c0_i32_2 = arith.constant 0 : i32
    return %c0_i32, %c0_i32_0, %c0_i32_1 : i32, i32, i32
  }
  func.func @transform_3(%arg0: i32) -> (i32, i32, i32) {
    %c0_i32 = arith.constant 0 : i32
    %c0_i32_0 = arith.constant 0 : i32
    %c0_i32_1 = arith.constant 0 : i32
    %c0_i32_2 = arith.constant 0 : i32
    return %c0_i32, %c0_i32_0, %c0_i32_1 : i32, i32, i32
  }
  func.func @transform_4(%arg0: i32) -> (i32, i32, i32) {
    %c0_i32 = arith.constant 0 : i32
    %c0_i32_0 = arith.constant 0 : i32
    %c0_i32_1 = arith.constant 0 : i32
    %c0_i32_2 = arith.constant 0 : i32
    return %c0_i32, %c0_i32_0, %c0_i32_1 : i32, i32, i32
  }
  func.func @transform_5(%arg0: i32) -> (i32, i32, i32) {
    %c0_i32 = arith.constant 0 : i32
    %c0_i32_0 = arith.constant 0 : i32
    %c0_i32_1 = arith.constant 0 : i32
    %c0_i32_2 = arith.constant 0 : i32
    return %c0_i32, %c0_i32_0, %c0_i32_1 : i32, i32, i32
  }
  func.func @transform_6(%arg0: i32) -> (i32, i32, i32) {
    %c0_i32 = arith.constant 0 : i32
    %c0_i32_0 = arith.constant 0 : i32
    %c0_i32_1 = arith.constant 0 : i32
    return %c0_i32, %arg0, %c0_i32_0 : i32, i32, i32
  }
  func.func @transform_7(%arg0: i32) -> (i32, i32, i32) {
    %c0_i32 = arith.constant 0 : i32
    %c0_i32_0 = arith.constant 0 : i32
    %c0_i32_1 = arith.constant 0 : i32
    return %c0_i32, %arg0, %c0_i32_0 : i32, i32, i32
  }
}

</mosaic_0001>

<llo_original>
// kernel: sequence_encoder_forward.1
$region0: #{sequence_encoder_forward.1}
  #allocation0 [shape = 'u32[]', space=smem, size = 0x4, offset = 0x4, fixed_abs, tag = 'smem constant byte address 0x4 - core index']
  #allocation1 [shape = 'u32[144,128]{1,0:T(1,128)}', space=vmem, size = 0x12000, scoped, tag = 'internal scratch']
  #allocation2 [shape = 'f32[8,8,384]{2,1,0:T(8,128)}', space=vmem, size = 0x18000, scoped, tag = 'scratch operand']
  %s0 = inlined_call_operand.vmem [shape: f32[8,8,384], index: 0, kind: input, shape index: {}]
  %s1 = inlined_call_operand.vmem [shape: f32[2,8,128], index: 1, kind: input, shape index: {}]
  %s2 = inlined_call_operand.hbm [shape: f32[2,128,384], index: 2, kind: input, shape index: {}]
  %s3 = inlined_call_operand.vmem [shape: f32[2,1,128], index: 3, kind: input, shape index: {}]
  %s4 = inlined_call_operand.vmem [shape: f32[1,128,384], index: 4, kind: input, shape index: {}]
  %s5 = inlined_call_operand.vmem [shape: f32[1,1,384], index: 5, kind: input, shape index: {}]
  %s6 = inlined_call_operand.vmem [shape: f32[8,8,128], index: 6, kind: output, shape index: {0}]
  %s7 = inlined_call_operand.vmem [shape: f32[2,8,128], index: 7, kind: output, shape index: {1}]
  %8 = xla_tuple %s6, %s7
  %s9 = sld [smem:[#allocation0]]
  $region46: #{sequence_encoder_forward.1} parent=0
    _
  %s11 = ssub.s32 1, %s9
  %s12 = scalar_select 0, %s11, %s9
  $region1: #{sequence_encoder_forward.1} parent=0
    #allocation3 [shape = 'u8[393216]{0}', space=vmem, size = 0x60000, scoped, tag = 'input window, operand 2, single buffered']
    #allocation4 [shape = 's32[1]{0}', space=sflag, size = 0x4, scoped, tag = 'scoped memory for sequence_encoder_forward.1']
    %13 = vsyncpa [#allocation4], 0
    // Predicated region
    $region2: #{sequence_encoder_forward.1} parent=1 // pred_check
      _
    $region3: #{sequence_encoder_forward.1} parent=1 // pred_check_branch
      %15 = sbr.rel (0) target = $region5
    $region4: #{sequence_encoder_forward.1} parent=1 // pred_region
      _
    $region5: #{sequence_encoder_forward.1} parent=1 // pred_fallthru
      _
    // Predicated region
    $region6: #{sequence_encoder_forward.1} parent=1 // pred_check
      _
    $region7: #{sequence_encoder_forward.1} parent=1 // pred_check_branch
      %17 = sbr.rel (0) target = $region9
    $region8: #{sequence_encoder_forward.1} parent=1 // pred_region
      _
    $region9: #{sequence_encoder_forward.1} parent=1 // pred_fallthru
      _
    // Predicated region
    $region10: #{sequence_encoder_forward.1} parent=1 // pred_check
      _
    $region11: #{sequence_encoder_forward.1} parent=1 // pred_check_branch
      %19 = sbr.rel (0) target = $region13
    $region12: #{sequence_encoder_forward.1} parent=1 // pred_region
      %s21 = ssub.s32 12288, 12288
      %22 = vsyncadd [#allocation4], %s21
      %s23 = sshll.u32 [#allocation3], 4
      %s24 = int_to_ptr.vmem [resolvable:$true] %s23
      %29 = dma.hbm_to_vmem [thread:$0]  %s2, 12288, %s24, [#allocation4], 384, 384, 24
    $region13: #{sequence_encoder_forward.1} parent=1 // pred_fallthru
      _
    // Predicated region
    $region14: #{sequence_encoder_forward.1} parent=1 // pred_check
      _
    $region15: #{sequence_encoder_forward.1} parent=1 // pred_check_branch
      %31 = sbr.rel (0) target = $region17
    $region16: #{sequence_encoder_forward.1} parent=1 // pred_region
      _
    $region17: #{sequence_encoder_forward.1} parent=1 // pred_fallthru
      _
    // Predicated region
    $region18: #{sequence_encoder_forward.1} parent=1 // pred_check
      _
    $region19: #{sequence_encoder_forward.1} parent=1 // pred_check_branch
      %33 = sbr.rel (0) target = $region21
    $region20: #{sequence_encoder_forward.1} parent=1 // pred_region
      _
    $region21: #{sequence_encoder_forward.1} parent=1 // pred_fallthru
      _
    // Predicated region
    $region22: #{sequence_encoder_forward.1} parent=1 // pred_check
      _
    $region23: #{sequence_encoder_forward.1} parent=1 // pred_check_branch
      %35 = sbr.rel (0) target = $region25
    $region24: #{sequence_encoder_forward.1} parent=1 // pred_region
      _
    $region25: #{sequence_encoder_forward.1} parent=1 // pred_fallthru
      _
    // Predicated region
    $region26: #{sequence_encoder_forward.1} parent=1 // pred_check
      _
    $region27: #{sequence_encoder_forward.1} parent=1 // pred_check_branch
      %37 = sbr.rel (0) target = $region29
    $region28: #{sequence_encoder_forward.1} parent=1 // pred_region
      %38 = dma.done [#allocation4], 12288
    $region29: #{sequence_encoder_forward.1} parent=1 // pred_fallthru
      _
    %v39 = vld [vmem:[#allocation3] sm:$0xff]
    %v40 = vld [vmem:[#allocation3 + $0x8] sm:$0xff]
    %v41 = vld [vmem:[#allocation3 + $0x10] sm:$0xff]
    %v42 = vld [vmem:[#allocation3 + $0x18] sm:$0xff]
    %v43 = vld [vmem:[#allocation3 + $0x20] sm:$0xff]
    %v44 = vld [vmem:[#allocation3 + $0x28] sm:$0xff]
    %v45 = vld [vmem:[#allocation3 + $0x30] sm:$0xff]
    %v46 = vld [vmem:[#allocation3 + $0x38] sm:$0xff]
    %v47 = vld [vmem:[#allocation3 + $0x40] sm:$0xff]
    %v48 = vld [vmem:[#allocation3 + $0x48] sm:$0xff]
    %v49 = vld [vmem:[#allocation3 + $0x50] sm:$0xff]
    %v50 = vld [vmem:[#allocation3 + $0x58] sm:$0xff]
    %v51 = vld [vmem:[#allocation3 + $0x60] sm:$0xff]
    %v52 = vld [vmem:[#allocation3 + $0x68] sm:$0xff]
    %v53 = vld [vmem:[#allocation3 + $0x70] sm:$0xff]
    %v54 = vld [vmem:[#allocation3 + $0x78] sm:$0xff]
    %v55 = vld [vmem:[#allocation3 + $0x80] sm:$0xff]
    %v56 = vld [vmem:[#allocation3 + $0x88] sm:$0xff]
    %v57 = vld [vmem:[#allocation3 + $0x90] sm:$0xff]
    %v58 = vld [vmem:[#allocation3 + $0x98] sm:$0xff]
    %v59 = vld [vmem:[#allocation3 + $0xa0] sm:$0xff]
    %v60 = vld [vmem:[#allocation3 + $0xa8] sm:$0xff]
    %v61 = vld [vmem:[#allocation3 + $0xb0] sm:$0xff]
    %v62 = vld [vmem:[#allocation3 + $0xb8] sm:$0xff]
    %v63 = vld [vmem:[#allocation3 + $0xc0] sm:$0xff]
    %v64 = vld [vmem:[#allocation3 + $0xc8] sm:$0xff]
    %v65 = vld [vmem:[#allocation3 + $0xd0] sm:$0xff]
    %v66 = vld [vmem:[#allocation3 + $0xd8] sm:$0xff]
    %v67 = vld [vmem:[#allocation3 + $0xe0] sm:$0xff]
    %v68 = vld [vmem:[#allocation3 + $0xe8] sm:$0xff]
    %v69 = vld [vmem:[#allocation3 + $0xf0] sm:$0xff]
    %v70 = vld [vmem:[#allocation3 + $0xf8] sm:$0xff]
    %v71 = vld [vmem:[#allocation3 + $0x100] sm:$0xff]
    %v72 = vld [vmem:[#allocation3 + $0x108] sm:$0xff]
    %v73 = vld [vmem:[#allocation3 + $0x110] sm:$0xff]
    %v74 = vld [vmem:[#allocation3 + $0x118] sm:$0xff]
    %v75 = vld [vmem:[#allocation3 + $0x120] sm:$0xff]
    %v76 = vld [vmem:[#allocation3 + $0x128] sm:$0xff]
    %v77 = vld [vmem:[#allocation3 + $0x130] sm:$0xff]
    %v78 = vld [vmem:[#allocation3 + $0x138] sm:$0xff]
    %v79 = vld [vmem:[#allocation3 + $0x140] sm:$0xff]
    %v80 = vld [vmem:[#allocation3 + $0x148] sm:$0xff]
    %v81 = vld [vmem:[#allocation3 + $0x150] sm:$0xff]
    %v82 = vld [vmem:[#allocation3 + $0x158] sm:$0xff]
    %v83 = vld [vmem:[#allocation3 + $0x160] sm:$0xff]
    %v84 = vld [vmem:[#allocation3 + $0x168] sm:$0xff]
    %v85 = vld [vmem:[#allocation3 + $0x170] sm:$0xff]
    %v86 = vld [vmem:[#allocation3 + $0x178] sm:$0xff]
    %v87 = vld [vmem:[%s3] sm:$0x1]
    %v89 = vlaneseq
    %v90 = vshrl.u32 %v89, 7
    %v91 = vsub.s32 0, %v90
    %v92 = vrot.slane %v87, %v91
    %v94 = vld [vmem:[%s1] sm:$0xff]
    %v95 = vld [vmem:[%s0] sm:$0xff]
    %v96 = vld [vmem:[%s0 + $0x8] sm:$0xff]
    %v97 = vld [vmem:[%s0 + $0x10] sm:$0xff]
    %98 = vmatprep.subr.mxu0 %v85
    %99 = vmatpush1.msra.mxu0 %v84
    %100 = vmatprep.subr.mxu0 %v82
    %101 = vmatpush1.msra.mxu0 %v81
    %102 = vmatprep.subr.mxu0 %v79
    %103 = vmatpush1.msra.mxu0 %v78
    %104 = vmatprep.subr.mxu0 %v76
    %105 = vmatpush1.msra.mxu0 %v75
    %106 = vmatprep.subr.mxu0 %v73
    %107 = vmatpush1.msra.mxu0 %v72
    %108 = vmatprep.subr.mxu0 %v70
    %109 = vmatpush1.msra.mxu0 %v69
    %110 = vmatprep.subr.mxu0 %v67
    %111 = vmatpush1.msra.mxu0 %v66
    %112 = vmatprep.subr.mxu0 %v64
    %113 = vmatpush1.msra.mxu0 %v63
    %114 = vmatprep.subr.mxu0 %v61
    %115 = vmatpush1.msra.mxu0 %v60
    %116 = vmatprep.subr.mxu0 %v58
    %117 = vmatpush1.msra.mxu0 %v57
    %118 = vmatprep.subr.mxu0 %v55
    %119 = vmatpush1.msra.mxu0 %v54
    %120 = vmatprep.subr.mxu0 %v52
    %121 = vmatpush1.msra.mxu0 %v51
    %122 = vmatprep.subr.mxu0 %v49
    %123 = vmatpush1.msra.mxu0 %v48
    %124 = vmatprep.subr.mxu0 %v46
    %125 = vmatpush1.msra.mxu0 %v45
    %126 = vmatprep.subr.mxu0 %v43
    %127 = vmatpush1.msra.mxu0 %v42
    %128 = vmatprep.subr.mxu0 %v40
    %129 = vmatpush1.msra.mxu0 %v39
    %130 = vmatprep.subr.mxu0 0.0
    %131 = vmatpush2.msra.mxu0 0.0
    %132 = vmatprep.subr.mxu0 0.0
    %133 = vmatpush2.msra.mxu0 0.0
    %134 = vmatprep.subr.mxu0 0.0
    %135 = vmatpush2.msra.mxu0 0.0
    %136 = vmatprep.subr.mxu0 0.0
    %137 = vmatpush2.msra.mxu0 0.0
    %138 = vmatprep.subr.mxu0 0.0
    %139 = vmatpush2.msra.mxu0 0.0
    %140 = vmatprep.subr.mxu0 0.0
    %141 = vmatpush2.msra.mxu0 0.0
    %142 = vmatprep.subr.mxu0 0.0
    %143 = vmatpush2.msra.mxu0 0.0
    %144 = vmatprep.subr.mxu0 0.0
    %145 = vmatpush2.msra.mxu0 0.0
    %146 = vmatprep.subr.mxu0 0.0
    %147 = vmatpush2.msra.mxu0 0.0
    %148 = vmatprep.subr.mxu0 0.0
    %149 = vmatpush2.msra.mxu0 0.0
    %150 = vmatprep.subr.mxu0 0.0
    %151 = vmatpush2.msra.mxu0 0.0
    %152 = vmatprep.subr.mxu0 0.0
    %153 = vmatpush2.msra.mxu0 0.0
    %154 = vmatprep.subr.mxu0 0.0
    %155 = vmatpush2.msra.mxu0 0.0
    %156 = vmatprep.subr.mxu0 0.0
    %157 = vmatpush2.msra.mxu0 0.0
    %158 = vmatprep.subr.mxu0 0.0
    %159 = vmatpush2.msra.mxu0 0.0
    %160 = vmatprep.subr.mxu0 0.0
    %161 = vmatpush2.msra.mxu0 0.0
    %162 = vmatprep.mubr.f32.mxu0 0.0
    %163 = vmatmul.mubr.f32.gmra.mxu0 %v94
    %v164 = vpop.f32.mrf.mxu0
    %v165 = vadd.f32 0.0, %v164
    %v166 = vpop.f32.mrf.mxu0
    %v167 = vadd.f32 0.0, %v166
    %168 = vdwg.mxu0
    %169 = vmatprep.subr.mxu0 0.0
    %170 = vmatpush1.msra.mxu0 %v86
    %171 = vmatprep.subr.mxu0 0.0
    %172 = vmatpush1.msra.mxu0 %v83
    %173 = vmatprep.subr.mxu0 0.0
    %174 = vmatpush1.msra.mxu0 %v80
    %175 = vmatprep.subr.mxu0 0.0
    %176 = vmatpush1.msra.mxu0 %v77
    %177 = vmatprep.subr.mxu0 0.0
    %178 = vmatpush1.msra.mxu0 %v74
    %179 = vmatprep.subr.mxu0 0.0
    %180 = vmatpush1.msra.mxu0 %v71
    %181 = vmatprep.subr.mxu0 0.0
    %182 = vmatpush1.msra.mxu0 %v68
    %183 = vmatprep.subr.mxu0 0.0
    %184 = vmatpush1.msra.mxu0 %v65
    %185 = vmatprep.subr.mxu0 0.0
    %186 = vmatpush1.msra.mxu0 %v62
    %187 = vmatprep.subr.mxu0 0.0
    %188 = vmatpush1.msra.mxu0 %v59
    %189 = vmatprep.subr.mxu0 0.0
    %190 = vmatpush1.msra.mxu0 %v56
    %191 = vmatprep.subr.mxu0 0.0
    %192 = vmatpush1.msra.mxu0 %v53
    %193 = vmatprep.subr.mxu0 0.0
    %194 = vmatpush1.msra.mxu0 %v50
    %195 = vmatprep.subr.mxu0 0.0
    %196 = vmatpush1.msra.mxu0 %v47
    %197 = vmatprep.subr.mxu0 0.0
    %198 = vmatpush1.msra.mxu0 %v44
    %199 = vmatprep.subr.mxu0 0.0
    %200 = vmatpush1.msra.mxu0 %v41
    %201 = vmatprep.subr.mxu0 0.0
    %202 = vmatpush2.msra.mxu0 0.0
    %203 = vmatprep.subr.mxu0 0.0
    %204 = vmatpush2.msra.mxu0 0.0
    %205 = vmatprep.subr.mxu0 0.0
    %206 = vmatpush2.msra.mxu0 0.0
    %207 = vmatprep.subr.mxu0 0.0
    %208 = vmatpush2.msra.mxu0 0.0
    %209 = vmatprep.subr.mxu0 0.0
    %210 = vmatpush2.msra.mxu0 0.0
    %211 = vmatprep.subr.mxu0 0.0
    %212 = vmatpush2.msra.mxu0 0.0
    %213 = vmatprep.subr.mxu0 0.0
    %214 = vmatpush2.msra.mxu0 0.0
    %215 = vmatprep.subr.mxu0 0.0
    %216 = vmatpush2.msra.mxu0 0.0
    %217 = vmatprep.subr.mxu0 0.0
    %218 = vmatpush2.msra.mxu0 0.0
    %219 = vmatprep.subr.mxu0 0.0
    %220 = vmatpush2.msra.mxu0 0.0
    %221 = vmatprep.subr.mxu0 0.0
    %222 = vmatpush2.msra.mxu0 0.0
    %223 = vmatprep.subr.mxu0 0.0
    %224 = vmatpush2.msra.mxu0 0.0
    %225 = vmatprep.subr.mxu0 0.0
    %226 = vmatpush2.msra.mxu0 0.0
    %227 = vmatprep.subr.mxu0 0.0
    %228 = vmatpush2.msra.mxu0 0.0
    %229 = vmatprep.subr.mxu0 0.0
    %230 = vmatpush2.msra.mxu0 0.0
    %231 = vmatprep.subr.mxu0 0.0
    %232 = vmatpush2.msra.mxu0 0.0
    %233 = vmatprep.mubr.f32.mxu0 0.0
    %234 = vmatmul.mubr.f32.gmra.mxu0 %v94
    %v235 = vpop.f32.mrf.mxu0
    %v236 = vadd.f32 0.0, %v235
    %v237 = vpop.f32.mrf.mxu0
    %238 = vdwg.mxu0
    %v239 = vadd.f32 %v95, %v165
    %v240 = vxor.u32 %v239, 2147483648
    %v241 = vmul.f32 %v240, 1.442695
    %v242 = vpow.pop %v241
    %v243 = vadd.f32 %v242, 1.0
    %v244 = vrcp.pop %v243
    %v245 = vmul.f32 1.0, %v244
    %v246 = vadd.f32 %v96, %v167
    %v247 = vxor.u32 %v246, 2147483648
    %v248 = vmul.f32 %v247, 1.442695
    %v249 = vpow.pop %v248
    %v250 = vadd.f32 %v249, 1.0
    %v251 = vrcp.pop %v250
    %v252 = vmul.f32 1.0, %v251
    %v253 = vadd.f32 %v236, %v92
    %v254 = vmul.f32 %v245, %v253
    %v255 = vadd.f32 %v97, %v254
    %v256 = vtanh.pop %v255
    %v257 = vsub.f32 1.0, %v252
    %v258 = vmul.f32 %v257, %v256
    %v259 = vmul.f32 %v252, %v94
    %v260 = vadd.f32 %v258, %v259
    %261 = vst [vmem:[%s6] sm:$0xff] %v260
    %s262 = scalar_lea.vmem %s0, 24
    %v263 = vld [vmem:[%s262] sm:$0xff]
    %v264 = vld [vmem:[%s262 + $0x8] sm:$0xff]
    %v265 = vld [vmem:[%s262 + $0x10] sm:$0xff]
    %266 = vmatprep.subr.mxu0 %v85
    %267 = vmatpush1.msra.mxu0 %v84
    %268 = vmatprep.subr.mxu0 %v82
    %269 = vmatpush1.msra.mxu0 %v81
    %270 = vmatprep.subr.mxu0 %v79
    %271 = vmatpush1.msra.mxu0 %v78
    %272 = vmatprep.subr.mxu0 %v76
    %273 = vmatpush1.msra.mxu0 %v75
    %274 = vmatprep.subr.mxu0 %v73
    %275 = vmatpush1.msra.mxu0 %v72
    %276 = vmatprep.subr.mxu0 %v70
    %277 = vmatpush1.msra.mxu0 %v69
    %278 = vmatprep.subr.mxu0 %v67
    %279 = vmatpush1.msra.mxu0 %v66
    %280 = vmatprep.subr.mxu0 %v64
    %281 = vmatpush1.msra.mxu0 %v63
    %282 = vmatprep.subr.mxu0 %v61
    %283 = vmatpush1.msra.mxu0 %v60
    %284 = vmatprep.subr.mxu0 %v58
    %285 = vmatpush1.msra.mxu0 %v57
    %286 = vmatprep.subr.mxu0 %v55
    %287 = vmatpush1.msra.mxu0 %v54
    %288 = vmatprep.subr.mxu0 %v52
    %289 = vmatpush1.msra.mxu0 %v51
    %290 = vmatprep.subr.mxu0 %v49
    %291 = vmatpush1.msra.mxu0 %v48
    %292 = vmatprep.subr.mxu0 %v46
    %293 = vmatpush1.msra.mxu0 %v45
    %294 = vmatprep.subr.mxu0 %v43
    %295 = vmatpush1.msra.mxu0 %v42
    %296 = vmatprep.subr.mxu0 %v40
    %297 = vmatpush1.msra.mxu0 %v39
    %298 = vmatprep.subr.mxu0 0.0
    %299 = vmatpush2.msra.mxu0 0.0
    %300 = vmatprep.subr.mxu0 0.0
    %301 = vmatpush2.msra.mxu0 0.0
    %302 = vmatprep.subr.mxu0 0.0
    %303 = vmatpush2.msra.mxu0 0.0
    %304 = vmatprep.subr.mxu0 0.0
    %305 = vmatpush2.msra.mxu0 0.0
    %306 = vmatprep.subr.mxu0 0.0
    %307 = vmatpush2.msra.mxu0 0.0
    %308 = vmatprep.subr.mxu0 0.0
    %309 = vmatpush2.msra.mxu0 0.0
    %310 = vmatprep.subr.mxu0 0.0
    %311 = vmatpush2.msra.mxu0 0.0
    %312 = vmatprep.subr.mxu0 0.0
    %313 = vmatpush2.msra.mxu0 0.0
    %314 = vmatprep.subr.mxu0 0.0
    %315 = vmatpush2.msra.mxu0 0.0
    %316 = vmatprep.subr.mxu0 0.0
    %317 = vmatpush2.msra.mxu0 0.0
    %318 = vmatprep.subr.mxu0 0.0
    %319 = vmatpush2.msra.mxu0 0.0
    %320 = vmatprep.subr.mxu0 0.0
    %321 = vmatpush2.msra.mxu0 0.0
    %322 = vmatprep.subr.mxu0 0.0
    %323 = vmatpush2.msra.mxu0 0.0
    %324 = vmatprep.subr.mxu0 0.0
    %325 = vmatpush2.msra.mxu0 0.0
    %326 = vmatprep.subr.mxu0 0.0
    %327 = vmatpush2.msra.mxu0 0.0
    %328 = vmatprep.subr.mxu0 0.0
    %329 = vmatpush2.msra.mxu0 0.0
    %330 = vmatprep.mubr.f32.mxu0 0.0
    %331 = vmatmul.mubr.f32.gmra.mxu0 %v260
    %v332 = vpop.f32.mrf.mxu0
    %v333 = vadd.f32 0.0, %v332
    %v334 = vpop.f32.mrf.mxu0
    %v335 = vadd.f32 0.0, %v334
    %336 = vdwg.mxu0
    %337 = vmatprep.subr.mxu0 0.0
    %338 = vmatpush1.msra.mxu0 %v86
    %339 = vmatprep.subr.mxu0 0.0
    %340 = vmatpush1.msra.mxu0 %v83
    %341 = vmatprep.subr.mxu0 0.0
    %342 = vmatpush1.msra.mxu0 %v80
    %343 = vmatprep.subr.mxu0 0.0
    %344 = vmatpush1.msra.mxu0 %v77
    %345 = vmatprep.subr.mxu0 0.0
    %346 = vmatpush1.msra.mxu0 %v74
    %347 = vmatprep.subr.mxu0 0.0
    %348 = vmatpush1.msra.mxu0 %v71
    %349 = vmatprep.subr.mxu0 0.0
    %350 = vmatpush1.msra.mxu0 %v68
    %351 = vmatprep.subr.mxu0 0.0
    %352 = vmatpush1.msra.mxu0 %v65
    %353 = vmatprep.subr.mxu0 0.0
    %354 = vmatpush1.msra.mxu0 %v62
    %355 = vmatprep.subr.mxu0 0.0
    %356 = vmatpush1.msra.mxu0 %v59
    %357 = vmatprep.subr.mxu0 0.0
    %358 = vmatpush1.msra.mxu0 %v56
    %359 = vmatprep.subr.mxu0 0.0
    %360 = vmatpush1.msra.mxu0 %v53
    %361 = vmatprep.subr.mxu0 0.0
    %362 = vmatpush1.msra.mxu0 %v50
    %363 = vmatprep.subr.mxu0 0.0
    %364 = vmatpush1.msra.mxu0 %v47
    %365 = vmatprep.subr.mxu0 0.0
    %366 = vmatpush1.msra.mxu0 %v44
    %367 = vmatprep.subr.mxu0 0.0
    %368 = vmatpush1.msra.mxu0 %v41
    %369 = vmatprep.subr.mxu0 0.0
    %370 = vmatpush2.msra.mxu0 0.0
    %371 = vmatprep.subr.mxu0 0.0
    %372 = vmatpush2.msra.mxu0 0.0
    %373 = vmatprep.subr.mxu0 0.0
    %374 = vmatpush2.msra.mxu0 0.0
    %375 = vmatprep.subr.mxu0 0.0
    %376 = vmatpush2.msra.mxu0 0.0
    %377 = vmatprep.subr.mxu0 0.0
    %378 = vmatpush2.msra.mxu0 0.0
    %379 = vmatprep.subr.mxu0 0.0
    %380 = vmatpush2.msra.mxu0 0.0
    %381 = vmatprep.subr.mxu0 0.0
    %382 = vmatpush2.msra.mxu0 0.0
    %383 = vmatprep.subr.mxu0 0.0
    %384 = vmatpush2.msra.mxu0 0.0
    %385 = vmatprep.subr.mxu0 0.0
    %386 = vmatpush2.msra.mxu0 0.0
    %387 = vmatprep.subr.mxu0 0.0
    %388 = vmatpush2.msra.mxu0 0.0
    %389 = vmatprep.subr.mxu0 0.0
    %390 = vmatpush2.msra.mxu0 0.0
    %391 = vmatprep.subr.mxu0 0.0
    %392 = vmatpush2.msra.mxu0 0.0
    %393 = vmatprep.subr.mxu0 0.0
    %394 = vmatpush2.msra.mxu0 0.0
    %395 = vmatprep.subr.mxu0 0.0
    %396 = vmatpush2.msra.mxu0 0.0
    %397 = vmatprep.subr.mxu0 0.0
    %398 = vmatpush2.msra.mxu0 0.0
    %399 = vmatprep.subr.mxu0 0.0
    %400 = vmatpush2.msra.mxu0 0.0
    %401 = vmatprep.mubr.f32.mxu0 0.0
    %402 = vmatmul.mubr.f32.gmra.mxu0 %v260
    %v403 = vpop.f32.mrf.mxu0
    %v404 = vadd.f32 0.0, %v403
    %v405 = vpop.f32.mrf.mxu0
    %406 = vdwg.mxu0
    %v407 = vadd.f32 %v263, %v333
    %v408 = vxor.u32 %v407, 2147483648
    %v409 = vmul.f32 %v408, 1.442695
    %v410 = vpow.pop %v409
    %v411 = vadd.f32 %v410, 1.0
    %v412 = vrcp.pop %v411
    %v413 = vmul.f32 1.0, %v412
    %v414 = vadd.f32 %v264, %v335
    %v415 = vxor.u32 %v414, 2147483648
    %v416 = vmul.f32 %v415, 1.442695
    %v417 = vpow.pop %v416
    %v418 = vadd.f32 %v417, 1.0
    %v419 = vrcp.pop %v418
    %v420 = vmul.f32 1.0, %v419
    %v421 = vadd.f32 %v404, %v92
    %v422 = vmul.f32 %v413, %v421
    %v423 = vadd.f32 %v265, %v422
    %v424 = vtanh.pop %v423
    %v425 = vsub.f32 1.0, %v420
    %v426 = vmul.f32 %v425, %v424
    %v427 = vmul.f32 %v420, %v260
    %v428 = vadd.f32 %v426, %v427
    %s429 = scalar_lea.vmem %s6, 8
    %430 = vst [vmem:[%s429] sm:$0xff] %v428
    %s431 = scalar_lea.vmem %s0, 48
    %v432 = vld [vmem:[%s431] sm:$0xff]
    %v433 = vld [vmem:[%s431 + $0x8] sm:$0xff]
    %v434 = vld [vmem:[%s431 + $0x10] sm:$0xff]
    %435 = vmatprep.subr.mxu0 %v85
    %436 = vmatpush1.msra.mxu0 %v84
    %437 = vmatprep.subr.mxu0 %v82
    %438 = vmatpush1.msra.mxu0 %v81
    %439 = vmatprep.subr.mxu0 %v79
    %440 = vmatpush1.msra.mxu0 %v78
    %441 = vmatprep.subr.mxu0 %v76
    %442 = vmatpush1.msra.mxu0 %v75
    %443 = vmatprep.subr.mxu0 %v73
    %444 = vmatpush1.msra.mxu0 %v72
    %445 = vmatprep.subr.mxu0 %v70
    %446 = vmatpush1.msra.mxu0 %v69
    %447 = vmatprep.subr.mxu0 %v67
    %448 = vmatpush1.msra.mxu0 %v66
    %449 = vmatprep.subr.mxu0 %v64
    %450 = vmatpush1.msra.mxu0 %v63
    %451 = vmatprep.subr.mxu0 %v61
    %452 = vmatpush1.msra.mxu0 %v60
    %453 = vmatprep.subr.mxu0 %v58
    %454 = vmatpush1.msra.mxu0 %v57
    %455 = vmatprep.subr.mxu0 %v55
    %456 = vmatpush1.msra.mxu0 %v54
    %457 = vmatprep.subr.mxu0 %v52
    %458 = vmatpush1.msra.mxu0 %v51
    %459 = vmatprep.subr.mxu0 %v49
    %460 = vmatpush1.msra.mxu0 %v48
    %461 = vmatprep.subr.mxu0 %v46
    %462 = vmatpush1.msra.mxu0 %v45
    %463 = vmatprep.subr.mxu0 %v43
    %464 = vmatpush1.msra.mxu0 %v42
    %465 = vmatprep.subr.mxu0 %v40
    %466 = vmatpush1.msra.mxu0 %v39
    %467 = vmatprep.subr.mxu0 0.0
    %468 = vmatpush2.msra.mxu0 0.0
    %469 = vmatprep.subr.mxu0 0.0
    %470 = vmatpush2.msra.mxu0 0.0
    %471 = vmatprep.subr.mxu0 0.0
    %472 = vmatpush2.msra.mxu0 0.0
    %473 = vmatprep.subr.mxu0 0.0
    %474 = vmatpush2.msra.mxu0 0.0
    %475 = vmatprep.subr.mxu0 0.0
    %476 = vmatpush2.msra.mxu0 0.0
    %477 = vmatprep.subr.mxu0 0.0
    %478 = vmatpush2.msra.mxu0 0.0
    %479 = vmatprep.subr.mxu0 0.0
    %480 = vmatpush2.msra.mxu0 0.0
    %481 = vmatprep.subr.mxu0 0.0
    %482 = vmatpush2.msra.mxu0 0.0
    %483 = vmatprep.subr.mxu0 0.0
    %484 = vmatpush2.msra.mxu0 0.0
    %485 = vmatprep.subr.mxu0 0.0
    %486 = vmatpush2.msra.mxu0 0.0
    %487 = vmatprep.subr.mxu0 0.0
    %488 = vmatpush2.msra.mxu0 0.0
    %489 = vmatprep.subr.mxu0 0.0
    %490 = vmatpush2.msra.mxu0 0.0
    %491 = vmatprep.subr.mxu0 0.0
    %492 = vmatpush2.msra.mxu0 0.0
    %493 = vmatprep.subr.mxu0 0.0
    %494 = vmatpush2.msra.mxu0 0.0
    %495 = vmatprep.subr.mxu0 0.0
    %496 = vmatpush2.msra.mxu0 0.0
    %497 = vmatprep.subr.mxu0 0.0
    %498 = vmatpush2.msra.mxu0 0.0
    %499 = vmatprep.mubr.f32.mxu0 0.0
    %500 = vmatmul.mubr.f32.gmra.mxu0 %v428
    %v501 = vpop.f32.mrf.mxu0
    %v502 = vadd.f32 0.0, %v501
    %v503 = vpop.f32.mrf.mxu0
    %v504 = vadd.f32 0.0, %v503
    %505 = vdwg.mxu0
    %506 = vmatprep.subr.mxu0 0.0
    %507 = vmatpush1.msra.mxu0 %v86
    %508 = vmatprep.subr.mxu0 0.0
    %509 = vmatpush1.msra.mxu0 %v83
    %510 = vmatprep.subr.mxu0 0.0
    %511 = vmatpush1.msra.mxu0 %v80
    %512 = vmatprep.subr.mxu0 0.0
    %513 = vmatpush1.msra.mxu0 %v77
    %514 = vmatprep.subr.mxu0 0.0
    %515 = vmatpush1.msra.mxu0 %v74
    %516 = vmatprep.subr.mxu0 0.0
    %517 = vmatpush1.msra.mxu0 %v71
    %518 = vmatprep.subr.mxu0 0.0
    %519 = vmatpush1.msra.mxu0 %v68
    %520 = vmatprep.subr.mxu0 0.0
    %521 = vmatpush1.msra.mxu0 %v65
    %522 = vmatprep.subr.mxu0 0.0
    %523 = vmatpush1.msra.mxu0 %v62
    %524 = vmatprep.subr.mxu0 0.0
    %525 = vmatpush1.msra.mxu0 %v59
    %526 = vmatprep.subr.mxu0 0.0
    %527 = vmatpush1.msra.mxu0 %v56
    %528 = vmatprep.subr.mxu0 0.0
    %529 = vmatpush1.msra.mxu0 %v53
    %530 = vmatprep.subr.mxu0 0.0
    %531 = vmatpush1.msra.mxu0 %v50
    %532 = vmatprep.subr.mxu0 0.0
    %533 = vmatpush1.msra.mxu0 %v47
    %534 = vmatprep.subr.mxu0 0.0
    %535 = vmatpush1.msra.mxu0 %v44
    %536 = vmatprep.subr.mxu0 0.0
    %537 = vmatpush1.msra.mxu0 %v41
    %538 = vmatprep.subr.mxu0 0.0
    %539 = vmatpush2.msra.mxu0 0.0
    %540 = vmatprep.subr.mxu0 0.0
    %541 = vmatpush2.msra.mxu0 0.0
    %542 = vmatprep.subr.mxu0 0.0
    %543 = vmatpush2.msra.mxu0 0.0
    %544 = vmatprep.subr.mxu0 0.0
    %545 = vmatpush2.msra.mxu0 0.0
    %546 = vmatprep.subr.mxu0 0.0
    %547 = vmatpush2.msra.mxu0 0.0
    %548 = vmatprep.subr.mxu0 0.0
    %549 = vmatpush2.msra.mxu0 0.0
    %550 = vmatprep.subr.mxu0 0.0
    %551 = vmatpush2.msra.mxu0 0.0
    %552 = vmatprep.subr.mxu0 0.0
    %553 = vmatpush2.msra.mxu0 0.0
    %554 = vmatprep.subr.mxu0 0.0
    %555 = vmatpush2.msra.mxu0 0.0
    %556 = vmatprep.subr.mxu0 0.0
    %557 = vmatpush2.msra.mxu0 0.0
    %558 = vmatprep.subr.mxu0 0.0
    %559 = vmatpush2.msra.mxu0 0.0
    %560 = vmatprep.subr.mxu0 0.0
    %561 = vmatpush2.msra.mxu0 0.0
    %562 = vmatprep.subr.mxu0 0.0
    %563 = vmatpush2.msra.mxu0 0.0
    %564 = vmatprep.subr.mxu0 0.0
    %565 = vmatpush2.msra.mxu0 0.0
    %566 = vmatprep.subr.mxu0 0.0
    %567 = vmatpush2.msra.mxu0 0.0
    %568 = vmatprep.subr.mxu0 0.0
    %569 = vmatpush2.msra.mxu0 0.0
    %570 = vmatprep.mubr.f32.mxu0 0.0
    %571 = vmatmul.mubr.f32.gmra.mxu0 %v428
    %v572 = vpop.f32.mrf.mxu0
    %v573 = vadd.f32 0.0, %v572
    %v574 = vpop.f32.mrf.mxu0
    %575 = vdwg.mxu0
    %v576 = vadd.f32 %v432, %v502
    %v577 = vxor.u32 %v576, 2147483648
    %v578 = vmul.f32 %v577, 1.442695
    %v579 = vpow.pop %v578
    %v580 = vadd.f32 %v579, 1.0
    %v581 = vrcp.pop %v580
    %v582 = vmul.f32 1.0, %v581
    %v583 = vadd.f32 %v433, %v504
    %v584 = vxor.u32 %v583, 2147483648
    %v585 = vmul.f32 %v584, 1.442695
    %v586 = vpow.pop %v585
    %v587 = vadd.f32 %v586, 1.0
    %v588 = vrcp.pop %v587
    %v589 = vmul.f32 1.0, %v588
    %v590 = vadd.f32 %v573, %v92
    %v591 = vmul.f32 %v582, %v590
    %v592 = vadd.f32 %v434, %v591
    %v593 = vtanh.pop %v592
    %v594 = vsub.f32 1.0, %v589
    %v595 = vmul.f32 %v594, %v593
    %v596 = vmul.f32 %v589, %v428
    %v597 = vadd.f32 %v595, %v596
    %s598 = scalar_lea.vmem %s6, 16
    %599 = vst [vmem:[%s598] sm:$0xff] %v597
    %s600 = scalar_lea.vmem %s0, 72
    %v601 = vld [vmem:[%s600] sm:$0xff]
    %v602 = vld [vmem:[%s600 + $0x8] sm:$0xff]
    %v603 = vld [vmem:[%s600 + $0x10] sm:$0xff]
    %604 = vmatprep.subr.mxu0 %v85
    %605 = vmatpush1.msra.mxu0 %v84
    %606 = vmatprep.subr.mxu0 %v82
    %607 = vmatpush1.msra.mxu0 %v81
    %608 = vmatprep.subr.mxu0 %v79
    %609 = vmatpush1.msra.mxu0 %v78
    %610 = vmatprep.subr.mxu0 %v76
    %611 = vmatpush1.msra.mxu0 %v75
    %612 = vmatprep.subr.mxu0 %v73
    %613 = vmatpush1.msra.mxu0 %v72
    %614 = vmatprep.subr.mxu0 %v70
    %615 = vmatpush1.msra.mxu0 %v69
    %616 = vmatprep.subr.mxu0 %v67
    %617 = vmatpush1.msra.mxu0 %v66
    %618 = vmatprep.subr.mxu0 %v64
    %619 = vmatpush1.msra.mxu0 %v63
    %620 = vmatprep.subr.mxu0 %v61
    %621 = vmatpush1.msra.mxu0 %v60
    %622 = vmatprep.subr.mxu0 %v58
    %623 = vmatpush1.msra.mxu0 %v57
    %624 = vmatprep.subr.mxu0 %v55
    %625 = vmatpush1.msra.mxu0 %v54
    %626 = vmatprep.subr.mxu0 %v52
    %627 = vmatpush1.msra.mxu0 %v51
    %628 = vmatprep.subr.mxu0 %v49
    %629 = vmatpush1.msra.mxu0 %v48
    %630 = vmatprep.subr.mxu0 %v46
    %631 = vmatpush1.msra.mxu0 %v45
    %632 = vmatprep.subr.mxu0 %v43
    %633 = vmatpush1.msra.mxu0 %v42
    %634 = vmatprep.subr.mxu0 %v40
    %635 = vmatpush1.msra.mxu0 %v39
    %636 = vmatprep.subr.mxu0 0.0
    %637 = vmatpush2.msra.mxu0 0.0
    %638 = vmatprep.subr.mxu0 0.0
    %639 = vmatpush2.msra.mxu0 0.0
    %640 = vmatprep.subr.mxu0 0.0
    %641 = vmatpush2.msra.mxu0 0.0
    %642 = vmatprep.subr.mxu0 0.0
    %643 = vmatpush2.msra.mxu0 0.0
    %644 = vmatprep.subr.mxu0 0.0
    %645 = vmatpush2.msra.mxu0 0.0
    %646 = vmatprep.subr.mxu0 0.0
    %647 = vmatpush2.msra.mxu0 0.0
    %648 = vmatprep.subr.mxu0 0.0
    %649 = vmatpush2.msra.mxu0 0.0
    %650 = vmatprep.subr.mxu0 0.0
    %651 = vmatpush2.msra.mxu0 0.0
    %652 = vmatprep.subr.mxu0 0.0
    %653 = vmatpush2.msra.mxu0 0.0
    %654 = vmatprep.subr.mxu0 0.0
    %655 = vmatpush2.msra.mxu0 0.0
    %656 = vmatprep.subr.mxu0 0.0
    %657 = vmatpush2.msra.mxu0 0.0
    %658 = vmatprep.subr.mxu0 0.0
    %659 = vmatpush2.msra.mxu0 0.0
    %660 = vmatprep.subr.mxu0 0.0
    %661 = vmatpush2.msra.mxu0 0.0
    %662 = vmatprep.subr.mxu0 0.0
    %663 = vmatpush2.msra.mxu0 0.0
    %664 = vmatprep.subr.mxu0 0.0
    %665 = vmatpush2.msra.mxu0 0.0
    %666 = vmatprep.subr.mxu0 0.0
    %667 = vmatpush2.msra.mxu0 0.0
    %668 = vmatprep.mubr.f32.mxu0 0.0
    %669 = vmatmul.mubr.f32.gmra.mxu0 %v597
    %v670 = vpop.f32.mrf.mxu0
    %v671 = vadd.f32 0.0, %v670
    %v672 = vpop.f32.mrf.mxu0
    %v673 = vadd.f32 0.0, %v672
    %674 = vdwg.mxu0
    %675 = vmatprep.subr.mxu0 0.0
    %676 = vmatpush1.msra.mxu0 %v86
    %677 = vmatprep.subr.mxu0 0.0
    %678 = vmatpush1.msra.mxu0 %v83
    %679 = vmatprep.subr.mxu0 0.0
    %680 = vmatpush1.msra.mxu0 %v80
    %681 = vmatprep.subr.mxu0 0.0
    %682 = vmatpush1.msra.mxu0 %v77
    %683 = vmatprep.subr.mxu0 0.0
    %684 = vmatpush1.msra.mxu0 %v74
    %685 = vmatprep.subr.mxu0 0.0
    %686 = vmatpush1.msra.mxu0 %v71
    %687 = vmatprep.subr.mxu0 0.0
    %688 = vmatpush1.msra.mxu0 %v68
    %689 = vmatprep.subr.mxu0 0.0
    %690 = vmatpush1.msra.mxu0 %v65
    %691 = vmatprep.subr.mxu0 0.0
    %692 = vmatpush1.msra.mxu0 %v62
    %693 = vmatprep.subr.mxu0 0.0
    %694 = vmatpush1.msra.mxu0 %v59
    %695 = vmatprep.subr.mxu0 0.0
    %696 = vmatpush1.msra.mxu0 %v56
    %697 = vmatprep.subr.mxu0 0.0
    %698 = vmatpush1.msra.mxu0 %v53
    %699 = vmatprep.subr.mxu0 0.0
    %700 = vmatpush1.msra.mxu0 %v50
    %701 = vmatprep.subr.mxu0 0.0
    %702 = vmatpush1.msra.mxu0 %v47
    %703 = vmatprep.subr.mxu0 0.0
    %704 = vmatpush1.msra.mxu0 %v44
    %705 = vmatprep.subr.mxu0 0.0
    %706 = vmatpush1.msra.mxu0 %v41
    %707 = vmatprep.subr.mxu0 0.0
    %708 = vmatpush2.msra.mxu0 0.0
    %709 = vmatprep.subr.mxu0 0.0
    %710 = vmatpush2.msra.mxu0 0.0
    %711 = vmatprep.subr.mxu0 0.0
    %712 = vmatpush2.msra.mxu0 0.0
    %713 = vmatprep.subr.mxu0 0.0
    %714 = vmatpush2.msra.mxu0 0.0
    %715 = vmatprep.subr.mxu0 0.0
    %716 = vmatpush2.msra.mxu0 0.0
    %717 = vmatprep.subr.mxu0 0.0
    %718 = vmatpush2.msra.mxu0 0.0
    %719 = vmatprep.subr.mxu0 0.0
    %720 = vmatpush2.msra.mxu0 0.0
    %721 = vmatprep.subr.mxu0 0.0
    %722 = vmatpush2.msra.mxu0 0.0
    %723 = vmatprep.subr.mxu0 0.0
    %724 = vmatpush2.msra.mxu0 0.0
    %725 = vmatprep.subr.mxu0 0.0
    %726 = vmatpush2.msra.mxu0 0.0
    %727 = vmatprep.subr.mxu0 0.0
    %728 = vmatpush2.msra.mxu0 0.0
    %729 = vmatprep.subr.mxu0 0.0
    %730 = vmatpush2.msra.mxu0 0.0
    %731 = vmatprep.subr.mxu0 0.0
    %732 = vmatpush2.msra.mxu0 0.0
    %733 = vmatprep.subr.mxu0 0.0
    %734 = vmatpush2.msra.mxu0 0.0
    %735 = vmatprep.subr.mxu0 0.0
    %736 = vmatpush2.msra.mxu0 0.0
    %737 = vmatprep.subr.mxu0 0.0
    %738 = vmatpush2.msra.mxu0 0.0
    %739 = vmatprep.mubr.f32.mxu0 0.0
    %740 = vmatmul.mubr.f32.gmra.mxu0 %v597
    %v741 = vpop.f32.mrf.mxu0
    %v742 = vadd.f32 0.0, %v741
    %v743 = vpop.f32.mrf.mxu0
    %744 = vdwg.mxu0
    %v745 = vadd.f32 %v601, %v671
    %v746 = vxor.u32 %v745, 2147483648
    %v747 = vmul.f32 %v746, 1.442695
    %v748 = vpow.pop %v747
    %v749 = vadd.f32 %v748, 1.0
    %v750 = vrcp.pop %v749
    %v751 = vmul.f32 1.0, %v750
    %v752 = vadd.f32 %v602, %v673
    %v753 = vxor.u32 %v752, 2147483648
    %v754 = vmul.f32 %v753, 1.442695
    %v755 = vpow.pop %v754
    %v756 = vadd.f32 %v755, 1.0
    %v757 = vrcp.pop %v756
    %v758 = vmul.f32 1.0, %v757
    %v759 = vadd.f32 %v742, %v92
    %v760 = vmul.f32 %v751, %v759
    %v761 = vadd.f32 %v603, %v760
    %v762 = vtanh.pop %v761
    %v763 = vsub.f32 1.0, %v758
    %v764 = vmul.f32 %v763, %v762
    %v765 = vmul.f32 %v758, %v597
    %v766 = vadd.f32 %v764, %v765
    %s767 = scalar_lea.vmem %s6, 24
    %768 = vst [vmem:[%s767] sm:$0xff] %v766
    %s769 = scalar_lea.vmem %s0, 96
    %v770 = vld [vmem:[%s769] sm:$0xff]
    %v771 = vld [vmem:[%s769 + $0x8] sm:$0xff]
    %v772 = vld [vmem:[%s769 + $0x10] sm:$0xff]
    %773 = vmatprep.subr.mxu0 %v85
    %774 = vmatpush1.msra.mxu0 %v84
    %775 = vmatprep.subr.mxu0 %v82
    %776 = vmatpush1.msra.mxu0 %v81
    %777 = vmatprep.subr.mxu0 %v79
    %778 = vmatpush1.msra.mxu0 %v78
    %779 = vmatprep.subr.mxu0 %v76
    %780 = vmatpush1.msra.mxu0 %v75
    %781 = vmatprep.subr.mxu0 %v73
    %782 = vmatpush1.msra.mxu0 %v72
    %783 = vmatprep.subr.mxu0 %v70
    %784 = vmatpush1.msra.mxu0 %v69
    %785 = vmatprep.subr.mxu0 %v67
    %786 = vmatpush1.msra.mxu0 %v66
    %787 = vmatprep.subr.mxu0 %v64
    %788 = vmatpush1.msra.mxu0 %v63
    %789 = vmatprep.subr.mxu0 %v61
    %790 = vmatpush1.msra.mxu0 %v60
    %791 = vmatprep.subr.mxu0 %v58
    %792 = vmatpush1.msra.mxu0 %v57
    %793 = vmatprep.subr.mxu0 %v55
    %794 = vmatpush1.msra.mxu0 %v54
    %795 = vmatprep.subr.mxu0 %v52
    %796 = vmatpush1.msra.mxu0 %v51
    %797 = vmatprep.subr.mxu0 %v49
    %798 = vmatpush1.msra.mxu0 %v48
    %799 = vmatprep.subr.mxu0 %v46
    %800 = vmatpush1.msra.mxu0 %v45
    %801 = vmatprep.subr.mxu0 %v43
    %802 = vmatpush1.msra.mxu0 %v42
    %803 = vmatprep.subr.mxu0 %v40
    %804 = vmatpush1.msra.mxu0 %v39
    %805 = vmatprep.subr.mxu0 0.0
    %806 = vmatpush2.msra.mxu0 0.0
    %807 = vmatprep.subr.mxu0 0.0
    %808 = vmatpush2.msra.mxu0 0.0
    %809 = vmatprep.subr.mxu0 0.0
    %810 = vmatpush2.msra.mxu0 0.0
    %811 = vmatprep.subr.mxu0 0.0
    %812 = vmatpush2.msra.mxu0 0.0
    %813 = vmatprep.subr.mxu0 0.0
    %814 = vmatpush2.msra.mxu0 0.0
    %815 = vmatprep.subr.mxu0 0.0
    %816 = vmatpush2.msra.mxu0 0.0
    %817 = vmatprep.subr.mxu0 0.0
    %818 = vmatpush2.msra.mxu0 0.0
    %819 = vmatprep.subr.mxu0 0.0
    %820 = vmatpush2.msra.mxu0 0.0
    %821 = vmatprep.subr.mxu0 0.0
    %822 = vmatpush2.msra.mxu0 0.0
    %823 = vmatprep.subr.mxu0 0.0
    %824 = vmatpush2.msra.mxu0 0.0
    %825 = vmatprep.subr.mxu0 0.0
    %826 = vmatpush2.msra.mxu0 0.0
    %827 = vmatprep.subr.mxu0 0.0
    %828 = vmatpush2.msra.mxu0 0.0
    %829 = vmatprep.subr.mxu0 0.0
    %830 = vmatpush2.msra.mxu0 0.0
    %831 = vmatprep.subr.mxu0 0.0
    %832 = vmatpush2.msra.mxu0 0.0
    %833 = vmatprep.subr.mxu0 0.0
    %834 = vmatpush2.msra.mxu0 0.0
    %835 = vmatprep.subr.mxu0 0.0
    %836 = vmatpush2.msra.mxu0 0.0
    %837 = vmatprep.mubr.f32.mxu0 0.0
    %838 = vmatmul.mubr.f32.gmra.mxu0 %v766
    %v839 = vpop.f32.mrf.mxu0
    %v840 = vadd.f32 0.0, %v839
    %v841 = vpop.f32.mrf.mxu0
    %v842 = vadd.f32 0.0, %v841
    %843 = vdwg.mxu0
    %844 = vmatprep.subr.mxu0 0.0
    %845 = vmatpush1.msra.mxu0 %v86
    %846 = vmatprep.subr.mxu0 0.0
    %847 = vmatpush1.msra.mxu0 %v83
    %848 = vmatprep.subr.mxu0 0.0
    %849 = vmatpush1.msra.mxu0 %v80
    %850 = vmatprep.subr.mxu0 0.0
    %851 = vmatpush1.msra.mxu0 %v77
    %852 = vmatprep.subr.mxu0 0.0
    %853 = vmatpush1.msra.mxu0 %v74
    %854 = vmatprep.subr.mxu0 0.0
    %855 = vmatpush1.msra.mxu0 %v71
    %856 = vmatprep.subr.mxu0 0.0
    %857 = vmatpush1.msra.mxu0 %v68
    %858 = vmatprep.subr.mxu0 0.0
    %859 = vmatpush1.msra.mxu0 %v65
    %860 = vmatprep.subr.mxu0 0.0
    %861 = vmatpush1.msra.mxu0 %v62
    %862 = vmatprep.subr.mxu0 0.0
    %863 = vmatpush1.msra.mxu0 %v59
    %864 = vmatprep.subr.mxu0 0.0
    %865 = vmatpush1.msra.mxu0 %v56
    %866 = vmatprep.subr.mxu0 0.0
    %867 = vmatpush1.msra.mxu0 %v53
    %868 = vmatprep.subr.mxu0 0.0
    %869 = vmatpush1.msra.mxu0 %v50
    %870 = vmatprep.subr.mxu0 0.0
    %871 = vmatpush1.msra.mxu0 %v47
    %872 = vmatprep.subr.mxu0 0.0
    %873 = vmatpush1.msra.mxu0 %v44
    %874 = vmatprep.subr.mxu0 0.0
    %875 = vmatpush1.msra.mxu0 %v41
    %876 = vmatprep.subr.mxu0 0.0
    %877 = vmatpush2.msra.mxu0 0.0
    %878 = vmatprep.subr.mxu0 0.0
    %879 = vmatpush2.msra.mxu0 0.0
    %880 = vmatprep.subr.mxu0 0.0
    %881 = vmatpush2.msra.mxu0 0.0
    %882 = vmatprep.subr.mxu0 0.0
    %883 = vmatpush2.msra.mxu0 0.0
    %884 = vmatprep.subr.mxu0 0.0
    %885 = vmatpush2.msra.mxu0 0.0
    %886 = vmatprep.subr.mxu0 0.0
    %887 = vmatpush2.msra.mxu0 0.0
    %888 = vmatprep.subr.mxu0 0.0
    %889 = vmatpush2.msra.mxu0 0.0
    %890 = vmatprep.subr.mxu0 0.0
    %891 = vmatpush2.msra.mxu0 0.0
    %892 = vmatprep.subr.mxu0 0.0
    %893 = vmatpush2.msra.mxu0 0.0
    %894 = vmatprep.subr.mxu0 0.0
    %895 = vmatpush2.msra.mxu0 0.0
    %896 = vmatprep.subr.mxu0 0.0
    %897 = vmatpush2.msra.mxu0 0.0
    %898 = vmatprep.subr.mxu0 0.0
    %899 = vmatpush2.msra.mxu0 0.0
    %900 = vmatprep.subr.mxu0 0.0
    %901 = vmatpush2.msra.mxu0 0.0
    %902 = vmatprep.subr.mxu0 0.0
    %903 = vmatpush2.msra.mxu0 0.0
    %904 = vmatprep.subr.mxu0 0.0
    %905 = vmatpush2.msra.mxu0 0.0
    %906 = vmatprep.subr.mxu0 0.0
    %907 = vmatpush2.msra.mxu0 0.0
    %908 = vmatprep.mubr.f32.mxu0 0.0
    %909 = vmatmul.mubr.f32.gmra.mxu0 %v766
    %v910 = vpop.f32.mrf.mxu0
    %v911 = vadd.f32 0.0, %v910
    %v912 = vpop.f32.mrf.mxu0
    %913 = vdwg.mxu0
    %v914 = vadd.f32 %v770, %v840
    %v915 = vxor.u32 %v914, 2147483648
    %v916 = vmul.f32 %v915, 1.442695
    %v917 = vpow.pop %v916
    %v918 = vadd.f32 %v917, 1.0
    %v919 = vrcp.pop %v918
    %v920 = vmul.f32 1.0, %v919
    %v921 = vadd.f32 %v771, %v842
    %v922 = vxor.u32 %v921, 2147483648
    %v923 = vmul.f32 %v922, 1.442695
    %v924 = vpow.pop %v923
    %v925 = vadd.f32 %v924, 1.0
    %v926 = vrcp.pop %v925
    %v927 = vmul.f32 1.0, %v926
    %v928 = vadd.f32 %v911, %v92
    %v929 = vmul.f32 %v920, %v928
    %v930 = vadd.f32 %v772, %v929
    %v931 = vtanh.pop %v930
    %v932 = vsub.f32 1.0, %v927
    %v933 = vmul.f32 %v932, %v931
    %v934 = vmul.f32 %v927, %v766
    %v935 = vadd.f32 %v933, %v934
    %s936 = scalar_lea.vmem %s6, 32
    %937 = vst [vmem:[%s936] sm:$0xff] %v935
    %s938 = scalar_lea.vmem %s0, 120
    %v939 = vld [vmem:[%s938] sm:$0xff]
    %v940 = vld [vmem:[%s938 + $0x8] sm:$0xff]
    %v941 = vld [vmem:[%s938 + $0x10] sm:$0xff]
    %942 = vmatprep.subr.mxu0 %v85
    %943 = vmatpush1.msra.mxu0 %v84
    %944 = vmatprep.subr.mxu0 %v82
    %945 = vmatpush1.msra.mxu0 %v81
    %946 = vmatprep.subr.mxu0 %v79
    %947 = vmatpush1.msra.mxu0 %v78
    %948 = vmatprep.subr.mxu0 %v76
    %949 = vmatpush1.msra.mxu0 %v75
    %950 = vmatprep.subr.mxu0 %v73
    %951 = vmatpush1.msra.mxu0 %v72
    %952 = vmatprep.subr.mxu0 %v70
    %953 = vmatpush1.msra.mxu0 %v69
    %954 = vmatprep.subr.mxu0 %v67
    %955 = vmatpush1.msra.mxu0 %v66
    %956 = vmatprep.subr.mxu0 %v64
    %957 = vmatpush1.msra.mxu0 %v63
    %958 = vmatprep.subr.mxu0 %v61
    %959 = vmatpush1.msra.mxu0 %v60
    %960 = vmatprep.subr.mxu0 %v58
    %961 = vmatpush1.msra.mxu0 %v57
    %962 = vmatprep.subr.mxu0 %v55
    %963 = vmatpush1.msra.mxu0 %v54
    %964 = vmatprep.subr.mxu0 %v52
    %965 = vmatpush1.msra.mxu0 %v51
    %966 = vmatprep.subr.mxu0 %v49
    %967 = vmatpush1.msra.mxu0 %v48
    %968 = vmatprep.subr.mxu0 %v46
    %969 = vmatpush1.msra.mxu0 %v45
    %970 = vmatprep.subr.mxu0 %v43
    %971 = vmatpush1.msra.mxu0 %v42
    %972 = vmatprep.subr.mxu0 %v40
    %973 = vmatpush1.msra.mxu0 %v39
    %974 = vmatprep.subr.mxu0 0.0
    %975 = vmatpush2.msra.mxu0 0.0
    %976 = vmatprep.subr.mxu0 0.0
    %977 = vmatpush2.msra.mxu0 0.0
    %978 = vmatprep.subr.mxu0 0.0
    %979 = vmatpush2.msra.mxu0 0.0
    %980 = vmatprep.subr.mxu0 0.0
    %981 = vmatpush2.msra.mxu0 0.0
    %982 = vmatprep.subr.mxu0 0.0
    %983 = vmatpush2.msra.mxu0 0.0
    %984 = vmatprep.subr.mxu0 0.0
    %985 = vmatpush2.msra.mxu0 0.0
    %986 = vmatprep.subr.mxu0 0.0
    %987 = vmatpush2.msra.mxu0 0.0
    %988 = vmatprep.subr.mxu0 0.0
    %989 = vmatpush2.msra.mxu0 0.0
    %990 = vmatprep.subr.mxu0 0.0
    %991 = vmatpush2.msra.mxu0 0.0
    %992 = vmatprep.subr.mxu0 0.0
    %993 = vmatpush2.msra.mxu0 0.0
    %994 = vmatprep.subr.mxu0 0.0
    %995 = vmatpush2.msra.mxu0 0.0
    %996 = vmatprep.subr.mxu0 0.0
    %997 = vmatpush2.msra.mxu0 0.0
    %998 = vmatprep.subr.mxu0 0.0
    %999 = vmatpush2.msra.mxu0 0.0
    %1000 = vmatprep.subr.mxu0 0.0
    %1001 = vmatpush2.msra.mxu0 0.0
    %1002 = vmatprep.subr.mxu0 0.0
    %1003 = vmatpush2.msra.mxu0 0.0
    %1004 = vmatprep.subr.mxu0 0.0
    %1005 = vmatpush2.msra.mxu0 0.0
    %1006 = vmatprep.mubr.f32.mxu0 0.0
    %1007 = vmatmul.mubr.f32.gmra.mxu0 %v935
    %v1008 = vpop.f32.mrf.mxu0
    %v1009 = vadd.f32 0.0, %v1008
    %v1010 = vpop.f32.mrf.mxu0
    %v1011 = vadd.f32 0.0, %v1010
    %1012 = vdwg.mxu0
    %1013 = vmatprep.subr.mxu0 0.0
    %1014 = vmatpush1.msra.mxu0 %v86
    %1015 = vmatprep.subr.mxu0 0.0
    %1016 = vmatpush1.msra.mxu0 %v83
    %1017 = vmatprep.subr.mxu0 0.0
    %1018 = vmatpush1.msra.mxu0 %v80
    %1019 = vmatprep.subr.mxu0 0.0
    %1020 = vmatpush1.msra.mxu0 %v77
    %1021 = vmatprep.subr.mxu0 0.0
    %1022 = vmatpush1.msra.mxu0 %v74
    %1023 = vmatprep.subr.mxu0 0.0
    %1024 = vmatpush1.msra.mxu0 %v71
    %1025 = vmatprep.subr.mxu0 0.0
    %1026 = vmatpush1.msra.mxu0 %v68
    %1027 = vmatprep.subr.mxu0 0.0
    %1028 = vmatpush1.msra.mxu0 %v65
    %1029 = vmatprep.subr.mxu0 0.0
    %1030 = vmatpush1.msra.mxu0 %v62
    %1031 = vmatprep.subr.mxu0 0.0
    %1032 = vmatpush1.msra.mxu0 %v59
    %1033 = vmatprep.subr.mxu0 0.0
    %1034 = vmatpush1.msra.mxu0 %v56
    %1035 = vmatprep.subr.mxu0 0.0
    %1036 = vmatpush1.msra.mxu0 %v53
    %1037 = vmatprep.subr.mxu0 0.0
    %1038 = vmatpush1.msra.mxu0 %v50
    %1039 = vmatprep.subr.mxu0 0.0
    %1040 = vmatpush1.msra.mxu0 %v47
    %1041 = vmatprep.subr.mxu0 0.0
    %1042 = vmatpush1.msra.mxu0 %v44
    %1043 = vmatprep.subr.mxu0 0.0
    %1044 = vmatpush1.msra.mxu0 %v41
    %1045 = vmatprep.subr.mxu0 0.0
    %1046 = vmatpush2.msra.mxu0 0.0
    %1047 = vmatprep.subr.mxu0 0.0
    %1048 = vmatpush2.msra.mxu0 0.0
    %1049 = vmatprep.subr.mxu0 0.0
    %1050 = vmatpush2.msra.mxu0 0.0
    %1051 = vmatprep.subr.mxu0 0.0
    %1052 = vmatpush2.msra.mxu0 0.0
    %1053 = vmatprep.subr.mxu0 0.0
    %1054 = vmatpush2.msra.mxu0 0.0
    %1055 = vmatprep.subr.mxu0 0.0
    %1056 = vmatpush2.msra.mxu0 0.0
    %1057 = vmatprep.subr.mxu0 0.0
    %1058 = vmatpush2.msra.mxu0 0.0
    %1059 = vmatprep.subr.mxu0 0.0
    %1060 = vmatpush2.msra.mxu0 0.0
    %1061 = vmatprep.subr.mxu0 0.0
    %1062 = vmatpush2.msra.mxu0 0.0
    %1063 = vmatprep.subr.mxu0 0.0
    %1064 = vmatpush2.msra.mxu0 0.0
    %1065 = vmatprep.subr.mxu0 0.0
    %1066 = vmatpush2.msra.mxu0 0.0
    %1067 = vmatprep.subr.mxu0 0.0
    %1068 = vmatpush2.msra.mxu0 0.0
    %1069 = vmatprep.subr.mxu0 0.0
    %1070 = vmatpush2.msra.mxu0 0.0
    %1071 = vmatprep.subr.mxu0 0.0
    %1072 = vmatpush2.msra.mxu0 0.0
    %1073 = vmatprep.subr.mxu0 0.0
    %1074 = vmatpush2.msra.mxu0 0.0
    %1075 = vmatprep.subr.mxu0 0.0
    %1076 = vmatpush2.msra.mxu0 0.0
    %1077 = vmatprep.mubr.f32.mxu0 0.0
    %1078 = vmatmul.mubr.f32.gmra.mxu0 %v935
    %v1079 = vpop.f32.mrf.mxu0
    %v1080 = vadd.f32 0.0, %v1079
    %v1081 = vpop.f32.mrf.mxu0
    %1082 = vdwg.mxu0
    %v1083 = vadd.f32 %v939, %v1009
    %v1084 = vxor.u32 %v1083, 2147483648
    %v1085 = vmul.f32 %v1084, 1.442695
    %v1086 = vpow.pop %v1085
    %v1087 = vadd.f32 %v1086, 1.0
    %v1088 = vrcp.pop %v1087
    %v1089 = vmul.f32 1.0, %v1088
    %v1090 = vadd.f32 %v940, %v1011
    %v1091 = vxor.u32 %v1090, 2147483648
    %v1092 = vmul.f32 %v1091, 1.442695
    %v1093 = vpow.pop %v1092
    %v1094 = vadd.f32 %v1093, 1.0
    %v1095 = vrcp.pop %v1094
    %v1096 = vmul.f32 1.0, %v1095
    %v1097 = vadd.f32 %v1080, %v92
    %v1098 = vmul.f32 %v1089, %v1097
    %v1099 = vadd.f32 %v941, %v1098
    %v1100 = vtanh.pop %v1099
    %v1101 = vsub.f32 1.0, %v1096
    %v1102 = vmul.f32 %v1101, %v1100
    %v1103 = vmul.f32 %v1096, %v935
    %v1104 = vadd.f32 %v1102, %v1103
    %s1105 = scalar_lea.vmem %s6, 40
    %1106 = vst [vmem:[%s1105] sm:$0xff] %v1104
    %s1107 = scalar_lea.vmem %s0, 144
    %v1108 = vld [vmem:[%s1107] sm:$0xff]
    %v1109 = vld [vmem:[%s1107 + $0x8] sm:$0xff]
    %v1110 = vld [vmem:[%s1107 + $0x10] sm:$0xff]
    %1111 = vmatprep.subr.mxu0 %v85
    %1112 = vmatpush1.msra.mxu0 %v84
    %1113 = vmatprep.subr.mxu0 %v82
    %1114 = vmatpush1.msra.mxu0 %v81
    %1115 = vmatprep.subr.mxu0 %v79
    %1116 = vmatpush1.msra.mxu0 %v78
    %1117 = vmatprep.subr.mxu0 %v76
    %1118 = vmatpush1.msra.mxu0 %v75
    %1119 = vmatprep.subr.mxu0 %v73
    %1120 = vmatpush1.msra.mxu0 %v72
    %1121 = vmatprep.subr.mxu0 %v70
    %1122 = vmatpush1.msra.mxu0 %v69
    %1123 = vmatprep.subr.mxu0 %v67
    %1124 = vmatpush1.msra.mxu0 %v66
    %1125 = vmatprep.subr.mxu0 %v64
    %1126 = vmatpush1.msra.mxu0 %v63
    %1127 = vmatprep.subr.mxu0 %v61
    %1128 = vmatpush1.msra.mxu0 %v60
    %1129 = vmatprep.subr.mxu0 %v58
    %1130 = vmatpush1.msra.mxu0 %v57
    %1131 = vmatprep.subr.mxu0 %v55
    %1132 = vmatpush1.msra.mxu0 %v54
    %1133 = vmatprep.subr.mxu0 %v52
    %1134 = vmatpush1.msra.mxu0 %v51
    %1135 = vmatprep.subr.mxu0 %v49
    %1136 = vmatpush1.msra.mxu0 %v48
    %1137 = vmatprep.subr.mxu0 %v46
    %1138 = vmatpush1.msra.mxu0 %v45
    %1139 = vmatprep.subr.mxu0 %v43
    %1140 = vmatpush1.msra.mxu0 %v42
    %1141 = vmatprep.subr.mxu0 %v40
    %1142 = vmatpush1.msra.mxu0 %v39
    %1143 = vmatprep.subr.mxu0 0.0
    %1144 = vmatpush2.msra.mxu0 0.0
    %1145 = vmatprep.subr.mxu0 0.0
    %1146 = vmatpush2.msra.mxu0 0.0
    %1147 = vmatprep.subr.mxu0 0.0
    %1148 = vmatpush2.msra.mxu0 0.0
    %1149 = vmatprep.subr.mxu0 0.0
    %1150 = vmatpush2.msra.mxu0 0.0
    %1151 = vmatprep.subr.mxu0 0.0
    %1152 = vmatpush2.msra.mxu0 0.0
    %1153 = vmatprep.subr.mxu0 0.0
    %1154 = vmatpush2.msra.mxu0 0.0
    %1155 = vmatprep.subr.mxu0 0.0
    %1156 = vmatpush2.msra.mxu0 0.0
    %1157 = vmatprep.subr.mxu0 0.0
    %1158 = vmatpush2.msra.mxu0 0.0
    %1159 = vmatprep.subr.mxu0 0.0
    %1160 = vmatpush2.msra.mxu0 0.0
    %1161 = vmatprep.subr.mxu0 0.0
    %1162 = vmatpush2.msra.mxu0 0.0
    %1163 = vmatprep.subr.mxu0 0.0
    %1164 = vmatpush2.msra.mxu0 0.0
    %1165 = vmatprep.subr.mxu0 0.0
    %1166 = vmatpush2.msra.mxu0 0.0
    %1167 = vmatprep.subr.mxu0 0.0
    %1168 = vmatpush2.msra.mxu0 0.0
    %1169 = vmatprep.subr.mxu0 0.0
    %1170 = vmatpush2.msra.mxu0 0.0
    %1171 = vmatprep.subr.mxu0 0.0
    %1172 = vmatpush2.msra.mxu0 0.0
    %1173 = vmatprep.subr.mxu0 0.0
    %1174 = vmatpush2.msra.mxu0 0.0
    %1175 = vmatprep.mubr.f32.mxu0 0.0
    %1176 = vmatmul.mubr.f32.gmra.mxu0 %v1104
    %v1177 = vpop.f32.mrf.mxu0
    %v1178 = vadd.f32 0.0, %v1177
    %v1179 = vpop.f32.mrf.mxu0
    %v1180 = vadd.f32 0.0, %v1179
    %1181 = vdwg.mxu0
    %1182 = vmatprep.subr.mxu0 0.0
    %1183 = vmatpush1.msra.mxu0 %v86
    %1184 = vmatprep.subr.mxu0 0.0
    %1185 = vmatpush1.msra.mxu0 %v83
    %1186 = vmatprep.subr.mxu0 0.0
    %1187 = vmatpush1.msra.mxu0 %v80
    %1188 = vmatprep.subr.mxu0 0.0
    %1189 = vmatpush1.msra.mxu0 %v77
    %1190 = vmatprep.subr.mxu0 0.0
    %1191 = vmatpush1.msra.mxu0 %v74
    %1192 = vmatprep.subr.mxu0 0.0
    %1193 = vmatpush1.msra.mxu0 %v71
    %1194 = vmatprep.subr.mxu0 0.0
    %1195 = vmatpush1.msra.mxu0 %v68
    %1196 = vmatprep.subr.mxu0 0.0
    %1197 = vmatpush1.msra.mxu0 %v65
    %1198 = vmatprep.subr.mxu0 0.0
    %1199 = vmatpush1.msra.mxu0 %v62
    %1200 = vmatprep.subr.mxu0 0.0
    %1201 = vmatpush1.msra.mxu0 %v59
    %1202 = vmatprep.subr.mxu0 0.0
    %1203 = vmatpush1.msra.mxu0 %v56
    %1204 = vmatprep.subr.mxu0 0.0
    %1205 = vmatpush1.msra.mxu0 %v53
    %1206 = vmatprep.subr.mxu0 0.0
    %1207 = vmatpush1.msra.mxu0 %v50
    %1208 = vmatprep.subr.mxu0 0.0
    %1209 = vmatpush1.msra.mxu0 %v47
    %1210 = vmatprep.subr.mxu0 0.0
    %1211 = vmatpush1.msra.mxu0 %v44
    %1212 = vmatprep.subr.mxu0 0.0
    %1213 = vmatpush1.msra.mxu0 %v41
    %1214 = vmatprep.subr.mxu0 0.0
    %1215 = vmatpush2.msra.mxu0 0.0
    %1216 = vmatprep.subr.mxu0 0.0
    %1217 = vmatpush2.msra.mxu0 0.0
    %1218 = vmatprep.subr.mxu0 0.0
    %1219 = vmatpush2.msra.mxu0 0.0
    %1220 = vmatprep.subr.mxu0 0.0
    %1221 = vmatpush2.msra.mxu0 0.0
    %1222 = vmatprep.subr.mxu0 0.0
    %1223 = vmatpush2.msra.mxu0 0.0
    %1224 = vmatprep.subr.mxu0 0.0
    %1225 = vmatpush2.msra.mxu0 0.0
    %1226 = vmatprep.subr.mxu0 0.0
    %1227 = vmatpush2.msra.mxu0 0.0
    %1228 = vmatprep.subr.mxu0 0.0
    %1229 = vmatpush2.msra.mxu0 0.0
    %1230 = vmatprep.subr.mxu0 0.0
    %1231 = vmatpush2.msra.mxu0 0.0
    %1232 = vmatprep.subr.mxu0 0.0
    %1233 = vmatpush2.msra.mxu0 0.0
    %1234 = vmatprep.subr.mxu0 0.0
    %1235 = vmatpush2.msra.mxu0 0.0
    %1236 = vmatprep.subr.mxu0 0.0
    %1237 = vmatpush2.msra.mxu0 0.0
    %1238 = vmatprep.subr.mxu0 0.0
    %1239 = vmatpush2.msra.mxu0 0.0
    %1240 = vmatprep.subr.mxu0 0.0
    %1241 = vmatpush2.msra.mxu0 0.0
    %1242 = vmatprep.subr.mxu0 0.0
    %1243 = vmatpush2.msra.mxu0 0.0
    %1244 = vmatprep.subr.mxu0 0.0
    %1245 = vmatpush2.msra.mxu0 0.0
    %1246 = vmatprep.mubr.f32.mxu0 0.0
    %1247 = vmatmul.mubr.f32.gmra.mxu0 %v1104
    %v1248 = vpop.f32.mrf.mxu0
    %v1249 = vadd.f32 0.0, %v1248
    %v1250 = vpop.f32.mrf.mxu0
    %1251 = vdwg.mxu0
    %v1252 = vadd.f32 %v1108, %v1178
    %v1253 = vxor.u32 %v1252, 2147483648
    %v1254 = vmul.f32 %v1253, 1.442695
    %v1255 = vpow.pop %v1254
    %v1256 = vadd.f32 %v1255, 1.0
    %v1257 = vrcp.pop %v1256
    %v1258 = vmul.f32 1.0, %v1257
    %v1259 = vadd.f32 %v1109, %v1180
    %v1260 = vxor.u32 %v1259, 2147483648
    %v1261 = vmul.f32 %v1260, 1.442695
    %v1262 = vpow.pop %v1261
    %v1263 = vadd.f32 %v1262, 1.0
    %v1264 = vrcp.pop %v1263
    %v1265 = vmul.f32 1.0, %v1264
    %v1266 = vadd.f32 %v1249, %v92
    %v1267 = vmul.f32 %v1258, %v1266
    %v1268 = vadd.f32 %v1110, %v1267
    %v1269 = vtanh.pop %v1268
    %v1270 = vsub.f32 1.0, %v1265
    %v1271 = vmul.f32 %v1270, %v1269
    %v1272 = vmul.f32 %v1265, %v1104
    %v1273 = vadd.f32 %v1271, %v1272
    %s1274 = scalar_lea.vmem %s6, 48
    %1275 = vst [vmem:[%s1274] sm:$0xff] %v1273
    %s1276 = scalar_lea.vmem %s0, 168
    %v1277 = vld [vmem:[%s1276] sm:$0xff]
    %v1278 = vld [vmem:[%s1276 + $0x8] sm:$0xff]
    %v1279 = vld [vmem:[%s1276 + $0x10] sm:$0xff]
    %1280 = vmatprep.subr.mxu0 %v85
    %1281 = vmatpush1.msra.mxu0 %v84
    %1282 = vmatprep.subr.mxu0 %v82
    %1283 = vmatpush1.msra.mxu0 %v81
    %1284 = vmatprep.subr.mxu0 %v79
    %1285 = vmatpush1.msra.mxu0 %v78
    %1286 = vmatprep.subr.mxu0 %v76
    %1287 = vmatpush1.msra.mxu0 %v75
    %1288 = vmatprep.subr.mxu0 %v73
    %1289 = vmatpush1.msra.mxu0 %v72
    %1290 = vmatprep.subr.mxu0 %v70
    %1291 = vmatpush1.msra.mxu0 %v69
    %1292 = vmatprep.subr.mxu0 %v67
    %1293 = vmatpush1.msra.mxu0 %v66
    %1294 = vmatprep.subr.mxu0 %v64
    %1295 = vmatpush1.msra.mxu0 %v63
    %1296 = vmatprep.subr.mxu0 %v61
    %1297 = vmatpush1.msra.mxu0 %v60
    %1298 = vmatprep.subr.mxu0 %v58
    %1299 = vmatpush1.msra.mxu0 %v57
    %1300 = vmatprep.subr.mxu0 %v55
    %1301 = vmatpush1.msra.mxu0 %v54
    %1302 = vmatprep.subr.mxu0 %v52
    %1303 = vmatpush1.msra.mxu0 %v51
    %1304 = vmatprep.subr.mxu0 %v49
    %1305 = vmatpush1.msra.mxu0 %v48
    %1306 = vmatprep.subr.mxu0 %v46
    %1307 = vmatpush1.msra.mxu0 %v45
    %1308 = vmatprep.subr.mxu0 %v43
    %1309 = vmatpush1.msra.mxu0 %v42
    %1310 = vmatprep.subr.mxu0 %v40
    %1311 = vmatpush1.msra.mxu0 %v39
    %1312 = vmatprep.subr.mxu0 0.0
    %1313 = vmatpush2.msra.mxu0 0.0
    %1314 = vmatprep.subr.mxu0 0.0
    %1315 = vmatpush2.msra.mxu0 0.0
    %1316 = vmatprep.subr.mxu0 0.0
    %1317 = vmatpush2.msra.mxu0 0.0
    %1318 = vmatprep.subr.mxu0 0.0
    %1319 = vmatpush2.msra.mxu0 0.0
    %1320 = vmatprep.subr.mxu0 0.0
    %1321 = vmatpush2.msra.mxu0 0.0
    %1322 = vmatprep.subr.mxu0 0.0
    %1323 = vmatpush2.msra.mxu0 0.0
    %1324 = vmatprep.subr.mxu0 0.0
    %1325 = vmatpush2.msra.mxu0 0.0
    %1326 = vmatprep.subr.mxu0 0.0
    %1327 = vmatpush2.msra.mxu0 0.0
    %1328 = vmatprep.subr.mxu0 0.0
    %1329 = vmatpush2.msra.mxu0 0.0
    %1330 = vmatprep.subr.mxu0 0.0
    %1331 = vmatpush2.msra.mxu0 0.0
    %1332 = vmatprep.subr.mxu0 0.0
    %1333 = vmatpush2.msra.mxu0 0.0
    %1334 = vmatprep.subr.mxu0 0.0
    %1335 = vmatpush2.msra.mxu0 0.0
    %1336 = vmatprep.subr.mxu0 0.0
    %1337 = vmatpush2.msra.mxu0 0.0
    %1338 = vmatprep.subr.mxu0 0.0
    %1339 = vmatpush2.msra.mxu0 0.0
    %1340 = vmatprep.subr.mxu0 0.0
    %1341 = vmatpush2.msra.mxu0 0.0
    %1342 = vmatprep.subr.mxu0 0.0
    %1343 = vmatpush2.msra.mxu0 0.0
    %1344 = vmatprep.mubr.f32.mxu0 0.0
    %1345 = vmatmul.mubr.f32.gmra.mxu0 %v1273
    %v1346 = vpop.f32.mrf.mxu0
    %v1347 = vadd.f32 0.0, %v1346
    %v1348 = vpop.f32.mrf.mxu0
    %v1349 = vadd.f32 0.0, %v1348
    %1350 = vdwg.mxu0
    %1351 = vmatprep.subr.mxu0 0.0
    %1352 = vmatpush1.msra.mxu0 %v86
    %1353 = vmatprep.subr.mxu0 0.0
    %1354 = vmatpush1.msra.mxu0 %v83
    %1355 = vmatprep.subr.mxu0 0.0
    %1356 = vmatpush1.msra.mxu0 %v80
    %1357 = vmatprep.subr.mxu0 0.0
    %1358 = vmatpush1.msra.mxu0 %v77
    %1359 = vmatprep.subr.mxu0 0.0
    %1360 = vmatpush1.msra.mxu0 %v74
    %1361 = vmatprep.subr.mxu0 0.0
    %1362 = vmatpush1.msra.mxu0 %v71
    %1363 = vmatprep.subr.mxu0 0.0
    %1364 = vmatpush1.msra.mxu0 %v68
    %1365 = vmatprep.subr.mxu0 0.0
    %1366 = vmatpush1.msra.mxu0 %v65
    %1367 = vmatprep.subr.mxu0 0.0
    %1368 = vmatpush1.msra.mxu0 %v62
    %1369 = vmatprep.subr.mxu0 0.0
    %1370 = vmatpush1.msra.mxu0 %v59
    %1371 = vmatprep.subr.mxu0 0.0
    %1372 = vmatpush1.msra.mxu0 %v56
    %1373 = vmatprep.subr.mxu0 0.0
    %1374 = vmatpush1.msra.mxu0 %v53
    %1375 = vmatprep.subr.mxu0 0.0
    %1376 = vmatpush1.msra.mxu0 %v50
    %1377 = vmatprep.subr.mxu0 0.0
    %1378 = vmatpush1.msra.mxu0 %v47
    %1379 = vmatprep.subr.mxu0 0.0
    %1380 = vmatpush1.msra.mxu0 %v44
    %1381 = vmatprep.subr.mxu0 0.0
    %1382 = vmatpush1.msra.mxu0 %v41
    %1383 = vmatprep.subr.mxu0 0.0
    %1384 = vmatpush2.msra.mxu0 0.0
    %1385 = vmatprep.subr.mxu0 0.0
    %1386 = vmatpush2.msra.mxu0 0.0
    %1387 = vmatprep.subr.mxu0 0.0
    %1388 = vmatpush2.msra.mxu0 0.0
    %1389 = vmatprep.subr.mxu0 0.0
    %1390 = vmatpush2.msra.mxu0 0.0
    %1391 = vmatprep.subr.mxu0 0.0
    %1392 = vmatpush2.msra.mxu0 0.0
    %1393 = vmatprep.subr.mxu0 0.0
    %1394 = vmatpush2.msra.mxu0 0.0
    %1395 = vmatprep.subr.mxu0 0.0
    %1396 = vmatpush2.msra.mxu0 0.0
    %1397 = vmatprep.subr.mxu0 0.0
    %1398 = vmatpush2.msra.mxu0 0.0
    %1399 = vmatprep.subr.mxu0 0.0
    %1400 = vmatpush2.msra.mxu0 0.0
    %1401 = vmatprep.subr.mxu0 0.0
    %1402 = vmatpush2.msra.mxu0 0.0
    %1403 = vmatprep.subr.mxu0 0.0
    %1404 = vmatpush2.msra.mxu0 0.0
    %1405 = vmatprep.subr.mxu0 0.0
    %1406 = vmatpush2.msra.mxu0 0.0
    %1407 = vmatprep.subr.mxu0 0.0
    %1408 = vmatpush2.msra.mxu0 0.0
    %1409 = vmatprep.subr.mxu0 0.0
    %1410 = vmatpush2.msra.mxu0 0.0
    %1411 = vmatprep.subr.mxu0 0.0
    %1412 = vmatpush2.msra.mxu0 0.0
    %1413 = vmatprep.subr.mxu0 0.0
    %1414 = vmatpush2.msra.mxu0 0.0
    %1415 = vmatprep.mubr.f32.mxu0 0.0
    %1416 = vmatmul.mubr.f32.gmra.mxu0 %v1273
    %v1417 = vpop.f32.mrf.mxu0
    %v1418 = vadd.f32 0.0, %v1417
    %v1419 = vpop.f32.mrf.mxu0
    %1420 = vdwg.mxu0
    %v1421 = vadd.f32 %v1277, %v1347
    %v1422 = vxor.u32 %v1421, 2147483648
    %v1423 = vmul.f32 %v1422, 1.442695
    %v1424 = vpow.pop %v1423
    %v1425 = vadd.f32 %v1424, 1.0
    %v1426 = vrcp.pop %v1425
    %v1427 = vmul.f32 1.0, %v1426
    %v1428 = vadd.f32 %v1278, %v1349
    %v1429 = vxor.u32 %v1428, 2147483648
    %v1430 = vmul.f32 %v1429, 1.442695
    %v1431 = vpow.pop %v1430
    %v1432 = vadd.f32 %v1431, 1.0
    %v1433 = vrcp.pop %v1432
    %v1434 = vmul.f32 1.0, %v1433
    %v1435 = vadd.f32 %v1418, %v92
    %v1436 = vmul.f32 %v1427, %v1435
    %v1437 = vadd.f32 %v1279, %v1436
    %v1438 = vtanh.pop %v1437
    %v1439 = vsub.f32 1.0, %v1434
    %v1440 = vmul.f32 %v1439, %v1438
    %v1441 = vmul.f32 %v1434, %v1273
    %v1442 = vadd.f32 %v1440, %v1441
    %s1443 = scalar_lea.vmem %s6, 56
    %1444 = vst [vmem:[%s1443] sm:$0xff] %v1442
    %1445 = vst [vmem:[%s7] sm:$0xff] %v1442
    %v1446 = vld [vmem:[%s4] sm:$0xff]
    %v1447 = vld [vmem:[%s4 + $0x8] sm:$0xff]
    %v1448 = vld [vmem:[%s4 + $0x10] sm:$0xff]
    %v1449 = vld [vmem:[%s4 + $0x18] sm:$0xff]
    %v1450 = vld [vmem:[%s4 + $0x20] sm:$0xff]
    %v1451 = vld [vmem:[%s4 + $0x28] sm:$0xff]
    %v1452 = vld [vmem:[%s4 + $0x30] sm:$0xff]
    %v1453 = vld [vmem:[%s4 + $0x38] sm:$0xff]
    %v1454 = vld [vmem:[%s4 + $0x40] sm:$0xff]
    %v1455 = vld [vmem:[%s4 + $0x48] sm:$0xff]
    %v1456 = vld [vmem:[%s4 + $0x50] sm:$0xff]
    %v1457 = vld [vmem:[%s4 + $0x58] sm:$0xff]
    %v1458 = vld [vmem:[%s4 + $0x60] sm:$0xff]
    %v1459 = vld [vmem:[%s4 + $0x68] sm:$0xff]
    %v1460 = vld [vmem:[%s4 + $0x70] sm:$0xff]
    %v1461 = vld [vmem:[%s4 + $0x78] sm:$0xff]
    %v1462 = vld [vmem:[%s4 + $0x80] sm:$0xff]
    %v1463 = vld [vmem:[%s4 + $0x88] sm:$0xff]
    %v1464 = vld [vmem:[%s4 + $0x90] sm:$0xff]
    %v1465 = vld [vmem:[%s4 + $0x98] sm:$0xff]
    %v1466 = vld [vmem:[%s4 + $0xa0] sm:$0xff]
    %v1467 = vld [vmem:[%s4 + $0xa8] sm:$0xff]
    %v1468 = vld [vmem:[%s4 + $0xb0] sm:$0xff]
    %v1469 = vld [vmem:[%s4 + $0xb8] sm:$0xff]
    %v1470 = vld [vmem:[%s4 + $0xc0] sm:$0xff]
    %v1471 = vld [vmem:[%s4 + $0xc8] sm:$0xff]
    %v1472 = vld [vmem:[%s4 + $0xd0] sm:$0xff]
    %v1473 = vld [vmem:[%s4 + $0xd8] sm:$0xff]
    %v1474 = vld [vmem:[%s4 + $0xe0] sm:$0xff]
    %v1475 = vld [vmem:[%s4 + $0xe8] sm:$0xff]
    %v1476 = vld [vmem:[%s4 + $0xf0] sm:$0xff]
    %v1477 = vld [vmem:[%s4 + $0xf8] sm:$0xff]
    %v1478 = vld [vmem:[%s4 + $0x100] sm:$0xff]
    %v1479 = vld [vmem:[%s4 + $0x108] sm:$0xff]
    %v1480 = vld [vmem:[%s4 + $0x110] sm:$0xff]
    %v1481 = vld [vmem:[%s4 + $0x118] sm:$0xff]
    %v1482 = vld [vmem:[%s4 + $0x120] sm:$0xff]
    %v1483 = vld [vmem:[%s4 + $0x128] sm:$0xff]
    %v1484 = vld [vmem:[%s4 + $0x130] sm:$0xff]
    %v1485 = vld [vmem:[%s4 + $0x138] sm:$0xff]
    %v1486 = vld [vmem:[%s4 + $0x140] sm:$0xff]
    %v1487 = vld [vmem:[%s4 + $0x148] sm:$0xff]
    %v1488 = vld [vmem:[%s4 + $0x150] sm:$0xff]
    %v1489 = vld [vmem:[%s4 + $0x158] sm:$0xff]
    %v1490 = vld [vmem:[%s4 + $0x160] sm:$0xff]
    %v1491 = vld [vmem:[%s4 + $0x168] sm:$0xff]
    %v1492 = vld [vmem:[%s4 + $0x170] sm:$0xff]
    %v1493 = vld [vmem:[%s4 + $0x178] sm:$0xff]
    %v1494 = vld [vmem:[%s6] sm:$0xff]
    %v1495 = vld [vmem:[%s6 + $0x8] sm:$0xff]
    %v1496 = vld [vmem:[%s6 + $0x10] sm:$0xff]
    %v1497 = vld [vmem:[%s6 + $0x18] sm:$0xff]
    %v1498 = vld [vmem:[%s6 + $0x20] sm:$0xff]
    %v1499 = vld [vmem:[%s6 + $0x28] sm:$0xff]
    %v1500 = vld [vmem:[%s6 + $0x30] sm:$0xff]
    %v1501 = vld [vmem:[%s6 + $0x38] sm:$0xff]
    %v1502 = vld [vmem:[%s5] sm:$0x7]
    %v1504 = vlaneseq
    %v1505 = vshrl.u32 %v1504, 7
    %v1506 = vsub.s32 0, %v1505
    %v1507 = vrot.slane %v1502, %v1506
    %v1508 = vlaneseq
    %v1509 = vshrl.u32 %v1508, 7
    %v1510 = vsub.s32 1, %v1509
    %v1511 = vrot.slane %v1502, %v1510
    %v1512 = vlaneseq
    %v1513 = vshrl.u32 %v1512, 7
    %v1514 = vsub.s32 2, %v1513
    %v1515 = vrot.slane %v1502, %v1514
    %1519 = vmatprep.subr.mxu0 %v1492
    %1520 = vmatpush1.msra.mxu0 %v1491
    %1521 = vmatprep.subr.mxu0 %v1489
    %1522 = vmatpush1.msra.mxu0 %v1488
    %1523 = vmatprep.subr.mxu0 %v1486
    %1524 = vmatpush1.msra.mxu0 %v1485
    %1525 = vmatprep.subr.mxu0 %v1483
    %1526 = vmatpush1.msra.mxu0 %v1482
    %1527 = vmatprep.subr.mxu0 %v1480
    %1528 = vmatpush1.msra.mxu0 %v1479
    %1529 = vmatprep.subr.mxu0 %v1477
    %1530 = vmatpush1.msra.mxu0 %v1476
    %1531 = vmatprep.subr.mxu0 %v1474
    %1532 = vmatpush1.msra.mxu0 %v1473
    %1533 = vmatprep.subr.mxu0 %v1471
    %1534 = vmatpush1.msra.mxu0 %v1470
    %1535 = vmatprep.subr.mxu0 %v1468
    %1536 = vmatpush1.msra.mxu0 %v1467
    %1537 = vmatprep.subr.mxu0 %v1465
    %1538 = vmatpush1.msra.mxu0 %v1464
    %1539 = vmatprep.subr.mxu0 %v1462
    %1540 = vmatpush1.msra.mxu0 %v1461
    %1541 = vmatprep.subr.mxu0 %v1459
    %1542 = vmatpush1.msra.mxu0 %v1458
    %1543 = vmatprep.subr.mxu0 %v1456
    %1544 = vmatpush1.msra.mxu0 %v1455
    %1545 = vmatprep.subr.mxu0 %v1453
    %1546 = vmatpush1.msra.mxu0 %v1452
    %1547 = vmatprep.subr.mxu0 %v1450
    %1548 = vmatpush1.msra.mxu0 %v1449
    %1549 = vmatprep.subr.mxu0 %v1447
    %1550 = vmatpush1.msra.mxu0 %v1446
    %1551 = vmatprep.subr.mxu0 0.0
    %1552 = vmatpush2.msra.mxu0 0.0
    %1553 = vmatprep.subr.mxu0 0.0
    %1554 = vmatpush2.msra.mxu0 0.0
    %1555 = vmatprep.subr.mxu0 0.0
    %1556 = vmatpush2.msra.mxu0 0.0
    %1557 = vmatprep.subr.mxu0 0.0
    %1558 = vmatpush2.msra.mxu0 0.0
    %1559 = vmatprep.subr.mxu0 0.0
    %1560 = vmatpush2.msra.mxu0 0.0
    %1561 = vmatprep.subr.mxu0 0.0
    %1562 = vmatpush2.msra.mxu0 0.0
    %1563 = vmatprep.subr.mxu0 0.0
    %1564 = vmatpush2.msra.mxu0 0.0
    %1565 = vmatprep.subr.mxu0 0.0
    %1566 = vmatpush2.msra.mxu0 0.0
    %1567 = vmatprep.subr.mxu0 0.0
    %1568 = vmatpush2.msra.mxu0 0.0
    %1569 = vmatprep.subr.mxu0 0.0
    %1570 = vmatpush2.msra.mxu0 0.0
    %1571 = vmatprep.subr.mxu0 0.0
    %1572 = vmatpush2.msra.mxu0 0.0
    %1573 = vmatprep.subr.mxu0 0.0
    %1574 = vmatpush2.msra.mxu0 0.0
    %1575 = vmatprep.subr.mxu0 0.0
    %1576 = vmatpush2.msra.mxu0 0.0
    %1577 = vmatprep.subr.mxu0 0.0
    %1578 = vmatpush2.msra.mxu0 0.0
    %1579 = vmatprep.subr.mxu0 0.0
    %1580 = vmatpush2.msra.mxu0 0.0
    %1581 = vmatprep.subr.mxu0 0.0
    %1582 = vmatpush2.msra.mxu0 0.0
    %1583 = vmatprep.mubr.f32.mxu0 0.0
    %1584 = vmatmul.mubr.f32.gmra.mxu0 %v1494
    %v1585 = vpop.f32.mrf.mxu0
    %v1586 = vadd.f32 %v1507, %v1585
    %v1587 = vpop.f32.mrf.mxu0
    %v1588 = vadd.f32 %v1511, %v1587
    %1589 = vmatprep.mubr.f32.mxu0 0.0
    %1590 = vmatmul.mubr.f32.gmra.mxu0 %v1495
    %v1591 = vpop.f32.mrf.mxu0
    %v1592 = vadd.f32 %v1507, %v1591
    %v1593 = vpop.f32.mrf.mxu0
    %v1594 = vadd.f32 %v1511, %v1593
    %1595 = vmatprep.mubr.f32.mxu0 0.0
    %1596 = vmatmul.mubr.f32.gmra.mxu0 %v1496
    %v1597 = vpop.f32.mrf.mxu0
    %v1598 = vadd.f32 %v1507, %v1597
    %v1599 = vpop.f32.mrf.mxu0
    %v1600 = vadd.f32 %v1511, %v1599
    %1601 = vmatprep.mubr.f32.mxu0 0.0
    %1602 = vmatmul.mubr.f32.gmra.mxu0 %v1497
    %v1603 = vpop.f32.mrf.mxu0
    %v1604 = vadd.f32 %v1507, %v1603
    %v1605 = vpop.f32.mrf.mxu0
    %v1606 = vadd.f32 %v1511, %v1605
    %1607 = vmatprep.mubr.f32.mxu0 0.0
    %1608 = vmatmul.mubr.f32.gmra.mxu0 %v1498
    %v1609 = vpop.f32.mrf.mxu0
    %v1610 = vadd.f32 %v1507, %v1609
    %v1611 = vpop.f32.mrf.mxu0
    %v1612 = vadd.f32 %v1511, %v1611
    %1613 = vmatprep.mubr.f32.mxu0 0.0
    %1614 = vmatmul.mubr.f32.gmra.mxu0 %v1499
    %v1615 = vpop.f32.mrf.mxu0
    %v1616 = vadd.f32 %v1507, %v1615
    %v1617 = vpop.f32.mrf.mxu0
    %v1618 = vadd.f32 %v1511, %v1617
    %1619 = vmatprep.mubr.f32.mxu0 0.0
    %1620 = vmatmul.mubr.f32.gmra.mxu0 %v1500
    %v1621 = vpop.f32.mrf.mxu0
    %v1622 = vadd.f32 %v1507, %v1621
    %v1623 = vpop.f32.mrf.mxu0
    %v1624 = vadd.f32 %v1511, %v1623
    %1625 = vmatprep.mubr.f32.mxu0 0.0
    %1626 = vmatmul.mubr.f32.gmra.mxu0 %v1501
    %v1627 = vpop.f32.mrf.mxu0
    %v1628 = vadd.f32 %v1507, %v1627
    %v1629 = vpop.f32.mrf.mxu0
    %v1630 = vadd.f32 %v1511, %v1629
    %1631 = vdwg.mxu0
    %1632 = vmatprep.subr.mxu0 0.0
    %1633 = vmatpush1.msra.mxu0 %v1493
    %1634 = vmatprep.subr.mxu0 0.0
    %1635 = vmatpush1.msra.mxu0 %v1490
    %1636 = vmatprep.subr.mxu0 0.0
    %1637 = vmatpush1.msra.mxu0 %v1487
    %1638 = vmatprep.subr.mxu0 0.0
    %1639 = vmatpush1.msra.mxu0 %v1484
    %1640 = vmatprep.subr.mxu0 0.0
    %1641 = vmatpush1.msra.mxu0 %v1481
    %1642 = vmatprep.subr.mxu0 0.0
    %1643 = vmatpush1.msra.mxu0 %v1478
    %1644 = vmatprep.subr.mxu0 0.0
    %1645 = vmatpush1.msra.mxu0 %v1475
    %1646 = vmatprep.subr.mxu0 0.0
    %1647 = vmatpush1.msra.mxu0 %v1472
    %1648 = vmatprep.subr.mxu0 0.0
    %1649 = vmatpush1.msra.mxu0 %v1469
    %1650 = vmatprep.subr.mxu0 0.0
    %1651 = vmatpush1.msra.mxu0 %v1466
    %1652 = vmatprep.subr.mxu0 0.0
    %1653 = vmatpush1.msra.mxu0 %v1463
    %1654 = vmatprep.subr.mxu0 0.0
    %1655 = vmatpush1.msra.mxu0 %v1460
    %1656 = vmatprep.subr.mxu0 0.0
    %1657 = vmatpush1.msra.mxu0 %v1457
    %1658 = vmatprep.subr.mxu0 0.0
    %1659 = vmatpush1.msra.mxu0 %v1454
    %1660 = vmatprep.subr.mxu0 0.0
    %1661 = vmatpush1.msra.mxu0 %v1451
    %1662 = vmatprep.subr.mxu0 0.0
    %1663 = vmatpush1.msra.mxu0 %v1448
    %1664 = vmatprep.subr.mxu0 0.0
    %1665 = vmatpush2.msra.mxu0 0.0
    %1666 = vmatprep.subr.mxu0 0.0
    %1667 = vmatpush2.msra.mxu0 0.0
    %1668 = vmatprep.subr.mxu0 0.0
    %1669 = vmatpush2.msra.mxu0 0.0
    %1670 = vmatprep.subr.mxu0 0.0
    %1671 = vmatpush2.msra.mxu0 0.0
    %1672 = vmatprep.subr.mxu0 0.0
    %1673 = vmatpush2.msra.mxu0 0.0
    %1674 = vmatprep.subr.mxu0 0.0
    %1675 = vmatpush2.msra.mxu0 0.0
    %1676 = vmatprep.subr.mxu0 0.0
    %1677 = vmatpush2.msra.mxu0 0.0
    %1678 = vmatprep.subr.mxu0 0.0
    %1679 = vmatpush2.msra.mxu0 0.0
    %1680 = vmatprep.subr.mxu0 0.0
    %1681 = vmatpush2.msra.mxu0 0.0
    %1682 = vmatprep.subr.mxu0 0.0
    %1683 = vmatpush2.msra.mxu0 0.0
    %1684 = vmatprep.subr.mxu0 0.0
    %1685 = vmatpush2.msra.mxu0 0.0
    %1686 = vmatprep.subr.mxu0 0.0
    %1687 = vmatpush2.msra.mxu0 0.0
    %1688 = vmatprep.subr.mxu0 0.0
    %1689 = vmatpush2.msra.mxu0 0.0
    %1690 = vmatprep.subr.mxu0 0.0
    %1691 = vmatpush2.msra.mxu0 0.0
    %1692 = vmatprep.subr.mxu0 0.0
    %1693 = vmatpush2.msra.mxu0 0.0
    %1694 = vmatprep.subr.mxu0 0.0
    %1695 = vmatpush2.msra.mxu0 0.0
    %1696 = vmatprep.mubr.f32.mxu0 0.0
    %1697 = vmatmul.mubr.f32.gmra.mxu0 %v1494
    %v1698 = vpop.f32.mrf.mxu0
    %v1699 = vadd.f32 %v1515, %v1698
    %v1700 = vpop.f32.mrf.mxu0
    %1701 = vmatprep.mubr.f32.mxu0 0.0
    %1702 = vmatmul.mubr.f32.gmra.mxu0 %v1495
    %v1703 = vpop.f32.mrf.mxu0
    %v1704 = vadd.f32 %v1515, %v1703
    %v1705 = vpop.f32.mrf.mxu0
    %1706 = vmatprep.mubr.f32.mxu0 0.0
    %1707 = vmatmul.mubr.f32.gmra.mxu0 %v1496
    %v1708 = vpop.f32.mrf.mxu0
    %v1709 = vadd.f32 %v1515, %v1708
    %v1710 = vpop.f32.mrf.mxu0
    %1711 = vmatprep.mubr.f32.mxu0 0.0
    %1712 = vmatmul.mubr.f32.gmra.mxu0 %v1497
    %v1713 = vpop.f32.mrf.mxu0
    %v1714 = vadd.f32 %v1515, %v1713
    %v1715 = vpop.f32.mrf.mxu0
    %1716 = vmatprep.mubr.f32.mxu0 0.0
    %1717 = vmatmul.mubr.f32.gmra.mxu0 %v1498
    %v1718 = vpop.f32.mrf.mxu0
    %v1719 = vadd.f32 %v1515, %v1718
    %v1720 = vpop.f32.mrf.mxu0
    %1721 = vmatprep.mubr.f32.mxu0 0.0
    %1722 = vmatmul.mubr.f32.gmra.mxu0 %v1499
    %v1723 = vpop.f32.mrf.mxu0
    %v1724 = vadd.f32 %v1515, %v1723
    %v1725 = vpop.f32.mrf.mxu0
    %1726 = vmatprep.mubr.f32.mxu0 0.0
    %1727 = vmatmul.mubr.f32.gmra.mxu0 %v1500
    %v1728 = vpop.f32.mrf.mxu0
    %v1729 = vadd.f32 %v1515, %v1728
    %v1730 = vpop.f32.mrf.mxu0
    %1731 = vmatprep.mubr.f32.mxu0 0.0
    %1732 = vmatmul.mubr.f32.gmra.mxu0 %v1501
    %v1733 = vpop.f32.mrf.mxu0
    %v1734 = vadd.f32 %v1515, %v1733
    %v1735 = vpop.f32.mrf.mxu0
    %1736 = vdwg.mxu0
    %1737 = vst [vmem:[#allocation2] sm:$0xff] %v1586
    %1738 = vst [vmem:[#allocation2 + $0x8] sm:$0xff] %v1588
    %1739 = vst [vmem:[#allocation2 + $0x10] sm:$0xff] %v1699
    %1740 = vst [vmem:[#allocation2 + $0x18] sm:$0xff] %v1592
    %1741 = vst [vmem:[#allocation2 + $0x20] sm:$0xff] %v1594
    %1742 = vst [vmem:[#allocation2 + $0x28] sm:$0xff] %v1704
    %1743 = vst [vmem:[#allocation2 + $0x30] sm:$0xff] %v1598
    %1744 = vst [vmem:[#allocation2 + $0x38] sm:$0xff] %v1600
    %1745 = vst [vmem:[#allocation2 + $0x40] sm:$0xff] %v1709
    %1746 = vst [vmem:[#allocation2 + $0x48] sm:$0xff] %v1604
    %1747 = vst [vmem:[#allocation2 + $0x50] sm:$0xff] %v1606
    %1748 = vst [vmem:[#allocation2 + $0x58] sm:$0xff] %v1714
    %1749 = vst [vmem:[#allocation2 + $0x60] sm:$0xff] %v1610
    %1750 = vst [vmem:[#allocation2 + $0x68] sm:$0xff] %v1612
    %1751 = vst [vmem:[#allocation2 + $0x70] sm:$0xff] %v1719
    %1752 = vst [vmem:[#allocation2 + $0x78] sm:$0xff] %v1616
    %1753 = vst [vmem:[#allocation2 + $0x80] sm:$0xff] %v1618
    %1754 = vst [vmem:[#allocation2 + $0x88] sm:$0xff] %v1724
    %1755 = vst [vmem:[#allocation2 + $0x90] sm:$0xff] %v1622
    %1756 = vst [vmem:[#allocation2 + $0x98] sm:$0xff] %v1624
    %1757 = vst [vmem:[#allocation2 + $0xa0] sm:$0xff] %v1729
    %1758 = vst [vmem:[#allocation2 + $0xa8] sm:$0xff] %v1628
    %1759 = vst [vmem:[#allocation2 + $0xb0] sm:$0xff] %v1630
    %1760 = vst [vmem:[#allocation2 + $0xb8] sm:$0xff] %v1734
    %s1761 = scalar_lea.vmem [#allocation3], 384
    %v1762 = vld [vmem:[%s1761] sm:$0xff]
    %v1763 = vld [vmem:[%s1761 + $0x8] sm:$0xff]
    %v1764 = vld [vmem:[%s1761 + $0x10] sm:$0xff]
    %v1765 = vld [vmem:[%s1761 + $0x18] sm:$0xff]
    %v1766 = vld [vmem:[%s1761 + $0x20] sm:$0xff]
    %v1767 = vld [vmem:[%s1761 + $0x28] sm:$0xff]
    %v1768 = vld [vmem:[%s1761 + $0x30] sm:$0xff]
    %v1769 = vld [vmem:[%s1761 + $0x38] sm:$0xff]
    %v1770 = vld [vmem:[%s1761 + $0x40] sm:$0xff]
    %v1771 = vld [vmem:[%s1761 + $0x48] sm:$0xff]
    %v1772 = vld [vmem:[%s1761 + $0x50] sm:$0xff]
    %v1773 = vld [vmem:[%s1761 + $0x58] sm:$0xff]
    %v1774 = vld [vmem:[%s1761 + $0x60] sm:$0xff]
    %v1775 = vld [vmem:[%s1761 + $0x68] sm:$0xff]
    %v1776 = vld [vmem:[%s1761 + $0x70] sm:$0xff]
    %v1777 = vld [vmem:[%s1761 + $0x78] sm:$0xff]
    %v1778 = vld [vmem:[%s1761 + $0x80] sm:$0xff]
    %v1779 = vld [vmem:[%s1761 + $0x88] sm:$0xff]
    %v1780 = vld [vmem:[%s1761 + $0x90] sm:$0xff]
    %v1781 = vld [vmem:[%s1761 + $0x98] sm:$0xff]
    %v1782 = vld [vmem:[%s1761 + $0xa0] sm:$0xff]
    %v1783 = vld [vmem:[%s1761 + $0xa8] sm:$0xff]
    %v1784 = vld [vmem:[%s1761 + $0xb0] sm:$0xff]
    %v1785 = vld [vmem:[%s1761 + $0xb8] sm:$0xff]
    %v1786 = vld [vmem:[%s1761 + $0xc0] sm:$0xff]
    %v1787 = vld [vmem:[%s1761 + $0xc8] sm:$0xff]
    %v1788 = vld [vmem:[%s1761 + $0xd0] sm:$0xff]
    %v1789 = vld [vmem:[%s1761 + $0xd8] sm:$0xff]
    %v1790 = vld [vmem:[%s1761 + $0xe0] sm:$0xff]
    %v1791 = vld [vmem:[%s1761 + $0xe8] sm:$0xff]
    %v1792 = vld [vmem:[%s1761 + $0xf0] sm:$0xff]
    %v1793 = vld [vmem:[%s1761 + $0xf8] sm:$0xff]
    %v1794 = vld [vmem:[%s1761 + $0x100] sm:$0xff]
    %v1795 = vld [vmem:[%s1761 + $0x108] sm:$0xff]
    %v1796 = vld [vmem:[%s1761 + $0x110] sm:$0xff]
    %v1797 = vld [vmem:[%s1761 + $0x118] sm:$0xff]
    %v1798 = vld [vmem:[%s1761 + $0x120] sm:$0xff]
    %v1799 = vld [vmem:[%s1761 + $0x128] sm:$0xff]
    %v1800 = vld [vmem:[%s1761 + $0x130] sm:$0xff]
    %v1801 = vld [vmem:[%s1761 + $0x138] sm:$0xff]
    %v1802 = vld [vmem:[%s1761 + $0x140] sm:$0xff]
    %v1803 = vld [vmem:[%s1761 + $0x148] sm:$0xff]
    %v1804 = vld [vmem:[%s1761 + $0x150] sm:$0xff]
    %v1805 = vld [vmem:[%s1761 + $0x158] sm:$0xff]
    %v1806 = vld [vmem:[%s1761 + $0x160] sm:$0xff]
    %v1807 = vld [vmem:[%s1761 + $0x168] sm:$0xff]
    %v1808 = vld [vmem:[%s1761 + $0x170] sm:$0xff]
    %v1809 = vld [vmem:[%s1761 + $0x178] sm:$0xff]
    %s1810 = scalar_lea.vmem %s3, 1
    %v1811 = vld [vmem:[%s1810] sm:$0x1]
    %v1813 = vlaneseq
    %v1814 = vshrl.u32 %v1813, 7
    %v1815 = vsub.s32 0, %v1814
    %v1816 = vrot.slane %v1811, %v1815
    %s1818 = scalar_lea.vmem %s1, 8
    %v1819 = vld [vmem:[%s1818] sm:$0xff]
    %v1820 = vld [vmem:[#allocation2] sm:$0xff]
    %v1821 = vld [vmem:[#allocation2 + $0x8] sm:$0xff]
    %v1822 = vld [vmem:[#allocation2 + $0x10] sm:$0xff]
    %1823 = vmatprep.subr.mxu0 %v1808
    %1824 = vmatpush1.msra.mxu0 %v1807
    %1825 = vmatprep.subr.mxu0 %v1805
    %1826 = vmatpush1.msra.mxu0 %v1804
    %1827 = vmatprep.subr.mxu0 %v1802
    %1828 = vmatpush1.msra.mxu0 %v1801
    %1829 = vmatprep.subr.mxu0 %v1799
    %1830 = vmatpush1.msra.mxu0 %v1798
    %1831 = vmatprep.subr.mxu0 %v1796
    %1832 = vmatpush1.msra.mxu0 %v1795
    %1833 = vmatprep.subr.mxu0 %v1793
    %1834 = vmatpush1.msra.mxu0 %v1792
    %1835 = vmatprep.subr.mxu0 %v1790
    %1836 = vmatpush1.msra.mxu0 %v1789
    %1837 = vmatprep.subr.mxu0 %v1787
    %1838 = vmatpush1.msra.mxu0 %v1786
    %1839 = vmatprep.subr.mxu0 %v1784
    %1840 = vmatpush1.msra.mxu0 %v1783
    %1841 = vmatprep.subr.mxu0 %v1781
    %1842 = vmatpush1.msra.mxu0 %v1780
    %1843 = vmatprep.subr.mxu0 %v1778
    %1844 = vmatpush1.msra.mxu0 %v1777
    %1845 = vmatprep.subr.mxu0 %v1775
    %1846 = vmatpush1.msra.mxu0 %v1774
    %1847 = vmatprep.subr.mxu0 %v1772
    %1848 = vmatpush1.msra.mxu0 %v1771
    %1849 = vmatprep.subr.mxu0 %v1769
    %1850 = vmatpush1.msra.mxu0 %v1768
    %1851 = vmatprep.subr.mxu0 %v1766
    %1852 = vmatpush1.msra.mxu0 %v1765
    %1853 = vmatprep.subr.mxu0 %v1763
    %1854 = vmatpush1.msra.mxu0 %v1762
    %1855 = vmatprep.subr.mxu0 0.0
    %1856 = vmatpush2.msra.mxu0 0.0
    %1857 = vmatprep.subr.mxu0 0.0
    %1858 = vmatpush2.msra.mxu0 0.0
    %1859 = vmatprep.subr.mxu0 0.0
    %1860 = vmatpush2.msra.mxu0 0.0
    %1861 = vmatprep.subr.mxu0 0.0
    %1862 = vmatpush2.msra.mxu0 0.0
    %1863 = vmatprep.subr.mxu0 0.0
    %1864 = vmatpush2.msra.mxu0 0.0
    %1865 = vmatprep.subr.mxu0 0.0
    %1866 = vmatpush2.msra.mxu0 0.0
    %1867 = vmatprep.subr.mxu0 0.0
    %1868 = vmatpush2.msra.mxu0 0.0
    %1869 = vmatprep.subr.mxu0 0.0
    %1870 = vmatpush2.msra.mxu0 0.0
    %1871 = vmatprep.subr.mxu0 0.0
    %1872 = vmatpush2.msra.mxu0 0.0
    %1873 = vmatprep.subr.mxu0 0.0
    %1874 = vmatpush2.msra.mxu0 0.0
    %1875 = vmatprep.subr.mxu0 0.0
    %1876 = vmatpush2.msra.mxu0 0.0
    %1877 = vmatprep.subr.mxu0 0.0
    %1878 = vmatpush2.msra.mxu0 0.0
    %1879 = vmatprep.subr.mxu0 0.0
    %1880 = vmatpush2.msra.mxu0 0.0
    %1881 = vmatprep.subr.mxu0 0.0
    %1882 = vmatpush2.msra.mxu0 0.0
    %1883 = vmatprep.subr.mxu0 0.0
    %1884 = vmatpush2.msra.mxu0 0.0
    %1885 = vmatprep.subr.mxu0 0.0
    %1886 = vmatpush2.msra.mxu0 0.0
    %1887 = vmatprep.mubr.f32.mxu0 0.0
    %1888 = vmatmul.mubr.f32.gmra.mxu0 %v1819
    %v1889 = vpop.f32.mrf.mxu0
    %v1890 = vadd.f32 0.0, %v1889
    %v1891 = vpop.f32.mrf.mxu0
    %v1892 = vadd.f32 0.0, %v1891
    %1893 = vdwg.mxu0
    %1894 = vmatprep.subr.mxu0 0.0
    %1895 = vmatpush1.msra.mxu0 %v1809
    %1896 = vmatprep.subr.mxu0 0.0
    %1897 = vmatpush1.msra.mxu0 %v1806
    %1898 = vmatprep.subr.mxu0 0.0
    %1899 = vmatpush1.msra.mxu0 %v1803
    %1900 = vmatprep.subr.mxu0 0.0
    %1901 = vmatpush1.msra.mxu0 %v1800
    %1902 = vmatprep.subr.mxu0 0.0
    %1903 = vmatpush1.msra.mxu0 %v1797
    %1904 = vmatprep.subr.mxu0 0.0
    %1905 = vmatpush1.msra.mxu0 %v1794
    %1906 = vmatprep.subr.mxu0 0.0
    %1907 = vmatpush1.msra.mxu0 %v1791
    %1908 = vmatprep.subr.mxu0 0.0
    %1909 = vmatpush1.msra.mxu0 %v1788
    %1910 = vmatprep.subr.mxu0 0.0
    %1911 = vmatpush1.msra.mxu0 %v1785
    %1912 = vmatprep.subr.mxu0 0.0
    %1913 = vmatpush1.msra.mxu0 %v1782
    %1914 = vmatprep.subr.mxu0 0.0
    %1915 = vmatpush1.msra.mxu0 %v1779
    %1916 = vmatprep.subr.mxu0 0.0
    %1917 = vmatpush1.msra.mxu0 %v1776
    %1918 = vmatprep.subr.mxu0 0.0
    %1919 = vmatpush1.msra.mxu0 %v1773
    %1920 = vmatprep.subr.mxu0 0.0
    %1921 = vmatpush1.msra.mxu0 %v1770
    %1922 = vmatprep.subr.mxu0 0.0
    %1923 = vmatpush1.msra.mxu0 %v1767
    %1924 = vmatprep.subr.mxu0 0.0
    %1925 = vmatpush1.msra.mxu0 %v1764
    %1926 = vmatprep.subr.mxu0 0.0
    %1927 = vmatpush2.msra.mxu0 0.0
    %1928 = vmatprep.subr.mxu0 0.0
    %1929 = vmatpush2.msra.mxu0 0.0
    %1930 = vmatprep.subr.mxu0 0.0
    %1931 = vmatpush2.msra.mxu0 0.0
    %1932 = vmatprep.subr.mxu0 0.0
    %1933 = vmatpush2.msra.mxu0 0.0
    %1934 = vmatprep.subr.mxu0 0.0
    %1935 = vmatpush2.msra.mxu0 0.0
    %1936 = vmatprep.subr.mxu0 0.0
    %1937 = vmatpush2.msra.mxu0 0.0
    %1938 = vmatprep.subr.mxu0 0.0
    %1939 = vmatpush2.msra.mxu0 0.0
    %1940 = vmatprep.subr.mxu0 0.0
    %1941 = vmatpush2.msra.mxu0 0.0
    %1942 = vmatprep.subr.mxu0 0.0
    %1943 = vmatpush2.msra.mxu0 0.0
    %1944 = vmatprep.subr.mxu0 0.0
    %1945 = vmatpush2.msra.mxu0 0.0
    %1946 = vmatprep.subr.mxu0 0.0
    %1947 = vmatpush2.msra.mxu0 0.0
    %1948 = vmatprep.subr.mxu0 0.0
    %1949 = vmatpush2.msra.mxu0 0.0
    %1950 = vmatprep.subr.mxu0 0.0
    %1951 = vmatpush2.msra.mxu0 0.0
    %1952 = vmatprep.subr.mxu0 0.0
    %1953 = vmatpush2.msra.mxu0 0.0
    %1954 = vmatprep.subr.mxu0 0.0
    %1955 = vmatpush2.msra.mxu0 0.0
    %1956 = vmatprep.subr.mxu0 0.0
    %1957 = vmatpush2.msra.mxu0 0.0
    %1958 = vmatprep.mubr.f32.mxu0 0.0
    %1959 = vmatmul.mubr.f32.gmra.mxu0 %v1819
    %v1960 = vpop.f32.mrf.mxu0
    %v1961 = vadd.f32 0.0, %v1960
    %v1962 = vpop.f32.mrf.mxu0
    %1963 = vdwg.mxu0
    %v1964 = vadd.f32 %v1820, %v1890
    %v1965 = vxor.u32 %v1964, 2147483648
    %v1966 = vmul.f32 %v1965, 1.442695
    %v1967 = vpow.pop %v1966
    %v1968 = vadd.f32 %v1967, 1.0
    %v1969 = vrcp.pop %v1968
    %v1970 = vmul.f32 1.0, %v1969
    %v1971 = vadd.f32 %v1821, %v1892
    %v1972 = vxor.u32 %v1971, 2147483648
    %v1973 = vmul.f32 %v1972, 1.442695
    %v1974 = vpow.pop %v1973
    %v1975 = vadd.f32 %v1974, 1.0
    %v1976 = vrcp.pop %v1975
    %v1977 = vmul.f32 1.0, %v1976
    %v1978 = vadd.f32 %v1961, %v1816
    %v1979 = vmul.f32 %v1970, %v1978
    %v1980 = vadd.f32 %v1822, %v1979
    %v1981 = vtanh.pop %v1980
    %v1982 = vsub.f32 1.0, %v1977
    %v1983 = vmul.f32 %v1982, %v1981
    %v1984 = vmul.f32 %v1977, %v1819
    %v1985 = vadd.f32 %v1983, %v1984
    %1986 = vst [vmem:[%s6] sm:$0xff] %v1985
    %s1987 = scalar_lea.vmem [#allocation2], 24
    %v1988 = vld [vmem:[%s1987] sm:$0xff]
    %v1989 = vld [vmem:[%s1987 + $0x8] sm:$0xff]
    %v1990 = vld [vmem:[%s1987 + $0x10] sm:$0xff]
    %1991 = vmatprep.subr.mxu0 %v1808
    %1992 = vmatpush1.msra.mxu0 %v1807
    %1993 = vmatprep.subr.mxu0 %v1805
    %1994 = vmatpush1.msra.mxu0 %v1804
    %1995 = vmatprep.subr.mxu0 %v1802
    %1996 = vmatpush1.msra.mxu0 %v1801
    %1997 = vmatprep.subr.mxu0 %v1799
    %1998 = vmatpush1.msra.mxu0 %v1798
    %1999 = vmatprep.subr.mxu0 %v1796
    %2000 = vmatpush1.msra.mxu0 %v1795
    %2001 = vmatprep.subr.mxu0 %v1793
    %2002 = vmatpush1.msra.mxu0 %v1792
    %2003 = vmatprep.subr.mxu0 %v1790
    %2004 = vmatpush1.msra.mxu0 %v1789
    %2005 = vmatprep.subr.mxu0 %v1787
    %2006 = vmatpush1.msra.mxu0 %v1786
    %2007 = vmatprep.subr.mxu0 %v1784
    %2008 = vmatpush1.msra.mxu0 %v1783
    %2009 = vmatprep.subr.mxu0 %v1781
    %2010 = vmatpush1.msra.mxu0 %v1780
    %2011 = vmatprep.subr.mxu0 %v1778
    %2012 = vmatpush1.msra.mxu0 %v1777
    %2013 = vmatprep.subr.mxu0 %v1775
    %2014 = vmatpush1.msra.mxu0 %v1774
    %2015 = vmatprep.subr.mxu0 %v1772
    %2016 = vmatpush1.msra.mxu0 %v1771
    %2017 = vmatprep.subr.mxu0 %v1769
    %2018 = vmatpush1.msra.mxu0 %v1768
    %2019 = vmatprep.subr.mxu0 %v1766
    %2020 = vmatpush1.msra.mxu0 %v1765
    %2021 = vmatprep.subr.mxu0 %v1763
    %2022 = vmatpush1.msra.mxu0 %v1762
    %2023 = vmatprep.subr.mxu0 0.0
    %2024 = vmatpush2.msra.mxu0 0.0
    %2025 = vmatprep.subr.mxu0 0.0
    %2026 = vmatpush2.msra.mxu0 0.0
    %2027 = vmatprep.subr.mxu0 0.0
    %2028 = vmatpush2.msra.mxu0 0.0
    %2029 = vmatprep.subr.mxu0 0.0
    %2030 = vmatpush2.msra.mxu0 0.0
    %2031 = vmatprep.subr.mxu0 0.0
    %2032 = vmatpush2.msra.mxu0 0.0
    %2033 = vmatprep.subr.mxu0 0.0
    %2034 = vmatpush2.msra.mxu0 0.0
    %2035 = vmatprep.subr.mxu0 0.0
    %2036 = vmatpush2.msra.mxu0 0.0
    %2037 = vmatprep.subr.mxu0 0.0
    %2038 = vmatpush2.msra.mxu0 0.0
    %2039 = vmatprep.subr.mxu0 0.0
    %2040 = vmatpush2.msra.mxu0 0.0
    %2041 = vmatprep.subr.mxu0 0.0
    %2042 = vmatpush2.msra.mxu0 0.0
    %2043 = vmatprep.subr.mxu0 0.0
    %2044 = vmatpush2.msra.mxu0 0.0
    %2045 = vmatprep.subr.mxu0 0.0
    %2046 = vmatpush2.msra.mxu0 0.0
    %2047 = vmatprep.subr.mxu0 0.0
    %2048 = vmatpush2.msra.mxu0 0.0
    %2049 = vmatprep.subr.mxu0 0.0
    %2050 = vmatpush2.msra.mxu0 0.0
    %2051 = vmatprep.subr.mxu0 0.0
    %2052 = vmatpush2.msra.mxu0 0.0
    %2053 = vmatprep.subr.mxu0 0.0
    %2054 = vmatpush2.msra.mxu0 0.0
    %2055 = vmatprep.mubr.f32.mxu0 0.0
    %2056 = vmatmul.mubr.f32.gmra.mxu0 %v1985
    %v2057 = vpop.f32.mrf.mxu0
    %v2058 = vadd.f32 0.0, %v2057
    %v2059 = vpop.f32.mrf.mxu0
    %v2060 = vadd.f32 0.0, %v2059
    %2061 = vdwg.mxu0
    %2062 = vmatprep.subr.mxu0 0.0
    %2063 = vmatpush1.msra.mxu0 %v1809
    %2064 = vmatprep.subr.mxu0 0.0
    %2065 = vmatpush1.msra.mxu0 %v1806
    %2066 = vmatprep.subr.mxu0 0.0
    %2067 = vmatpush1.msra.mxu0 %v1803
    %2068 = vmatprep.subr.mxu0 0.0
    %2069 = vmatpush1.msra.mxu0 %v1800
    %2070 = vmatprep.subr.mxu0 0.0
    %2071 = vmatpush1.msra.mxu0 %v1797
    %2072 = vmatprep.subr.mxu0 0.0
    %2073 = vmatpush1.msra.mxu0 %v1794
    %2074 = vmatprep.subr.mxu0 0.0
    %2075 = vmatpush1.msra.mxu0 %v1791
    %2076 = vmatprep.subr.mxu0 0.0
    %2077 = vmatpush1.msra.mxu0 %v1788
    %2078 = vmatprep.subr.mxu0 0.0
    %2079 = vmatpush1.msra.mxu0 %v1785
    %2080 = vmatprep.subr.mxu0 0.0
    %2081 = vmatpush1.msra.mxu0 %v1782
    %2082 = vmatprep.subr.mxu0 0.0
    %2083 = vmatpush1.msra.mxu0 %v1779
    %2084 = vmatprep.subr.mxu0 0.0
    %2085 = vmatpush1.msra.mxu0 %v1776
    %2086 = vmatprep.subr.mxu0 0.0
    %2087 = vmatpush1.msra.mxu0 %v1773
    %2088 = vmatprep.subr.mxu0 0.0
    %2089 = vmatpush1.msra.mxu0 %v1770
    %2090 = vmatprep.subr.mxu0 0.0
    %2091 = vmatpush1.msra.mxu0 %v1767
    %2092 = vmatprep.subr.mxu0 0.0
    %2093 = vmatpush1.msra.mxu0 %v1764
    %2094 = vmatprep.subr.mxu0 0.0
    %2095 = vmatpush2.msra.mxu0 0.0
    %2096 = vmatprep.subr.mxu0 0.0
    %2097 = vmatpush2.msra.mxu0 0.0
    %2098 = vmatprep.subr.mxu0 0.0
    %2099 = vmatpush2.msra.mxu0 0.0
    %2100 = vmatprep.subr.mxu0 0.0
    %2101 = vmatpush2.msra.mxu0 0.0
    %2102 = vmatprep.subr.mxu0 0.0
    %2103 = vmatpush2.msra.mxu0 0.0
    %2104 = vmatprep.subr.mxu0 0.0
    %2105 = vmatpush2.msra.mxu0 0.0
    %2106 = vmatprep.subr.mxu0 0.0
    %2107 = vmatpush2.msra.mxu0 0.0
    %2108 = vmatprep.subr.mxu0 0.0
    %2109 = vmatpush2.msra.mxu0 0.0
    %2110 = vmatprep.subr.mxu0 0.0
    %2111 = vmatpush2.msra.mxu0 0.0
    %2112 = vmatprep.subr.mxu0 0.0
    %2113 = vmatpush2.msra.mxu0 0.0
    %2114 = vmatprep.subr.mxu0 0.0
    %2115 = vmatpush2.msra.mxu0 0.0
    %2116 = vmatprep.subr.mxu0 0.0
    %2117 = vmatpush2.msra.mxu0 0.0
    %2118 = vmatprep.subr.mxu0 0.0
    %2119 = vmatpush2.msra.mxu0 0.0
    %2120 = vmatprep.subr.mxu0 0.0
    %2121 = vmatpush2.msra.mxu0 0.0
    %2122 = vmatprep.subr.mxu0 0.0
    %2123 = vmatpush2.msra.mxu0 0.0
    %2124 = vmatprep.subr.mxu0 0.0
    %2125 = vmatpush2.msra.mxu0 0.0
    %2126 = vmatprep.mubr.f32.mxu0 0.0
    %2127 = vmatmul.mubr.f32.gmra.mxu0 %v1985
    %v2128 = vpop.f32.mrf.mxu0
    %v2129 = vadd.f32 0.0, %v2128
    %v2130 = vpop.f32.mrf.mxu0
    %2131 = vdwg.mxu0
    %v2132 = vadd.f32 %v1988, %v2058
    %v2133 = vxor.u32 %v2132, 2147483648
    %v2134 = vmul.f32 %v2133, 1.442695
    %v2135 = vpow.pop %v2134
    %v2136 = vadd.f32 %v2135, 1.0
    %v2137 = vrcp.pop %v2136
    %v2138 = vmul.f32 1.0, %v2137
    %v2139 = vadd.f32 %v1989, %v2060
    %v2140 = vxor.u32 %v2139, 2147483648
    %v2141 = vmul.f32 %v2140, 1.442695
    %v2142 = vpow.pop %v2141
    %v2143 = vadd.f32 %v2142, 1.0
    %v2144 = vrcp.pop %v2143
    %v2145 = vmul.f32 1.0, %v2144
    %v2146 = vadd.f32 %v2129, %v1816
    %v2147 = vmul.f32 %v2138, %v2146
    %v2148 = vadd.f32 %v1990, %v2147
    %v2149 = vtanh.pop %v2148
    %v2150 = vsub.f32 1.0, %v2145
    %v2151 = vmul.f32 %v2150, %v2149
    %v2152 = vmul.f32 %v2145, %v1985
    %v2153 = vadd.f32 %v2151, %v2152
    %2154 = vst [vmem:[%s429] sm:$0xff] %v2153
    %s2155 = scalar_lea.vmem [#allocation2], 48
    %v2156 = vld [vmem:[%s2155] sm:$0xff]
    %v2157 = vld [vmem:[%s2155 + $0x8] sm:$0xff]
    %v2158 = vld [vmem:[%s2155 + $0x10] sm:$0xff]
    %2159 = vmatprep.subr.mxu0 %v1808
    %2160 = vmatpush1.msra.mxu0 %v1807
    %2161 = vmatprep.subr.mxu0 %v1805
    %2162 = vmatpush1.msra.mxu0 %v1804
    %2163 = vmatprep.subr.mxu0 %v1802
    %2164 = vmatpush1.msra.mxu0 %v1801
    %2165 = vmatprep.subr.mxu0 %v1799
    %2166 = vmatpush1.msra.mxu0 %v1798
    %2167 = vmatprep.subr.mxu0 %v1796
    %2168 = vmatpush1.msra.mxu0 %v1795
    %2169 = vmatprep.subr.mxu0 %v1793
    %2170 = vmatpush1.msra.mxu0 %v1792
    %2171 = vmatprep.subr.mxu0 %v1790
    %2172 = vmatpush1.msra.mxu0 %v1789
    %2173 = vmatprep.subr.mxu0 %v1787
    %2174 = vmatpush1.msra.mxu0 %v1786
    %2175 = vmatprep.subr.mxu0 %v1784
    %2176 = vmatpush1.msra.mxu0 %v1783
    %2177 = vmatprep.subr.mxu0 %v1781
    %2178 = vmatpush1.msra.mxu0 %v1780
    %2179 = vmatprep.subr.mxu0 %v1778
    %2180 = vmatpush1.msra.mxu0 %v1777
    %2181 = vmatprep.subr.mxu0 %v1775
    %2182 = vmatpush1.msra.mxu0 %v1774
    %2183 = vmatprep.subr.mxu0 %v1772
    %2184 = vmatpush1.msra.mxu0 %v1771
    %2185 = vmatprep.subr.mxu0 %v1769
    %2186 = vmatpush1.msra.mxu0 %v1768
    %2187 = vmatprep.subr.mxu0 %v1766
    %2188 = vmatpush1.msra.mxu0 %v1765
    %2189 = vmatprep.subr.mxu0 %v1763
    %2190 = vmatpush1.msra.mxu0 %v1762
    %2191 = vmatprep.subr.mxu0 0.0
    %2192 = vmatpush2.msra.mxu0 0.0
    %2193 = vmatprep.subr.mxu0 0.0
    %2194 = vmatpush2.msra.mxu0 0.0
    %2195 = vmatprep.subr.mxu0 0.0
    %2196 = vmatpush2.msra.mxu0 0.0
    %2197 = vmatprep.subr.mxu0 0.0
    %2198 = vmatpush2.msra.mxu0 0.0
    %2199 = vmatprep.subr.mxu0 0.0
    %2200 = vmatpush2.msra.mxu0 0.0
    %2201 = vmatprep.subr.mxu0 0.0
    %2202 = vmatpush2.msra.mxu0 0.0
    %2203 = vmatprep.subr.mxu0 0.0
    %2204 = vmatpush2.msra.mxu0 0.0
    %2205 = vmatprep.subr.mxu0 0.0
    %2206 = vmatpush2.msra.mxu0 0.0
    %2207 = vmatprep.subr.mxu0 0.0
    %2208 = vmatpush2.msra.mxu0 0.0
    %2209 = vmatprep.subr.mxu0 0.0
    %2210 = vmatpush2.msra.mxu0 0.0
    %2211 = vmatprep.subr.mxu0 0.0
    %2212 = vmatpush2.msra.mxu0 0.0
    %2213 = vmatprep.subr.mxu0 0.0
    %2214 = vmatpush2.msra.mxu0 0.0
    %2215 = vmatprep.subr.mxu0 0.0
    %2216 = vmatpush2.msra.mxu0 0.0
    %2217 = vmatprep.subr.mxu0 0.0
    %2218 = vmatpush2.msra.mxu0 0.0
    %2219 = vmatprep.subr.mxu0 0.0
    %2220 = vmatpush2.msra.mxu0 0.0
    %2221 = vmatprep.subr.mxu0 0.0
    %2222 = vmatpush2.msra.mxu0 0.0
    %2223 = vmatprep.mubr.f32.mxu0 0.0
    %2224 = vmatmul.mubr.f32.gmra.mxu0 %v2153
    %v2225 = vpop.f32.mrf.mxu0
    %v2226 = vadd.f32 0.0, %v2225
    %v2227 = vpop.f32.mrf.mxu0
    %v2228 = vadd.f32 0.0, %v2227
    %2229 = vdwg.mxu0
    %2230 = vmatprep.subr.mxu0 0.0
    %2231 = vmatpush1.msra.mxu0 %v1809
    %2232 = vmatprep.subr.mxu0 0.0
    %2233 = vmatpush1.msra.mxu0 %v1806
    %2234 = vmatprep.subr.mxu0 0.0
    %2235 = vmatpush1.msra.mxu0 %v1803
    %2236 = vmatprep.subr.mxu0 0.0
    %2237 = vmatpush1.msra.mxu0 %v1800
    %2238 = vmatprep.subr.mxu0 0.0
    %2239 = vmatpush1.msra.mxu0 %v1797
    %2240 = vmatprep.subr.mxu0 0.0
    %2241 = vmatpush1.msra.mxu0 %v1794
    %2242 = vmatprep.subr.mxu0 0.0
    %2243 = vmatpush1.msra.mxu0 %v1791
    %2244 = vmatprep.subr.mxu0 0.0
    %2245 = vmatpush1.msra.mxu0 %v1788
    %2246 = vmatprep.subr.mxu0 0.0
    %2247 = vmatpush1.msra.mxu0 %v1785
    %2248 = vmatprep.subr.mxu0 0.0
    %2249 = vmatpush1.msra.mxu0 %v1782
    %2250 = vmatprep.subr.mxu0 0.0
    %2251 = vmatpush1.msra.mxu0 %v1779
    %2252 = vmatprep.subr.mxu0 0.0
    %2253 = vmatpush1.msra.mxu0 %v1776
    %2254 = vmatprep.subr.mxu0 0.0
    %2255 = vmatpush1.msra.mxu0 %v1773
    %2256 = vmatprep.subr.mxu0 0.0
    %2257 = vmatpush1.msra.mxu0 %v1770
    %2258 = vmatprep.subr.mxu0 0.0
    %2259 = vmatpush1.msra.mxu0 %v1767
    %2260 = vmatprep.subr.mxu0 0.0
    %2261 = vmatpush1.msra.mxu0 %v1764
    %2262 = vmatprep.subr.mxu0 0.0
    %2263 = vmatpush2.msra.mxu0 0.0
    %2264 = vmatprep.subr.mxu0 0.0
    %2265 = vmatpush2.msra.mxu0 0.0
    %2266 = vmatprep.subr.mxu0 0.0
    %2267 = vmatpush2.msra.mxu0 0.0
    %2268 = vmatprep.subr.mxu0 0.0
    %2269 = vmatpush2.msra.mxu0 0.0
    %2270 = vmatprep.subr.mxu0 0.0
    %2271 = vmatpush2.msra.mxu0 0.0
    %2272 = vmatprep.subr.mxu0 0.0
    %2273 = vmatpush2.msra.mxu0 0.0
    %2274 = vmatprep.subr.mxu0 0.0
    %2275 = vmatpush2.msra.mxu0 0.0
    %2276 = vmatprep.subr.mxu0 0.0
    %2277 = vmatpush2.msra.mxu0 0.0
    %2278 = vmatprep.subr.mxu0 0.0
    %2279 = vmatpush2.msra.mxu0 0.0
    %2280 = vmatprep.subr.mxu0 0.0
    %2281 = vmatpush2.msra.mxu0 0.0
    %2282 = vmatprep.subr.mxu0 0.0
    %2283 = vmatpush2.msra.mxu0 0.0
    %2284 = vmatprep.subr.mxu0 0.0
    %2285 = vmatpush2.msra.mxu0 0.0
    %2286 = vmatprep.subr.mxu0 0.0
    %2287 = vmatpush2.msra.mxu0 0.0
    %2288 = vmatprep.subr.mxu0 0.0
    %2289 = vmatpush2.msra.mxu0 0.0
    %2290 = vmatprep.subr.mxu0 0.0
    %2291 = vmatpush2.msra.mxu0 0.0
    %2292 = vmatprep.subr.mxu0 0.0
    %2293 = vmatpush2.msra.mxu0 0.0
    %2294 = vmatprep.mubr.f32.mxu0 0.0
    %2295 = vmatmul.mubr.f32.gmra.mxu0 %v2153
    %v2296 = vpop.f32.mrf.mxu0
    %v2297 = vadd.f32 0.0, %v2296
    %v2298 = vpop.f32.mrf.mxu0
    %2299 = vdwg.mxu0
    %v2300 = vadd.f32 %v2156, %v2226
    %v2301 = vxor.u32 %v2300, 2147483648
    %v2302 = vmul.f32 %v2301, 1.442695
    %v2303 = vpow.pop %v2302
    %v2304 = vadd.f32 %v2303, 1.0
    %v2305 = vrcp.pop %v2304
    %v2306 = vmul.f32 1.0, %v2305
    %v2307 = vadd.f32 %v2157, %v2228
    %v2308 = vxor.u32 %v2307, 2147483648
    %v2309 = vmul.f32 %v2308, 1.442695
    %v2310 = vpow.pop %v2309
    %v2311 = vadd.f32 %v2310, 1.0
    %v2312 = vrcp.pop %v2311
    %v2313 = vmul.f32 1.0, %v2312
    %v2314 = vadd.f32 %v2297, %v1816
    %v2315 = vmul.f32 %v2306, %v2314
    %v2316 = vadd.f32 %v2158, %v2315
    %v2317 = vtanh.pop %v2316
    %v2318 = vsub.f32 1.0, %v2313
    %v2319 = vmul.f32 %v2318, %v2317
    %v2320 = vmul.f32 %v2313, %v2153
    %v2321 = vadd.f32 %v2319, %v2320
    %2322 = vst [vmem:[%s598] sm:$0xff] %v2321
    %s2323 = scalar_lea.vmem [#allocation2], 72
    %v2324 = vld [vmem:[%s2323] sm:$0xff]
    %v2325 = vld [vmem:[%s2323 + $0x8] sm:$0xff]
    %v2326 = vld [vmem:[%s2323 + $0x10] sm:$0xff]
    %2327 = vmatprep.subr.mxu0 %v1808
    %2328 = vmatpush1.msra.mxu0 %v1807
    %2329 = vmatprep.subr.mxu0 %v1805
    %2330 = vmatpush1.msra.mxu0 %v1804
    %2331 = vmatprep.subr.mxu0 %v1802
    %2332 = vmatpush1.msra.mxu0 %v1801
    %2333 = vmatprep.subr.mxu0 %v1799
    %2334 = vmatpush1.msra.mxu0 %v1798
    %2335 = vmatprep.subr.mxu0 %v1796
    %2336 = vmatpush1.msra.mxu0 %v1795
    %2337 = vmatprep.subr.mxu0 %v1793
    %2338 = vmatpush1.msra.mxu0 %v1792
    %2339 = vmatprep.subr.mxu0 %v1790
    %2340 = vmatpush1.msra.mxu0 %v1789
    %2341 = vmatprep.subr.mxu0 %v1787
    %2342 = vmatpush1.msra.mxu0 %v1786
    %2343 = vmatprep.subr.mxu0 %v1784
    %2344 = vmatpush1.msra.mxu0 %v1783
    %2345 = vmatprep.subr.mxu0 %v1781
    %2346 = vmatpush1.msra.mxu0 %v1780
    %2347 = vmatprep.subr.mxu0 %v1778
    %2348 = vmatpush1.msra.mxu0 %v1777
    %2349 = vmatprep.subr.mxu0 %v1775
    %2350 = vmatpush1.msra.mxu0 %v1774
    %2351 = vmatprep.subr.mxu0 %v1772
    %2352 = vmatpush1.msra.mxu0 %v1771
    %2353 = vmatprep.subr.mxu0 %v1769
    %2354 = vmatpush1.msra.mxu0 %v1768
    %2355 = vmatprep.subr.mxu0 %v1766
    %2356 = vmatpush1.msra.mxu0 %v1765
    %2357 = vmatprep.subr.mxu0 %v1763
    %2358 = vmatpush1.msra.mxu0 %v1762
    %2359 = vmatprep.subr.mxu0 0.0
    %2360 = vmatpush2.msra.mxu0 0.0
    %2361 = vmatprep.subr.mxu0 0.0
    %2362 = vmatpush2.msra.mxu0 0.0
    %2363 = vmatprep.subr.mxu0 0.0
    %2364 = vmatpush2.msra.mxu0 0.0
    %2365 = vmatprep.subr.mxu0 0.0
    %2366 = vmatpush2.msra.mxu0 0.0
    %2367 = vmatprep.subr.mxu0 0.0
    %2368 = vmatpush2.msra.mxu0 0.0
    %2369 = vmatprep.subr.mxu0 0.0
    %2370 = vmatpush2.msra.mxu0 0.0
    %2371 = vmatprep.subr.mxu0 0.0
    %2372 = vmatpush2.msra.mxu0 0.0
    %2373 = vmatprep.subr.mxu0 0.0
    %2374 = vmatpush2.msra.mxu0 0.0
    %2375 = vmatprep.subr.mxu0 0.0
    %2376 = vmatpush2.msra.mxu0 0.0
    %2377 = vmatprep.subr.mxu0 0.0
    %2378 = vmatpush2.msra.mxu0 0.0
    %2379 = vmatprep.subr.mxu0 0.0
    %2380 = vmatpush2.msra.mxu0 0.0
    %2381 = vmatprep.subr.mxu0 0.0
    %2382 = vmatpush2.msra.mxu0 0.0
    %2383 = vmatprep.subr.mxu0 0.0
    %2384 = vmatpush2.msra.mxu0 0.0
    %2385 = vmatprep.subr.mxu0 0.0
    %2386 = vmatpush2.msra.mxu0 0.0
    %2387 = vmatprep.subr.mxu0 0.0
    %2388 = vmatpush2.msra.mxu0 0.0
    %2389 = vmatprep.subr.mxu0 0.0
    %2390 = vmatpush2.msra.mxu0 0.0
    %2391 = vmatprep.mubr.f32.mxu0 0.0
    %2392 = vmatmul.mubr.f32.gmra.mxu0 %v2321
    %v2393 = vpop.f32.mrf.mxu0
    %v2394 = vadd.f32 0.0, %v2393
    %v2395 = vpop.f32.mrf.mxu0
    %v2396 = vadd.f32 0.0, %v2395
    %2397 = vdwg.mxu0
    %2398 = vmatprep.subr.mxu0 0.0
    %2399 = vmatpush1.msra.mxu0 %v1809
    %2400 = vmatprep.subr.mxu0 0.0
    %2401 = vmatpush1.msra.mxu0 %v1806
    %2402 = vmatprep.subr.mxu0 0.0
    %2403 = vmatpush1.msra.mxu0 %v1803
    %2404 = vmatprep.subr.mxu0 0.0
    %2405 = vmatpush1.msra.mxu0 %v1800
    %2406 = vmatprep.subr.mxu0 0.0
    %2407 = vmatpush1.msra.mxu0 %v1797
    %2408 = vmatprep.subr.mxu0 0.0
    %2409 = vmatpush1.msra.mxu0 %v1794
    %2410 = vmatprep.subr.mxu0 0.0
    %2411 = vmatpush1.msra.mxu0 %v1791
    %2412 = vmatprep.subr.mxu0 0.0
    %2413 = vmatpush1.msra.mxu0 %v1788
    %2414 = vmatprep.subr.mxu0 0.0
    %2415 = vmatpush1.msra.mxu0 %v1785
    %2416 = vmatprep.subr.mxu0 0.0
    %2417 = vmatpush1.msra.mxu0 %v1782
    %2418 = vmatprep.subr.mxu0 0.0
    %2419 = vmatpush1.msra.mxu0 %v1779
    %2420 = vmatprep.subr.mxu0 0.0
    %2421 = vmatpush1.msra.mxu0 %v1776
    %2422 = vmatprep.subr.mxu0 0.0
    %2423 = vmatpush1.msra.mxu0 %v1773
    %2424 = vmatprep.subr.mxu0 0.0
    %2425 = vmatpush1.msra.mxu0 %v1770
    %2426 = vmatprep.subr.mxu0 0.0
    %2427 = vmatpush1.msra.mxu0 %v1767
    %2428 = vmatprep.subr.mxu0 0.0
    %2429 = vmatpush1.msra.mxu0 %v1764
    %2430 = vmatprep.subr.mxu0 0.0
    %2431 = vmatpush2.msra.mxu0 0.0
    %2432 = vmatprep.subr.mxu0 0.0
    %2433 = vmatpush2.msra.mxu0 0.0
    %2434 = vmatprep.subr.mxu0 0.0
    %2435 = vmatpush2.msra.mxu0 0.0
    %2436 = vmatprep.subr.mxu0 0.0
    %2437 = vmatpush2.msra.mxu0 0.0
    %2438 = vmatprep.subr.mxu0 0.0
    %2439 = vmatpush2.msra.mxu0 0.0
    %2440 = vmatprep.subr.mxu0 0.0
    %2441 = vmatpush2.msra.mxu0 0.0
    %2442 = vmatprep.subr.mxu0 0.0
    %2443 = vmatpush2.msra.mxu0 0.0
    %2444 = vmatprep.subr.mxu0 0.0
    %2445 = vmatpush2.msra.mxu0 0.0
    %2446 = vmatprep.subr.mxu0 0.0
    %2447 = vmatpush2.msra.mxu0 0.0
    %2448 = vmatprep.subr.mxu0 0.0
    %2449 = vmatpush2.msra.mxu0 0.0
    %2450 = vmatprep.subr.mxu0 0.0
    %2451 = vmatpush2.msra.mxu0 0.0
    %2452 = vmatprep.subr.mxu0 0.0
    %2453 = vmatpush2.msra.mxu0 0.0
    %2454 = vmatprep.subr.mxu0 0.0
    %2455 = vmatpush2.msra.mxu0 0.0
    %2456 = vmatprep.subr.mxu0 0.0
    %2457 = vmatpush2.msra.mxu0 0.0
    %2458 = vmatprep.subr.mxu0 0.0
    %2459 = vmatpush2.msra.mxu0 0.0
    %2460 = vmatprep.subr.mxu0 0.0
    %2461 = vmatpush2.msra.mxu0 0.0
    %2462 = vmatprep.mubr.f32.mxu0 0.0
    %2463 = vmatmul.mubr.f32.gmra.mxu0 %v2321
    %v2464 = vpop.f32.mrf.mxu0
    %v2465 = vadd.f32 0.0, %v2464
    %v2466 = vpop.f32.mrf.mxu0
    %2467 = vdwg.mxu0
    %v2468 = vadd.f32 %v2324, %v2394
    %v2469 = vxor.u32 %v2468, 2147483648
    %v2470 = vmul.f32 %v2469, 1.442695
    %v2471 = vpow.pop %v2470
    %v2472 = vadd.f32 %v2471, 1.0
    %v2473 = vrcp.pop %v2472
    %v2474 = vmul.f32 1.0, %v2473
    %v2475 = vadd.f32 %v2325, %v2396
    %v2476 = vxor.u32 %v2475, 2147483648
    %v2477 = vmul.f32 %v2476, 1.442695
    %v2478 = vpow.pop %v2477
    %v2479 = vadd.f32 %v2478, 1.0
    %v2480 = vrcp.pop %v2479
    %v2481 = vmul.f32 1.0, %v2480
    %v2482 = vadd.f32 %v2465, %v1816
    %v2483 = vmul.f32 %v2474, %v2482
    %v2484 = vadd.f32 %v2326, %v2483
    %v2485 = vtanh.pop %v2484
    %v2486 = vsub.f32 1.0, %v2481
    %v2487 = vmul.f32 %v2486, %v2485
    %v2488 = vmul.f32 %v2481, %v2321
    %v2489 = vadd.f32 %v2487, %v2488
    %2490 = vst [vmem:[%s767] sm:$0xff] %v2489
    %s2491 = scalar_lea.vmem [#allocation2], 96
    %v2492 = vld [vmem:[%s2491] sm:$0xff]
    %v2493 = vld [vmem:[%s2491 + $0x8] sm:$0xff]
    %v2494 = vld [vmem:[%s2491 + $0x10] sm:$0xff]
    %2495 = vmatprep.subr.mxu0 %v1808
    %2496 = vmatpush1.msra.mxu0 %v1807
    %2497 = vmatprep.subr.mxu0 %v1805
    %2498 = vmatpush1.msra.mxu0 %v1804
    %2499 = vmatprep.subr.mxu0 %v1802
    %2500 = vmatpush1.msra.mxu0 %v1801
    %2501 = vmatprep.subr.mxu0 %v1799
    %2502 = vmatpush1.msra.mxu0 %v1798
    %2503 = vmatprep.subr.mxu0 %v1796
    %2504 = vmatpush1.msra.mxu0 %v1795
    %2505 = vmatprep.subr.mxu0 %v1793
    %2506 = vmatpush1.msra.mxu0 %v1792
    %2507 = vmatprep.subr.mxu0 %v1790
    %2508 = vmatpush1.msra.mxu0 %v1789
    %2509 = vmatprep.subr.mxu0 %v1787
    %2510 = vmatpush1.msra.mxu0 %v1786
    %2511 = vmatprep.subr.mxu0 %v1784
    %2512 = vmatpush1.msra.mxu0 %v1783
    %2513 = vmatprep.subr.mxu0 %v1781
    %2514 = vmatpush1.msra.mxu0 %v1780
    %2515 = vmatprep.subr.mxu0 %v1778
    %2516 = vmatpush1.msra.mxu0 %v1777
    %2517 = vmatprep.subr.mxu0 %v1775
    %2518 = vmatpush1.msra.mxu0 %v1774
    %2519 = vmatprep.subr.mxu0 %v1772
    %2520 = vmatpush1.msra.mxu0 %v1771
    %2521 = vmatprep.subr.mxu0 %v1769
    %2522 = vmatpush1.msra.mxu0 %v1768
    %2523 = vmatprep.subr.mxu0 %v1766
    %2524 = vmatpush1.msra.mxu0 %v1765
    %2525 = vmatprep.subr.mxu0 %v1763
    %2526 = vmatpush1.msra.mxu0 %v1762
    %2527 = vmatprep.subr.mxu0 0.0
    %2528 = vmatpush2.msra.mxu0 0.0
    %2529 = vmatprep.subr.mxu0 0.0
    %2530 = vmatpush2.msra.mxu0 0.0
    %2531 = vmatprep.subr.mxu0 0.0
    %2532 = vmatpush2.msra.mxu0 0.0
    %2533 = vmatprep.subr.mxu0 0.0
    %2534 = vmatpush2.msra.mxu0 0.0
    %2535 = vmatprep.subr.mxu0 0.0
    %2536 = vmatpush2.msra.mxu0 0.0
    %2537 = vmatprep.subr.mxu0 0.0
    %2538 = vmatpush2.msra.mxu0 0.0
    %2539 = vmatprep.subr.mxu0 0.0
    %2540 = vmatpush2.msra.mxu0 0.0
    %2541 = vmatprep.subr.mxu0 0.0
    %2542 = vmatpush2.msra.mxu0 0.0
    %2543 = vmatprep.subr.mxu0 0.0
    %2544 = vmatpush2.msra.mxu0 0.0
    %2545 = vmatprep.subr.mxu0 0.0
    %2546 = vmatpush2.msra.mxu0 0.0
    %2547 = vmatprep.subr.mxu0 0.0
    %2548 = vmatpush2.msra.mxu0 0.0
    %2549 = vmatprep.subr.mxu0 0.0
    %2550 = vmatpush2.msra.mxu0 0.0
    %2551 = vmatprep.subr.mxu0 0.0
    %2552 = vmatpush2.msra.mxu0 0.0
    %2553 = vmatprep.subr.mxu0 0.0
    %2554 = vmatpush2.msra.mxu0 0.0
    %2555 = vmatprep.subr.mxu0 0.0
    %2556 = vmatpush2.msra.mxu0 0.0
    %2557 = vmatprep.subr.mxu0 0.0
    %2558 = vmatpush2.msra.mxu0 0.0
    %2559 = vmatprep.mubr.f32.mxu0 0.0
    %2560 = vmatmul.mubr.f32.gmra.mxu0 %v2489
    %v2561 = vpop.f32.mrf.mxu0
    %v2562 = vadd.f32 0.0, %v2561
    %v2563 = vpop.f32.mrf.mxu0
    %v2564 = vadd.f32 0.0, %v2563
    %2565 = vdwg.mxu0
    %2566 = vmatprep.subr.mxu0 0.0
    %2567 = vmatpush1.msra.mxu0 %v1809
    %2568 = vmatprep.subr.mxu0 0.0
    %2569 = vmatpush1.msra.mxu0 %v1806
    %2570 = vmatprep.subr.mxu0 0.0
    %2571 = vmatpush1.msra.mxu0 %v1803
    %2572 = vmatprep.subr.mxu0 0.0
    %2573 = vmatpush1.msra.mxu0 %v1800
    %2574 = vmatprep.subr.mxu0 0.0
    %2575 = vmatpush1.msra.mxu0 %v1797
    %2576 = vmatprep.subr.mxu0 0.0
    %2577 = vmatpush1.msra.mxu0 %v1794
    %2578 = vmatprep.subr.mxu0 0.0
    %2579 = vmatpush1.msra.mxu0 %v1791
    %2580 = vmatprep.subr.mxu0 0.0
    %2581 = vmatpush1.msra.mxu0 %v1788
    %2582 = vmatprep.subr.mxu0 0.0
    %2583 = vmatpush1.msra.mxu0 %v1785
    %2584 = vmatprep.subr.mxu0 0.0
    %2585 = vmatpush1.msra.mxu0 %v1782
    %2586 = vmatprep.subr.mxu0 0.0
    %2587 = vmatpush1.msra.mxu0 %v1779
    %2588 = vmatprep.subr.mxu0 0.0
    %2589 = vmatpush1.msra.mxu0 %v1776
    %2590 = vmatprep.subr.mxu0 0.0
    %2591 = vmatpush1.msra.mxu0 %v1773
    %2592 = vmatprep.subr.mxu0 0.0
    %2593 = vmatpush1.msra.mxu0 %v1770
    %2594 = vmatprep.subr.mxu0 0.0
    %2595 = vmatpush1.msra.mxu0 %v1767
    %2596 = vmatprep.subr.mxu0 0.0
    %2597 = vmatpush1.msra.mxu0 %v1764
    %2598 = vmatprep.subr.mxu0 0.0
    %2599 = vmatpush2.msra.mxu0 0.0
    %2600 = vmatprep.subr.mxu0 0.0
    %2601 = vmatpush2.msra.mxu0 0.0
    %2602 = vmatprep.subr.mxu0 0.0
    %2603 = vmatpush2.msra.mxu0 0.0
    %2604 = vmatprep.subr.mxu0 0.0
    %2605 = vmatpush2.msra.mxu0 0.0
    %2606 = vmatprep.subr.mxu0 0.0
    %2607 = vmatpush2.msra.mxu0 0.0
    %2608 = vmatprep.subr.mxu0 0.0
    %2609 = vmatpush2.msra.mxu0 0.0
    %2610 = vmatprep.subr.mxu0 0.0
    %2611 = vmatpush2.msra.mxu0 0.0
    %2612 = vmatprep.subr.mxu0 0.0
    %2613 = vmatpush2.msra.mxu0 0.0
    %2614 = vmatprep.subr.mxu0 0.0
    %2615 = vmatpush2.msra.mxu0 0.0
    %2616 = vmatprep.subr.mxu0 0.0
    %2617 = vmatpush2.msra.mxu0 0.0
    %2618 = vmatprep.subr.mxu0 0.0
    %2619 = vmatpush2.msra.mxu0 0.0
    %2620 = vmatprep.subr.mxu0 0.0
    %2621 = vmatpush2.msra.mxu0 0.0
    %2622 = vmatprep.subr.mxu0 0.0
    %2623 = vmatpush2.msra.mxu0 0.0
    %2624 = vmatprep.subr.mxu0 0.0
    %2625 = vmatpush2.msra.mxu0 0.0
    %2626 = vmatprep.subr.mxu0 0.0
    %2627 = vmatpush2.msra.mxu0 0.0
    %2628 = vmatprep.subr.mxu0 0.0
    %2629 = vmatpush2.msra.mxu0 0.0
    %2630 = vmatprep.mubr.f32.mxu0 0.0
    %2631 = vmatmul.mubr.f32.gmra.mxu0 %v2489
    %v2632 = vpop.f32.mrf.mxu0
    %v2633 = vadd.f32 0.0, %v2632
    %v2634 = vpop.f32.mrf.mxu0
    %2635 = vdwg.mxu0
    %v2636 = vadd.f32 %v2492, %v2562
    %v2637 = vxor.u32 %v2636, 2147483648
    %v2638 = vmul.f32 %v2637, 1.442695
    %v2639 = vpow.pop %v2638
    %v2640 = vadd.f32 %v2639, 1.0
    %v2641 = vrcp.pop %v2640
    %v2642 = vmul.f32 1.0, %v2641
    %v2643 = vadd.f32 %v2493, %v2564
    %v2644 = vxor.u32 %v2643, 2147483648
    %v2645 = vmul.f32 %v2644, 1.442695
    %v2646 = vpow.pop %v2645
    %v2647 = vadd.f32 %v2646, 1.0
    %v2648 = vrcp.pop %v2647
    %v2649 = vmul.f32 1.0, %v2648
    %v2650 = vadd.f32 %v2633, %v1816
    %v2651 = vmul.f32 %v2642, %v2650
    %v2652 = vadd.f32 %v2494, %v2651
    %v2653 = vtanh.pop %v2652
    %v2654 = vsub.f32 1.0, %v2649
    %v2655 = vmul.f32 %v2654, %v2653
    %v2656 = vmul.f32 %v2649, %v2489
    %v2657 = vadd.f32 %v2655, %v2656
    %2658 = vst [vmem:[%s936] sm:$0xff] %v2657
    %s2659 = scalar_lea.vmem [#allocation2], 120
    %v2660 = vld [vmem:[%s2659] sm:$0xff]
    %v2661 = vld [vmem:[%s2659 + $0x8] sm:$0xff]
    %v2662 = vld [vmem:[%s2659 + $0x10] sm:$0xff]
    %2663 = vmatprep.subr.mxu0 %v1808
    %2664 = vmatpush1.msra.mxu0 %v1807
    %2665 = vmatprep.subr.mxu0 %v1805
    %2666 = vmatpush1.msra.mxu0 %v1804
    %2667 = vmatprep.subr.mxu0 %v1802
    %2668 = vmatpush1.msra.mxu0 %v1801
    %2669 = vmatprep.subr.mxu0 %v1799
    %2670 = vmatpush1.msra.mxu0 %v1798
    %2671 = vmatprep.subr.mxu0 %v1796
    %2672 = vmatpush1.msra.mxu0 %v1795
    %2673 = vmatprep.subr.mxu0 %v1793
    %2674 = vmatpush1.msra.mxu0 %v1792
    %2675 = vmatprep.subr.mxu0 %v1790
    %2676 = vmatpush1.msra.mxu0 %v1789
    %2677 = vmatprep.subr.mxu0 %v1787
    %2678 = vmatpush1.msra.mxu0 %v1786
    %2679 = vmatprep.subr.mxu0 %v1784
    %2680 = vmatpush1.msra.mxu0 %v1783
    %2681 = vmatprep.subr.mxu0 %v1781
    %2682 = vmatpush1.msra.mxu0 %v1780
    %2683 = vmatprep.subr.mxu0 %v1778
    %2684 = vmatpush1.msra.mxu0 %v1777
    %2685 = vmatprep.subr.mxu0 %v1775
    %2686 = vmatpush1.msra.mxu0 %v1774
    %2687 = vmatprep.subr.mxu0 %v1772
    %2688 = vmatpush1.msra.mxu0 %v1771
    %2689 = vmatprep.subr.mxu0 %v1769
    %2690 = vmatpush1.msra.mxu0 %v1768
    %2691 = vmatprep.subr.mxu0 %v1766
    %2692 = vmatpush1.msra.mxu0 %v1765
    %2693 = vmatprep.subr.mxu0 %v1763
    %2694 = vmatpush1.msra.mxu0 %v1762
    %2695 = vmatprep.subr.mxu0 0.0
    %2696 = vmatpush2.msra.mxu0 0.0
    %2697 = vmatprep.subr.mxu0 0.0
    %2698 = vmatpush2.msra.mxu0 0.0
    %2699 = vmatprep.subr.mxu0 0.0
    %2700 = vmatpush2.msra.mxu0 0.0
    %2701 = vmatprep.subr.mxu0 0.0
    %2702 = vmatpush2.msra.mxu0 0.0
    %2703 = vmatprep.subr.mxu0 0.0
    %2704 = vmatpush2.msra.mxu0 0.0
    %2705 = vmatprep.subr.mxu0 0.0
    %2706 = vmatpush2.msra.mxu0 0.0
    %2707 = vmatprep.subr.mxu0 0.0
    %2708 = vmatpush2.msra.mxu0 0.0
    %2709 = vmatprep.subr.mxu0 0.0
    %2710 = vmatpush2.msra.mxu0 0.0
    %2711 = vmatprep.subr.mxu0 0.0
    %2712 = vmatpush2.msra.mxu0 0.0
    %2713 = vmatprep.subr.mxu0 0.0
    %2714 = vmatpush2.msra.mxu0 0.0
    %2715 = vmatprep.subr.mxu0 0.0
    %2716 = vmatpush2.msra.mxu0 0.0
    %2717 = vmatprep.subr.mxu0 0.0
    %2718 = vmatpush2.msra.mxu0 0.0
    %2719 = vmatprep.subr.mxu0 0.0
    %2720 = vmatpush2.msra.mxu0 0.0
    %2721 = vmatprep.subr.mxu0 0.0
    %2722 = vmatpush2.msra.mxu0 0.0
    %2723 = vmatprep.subr.mxu0 0.0
    %2724 = vmatpush2.msra.mxu0 0.0
    %2725 = vmatprep.subr.mxu0 0.0
    %2726 = vmatpush2.msra.mxu0 0.0
    %2727 = vmatprep.mubr.f32.mxu0 0.0
    %2728 = vmatmul.mubr.f32.gmra.mxu0 %v2657
    %v2729 = vpop.f32.mrf.mxu0
    %v2730 = vadd.f32 0.0, %v2729
    %v2731 = vpop.f32.mrf.mxu0
    %v2732 = vadd.f32 0.0, %v2731
    %2733 = vdwg.mxu0
    %2734 = vmatprep.subr.mxu0 0.0
    %2735 = vmatpush1.msra.mxu0 %v1809
    %2736 = vmatprep.subr.mxu0 0.0
    %2737 = vmatpush1.msra.mxu0 %v1806
    %2738 = vmatprep.subr.mxu0 0.0
    %2739 = vmatpush1.msra.mxu0 %v1803
    %2740 = vmatprep.subr.mxu0 0.0
    %2741 = vmatpush1.msra.mxu0 %v1800
    %2742 = vmatprep.subr.mxu0 0.0
    %2743 = vmatpush1.msra.mxu0 %v1797
    %2744 = vmatprep.subr.mxu0 0.0
    %2745 = vmatpush1.msra.mxu0 %v1794
    %2746 = vmatprep.subr.mxu0 0.0
    %2747 = vmatpush1.msra.mxu0 %v1791
    %2748 = vmatprep.subr.mxu0 0.0
    %2749 = vmatpush1.msra.mxu0 %v1788
    %2750 = vmatprep.subr.mxu0 0.0
    %2751 = vmatpush1.msra.mxu0 %v1785
    %2752 = vmatprep.subr.mxu0 0.0
    %2753 = vmatpush1.msra.mxu0 %v1782
    %2754 = vmatprep.subr.mxu0 0.0
    %2755 = vmatpush1.msra.mxu0 %v1779
    %2756 = vmatprep.subr.mxu0 0.0
    %2757 = vmatpush1.msra.mxu0 %v1776
    %2758 = vmatprep.subr.mxu0 0.0
    %2759 = vmatpush1.msra.mxu0 %v1773
    %2760 = vmatprep.subr.mxu0 0.0
    %2761 = vmatpush1.msra.mxu0 %v1770
    %2762 = vmatprep.subr.mxu0 0.0
    %2763 = vmatpush1.msra.mxu0 %v1767
    %2764 = vmatprep.subr.mxu0 0.0
    %2765 = vmatpush1.msra.mxu0 %v1764
    %2766 = vmatprep.subr.mxu0 0.0
    %2767 = vmatpush2.msra.mxu0 0.0
    %2768 = vmatprep.subr.mxu0 0.0
    %2769 = vmatpush2.msra.mxu0 0.0
    %2770 = vmatprep.subr.mxu0 0.0
    %2771 = vmatpush2.msra.mxu0 0.0
    %2772 = vmatprep.subr.mxu0 0.0
    %2773 = vmatpush2.msra.mxu0 0.0
    %2774 = vmatprep.subr.mxu0 0.0
    %2775 = vmatpush2.msra.mxu0 0.0
    %2776 = vmatprep.subr.mxu0 0.0
    %2777 = vmatpush2.msra.mxu0 0.0
    %2778 = vmatprep.subr.mxu0 0.0
    %2779 = vmatpush2.msra.mxu0 0.0
    %2780 = vmatprep.subr.mxu0 0.0
    %2781 = vmatpush2.msra.mxu0 0.0
    %2782 = vmatprep.subr.mxu0 0.0
    %2783 = vmatpush2.msra.mxu0 0.0
    %2784 = vmatprep.subr.mxu0 0.0
    %2785 = vmatpush2.msra.mxu0 0.0
    %2786 = vmatprep.subr.mxu0 0.0
    %2787 = vmatpush2.msra.mxu0 0.0
    %2788 = vmatprep.subr.mxu0 0.0
    %2789 = vmatpush2.msra.mxu0 0.0
    %2790 = vmatprep.subr.mxu0 0.0
    %2791 = vmatpush2.msra.mxu0 0.0
    %2792 = vmatprep.subr.mxu0 0.0
    %2793 = vmatpush2.msra.mxu0 0.0
    %2794 = vmatprep.subr.mxu0 0.0
    %2795 = vmatpush2.msra.mxu0 0.0
    %2796 = vmatprep.subr.mxu0 0.0
    %2797 = vmatpush2.msra.mxu0 0.0
    %2798 = vmatprep.mubr.f32.mxu0 0.0
    %2799 = vmatmul.mubr.f32.gmra.mxu0 %v2657
    %v2800 = vpop.f32.mrf.mxu0
    %v2801 = vadd.f32 0.0, %v2800
    %v2802 = vpop.f32.mrf.mxu0
    %2803 = vdwg.mxu0
    %v2804 = vadd.f32 %v2660, %v2730
    %v2805 = vxor.u32 %v2804, 2147483648
    %v2806 = vmul.f32 %v2805, 1.442695
    %v2807 = vpow.pop %v2806
    %v2808 = vadd.f32 %v2807, 1.0
    %v2809 = vrcp.pop %v2808
    %v2810 = vmul.f32 1.0, %v2809
    %v2811 = vadd.f32 %v2661, %v2732
    %v2812 = vxor.u32 %v2811, 2147483648
    %v2813 = vmul.f32 %v2812, 1.442695
    %v2814 = vpow.pop %v2813
    %v2815 = vadd.f32 %v2814, 1.0
    %v2816 = vrcp.pop %v2815
    %v2817 = vmul.f32 1.0, %v2816
    %v2818 = vadd.f32 %v2801, %v1816
    %v2819 = vmul.f32 %v2810, %v2818
    %v2820 = vadd.f32 %v2662, %v2819
    %v2821 = vtanh.pop %v2820
    %v2822 = vsub.f32 1.0, %v2817
    %v2823 = vmul.f32 %v2822, %v2821
    %v2824 = vmul.f32 %v2817, %v2657
    %v2825 = vadd.f32 %v2823, %v2824
    %2826 = vst [vmem:[%s1105] sm:$0xff] %v2825
    %s2827 = scalar_lea.vmem [#allocation2], 144
    %v2828 = vld [vmem:[%s2827] sm:$0xff]
    %v2829 = vld [vmem:[%s2827 + $0x8] sm:$0xff]
    %v2830 = vld [vmem:[%s2827 + $0x10] sm:$0xff]
    %2831 = vmatprep.subr.mxu0 %v1808
    %2832 = vmatpush1.msra.mxu0 %v1807
    %2833 = vmatprep.subr.mxu0 %v1805
    %2834 = vmatpush1.msra.mxu0 %v1804
    %2835 = vmatprep.subr.mxu0 %v1802
    %2836 = vmatpush1.msra.mxu0 %v1801
    %2837 = vmatprep.subr.mxu0 %v1799
    %2838 = vmatpush1.msra.mxu0 %v1798
    %2839 = vmatprep.subr.mxu0 %v1796
    %2840 = vmatpush1.msra.mxu0 %v1795
    %2841 = vmatprep.subr.mxu0 %v1793
    %2842 = vmatpush1.msra.mxu0 %v1792
    %2843 = vmatprep.subr.mxu0 %v1790
    %2844 = vmatpush1.msra.mxu0 %v1789
    %2845 = vmatprep.subr.mxu0 %v1787
    %2846 = vmatpush1.msra.mxu0 %v1786
    %2847 = vmatprep.subr.mxu0 %v1784
    %2848 = vmatpush1.msra.mxu0 %v1783
    %2849 = vmatprep.subr.mxu0 %v1781
    %2850 = vmatpush1.msra.mxu0 %v1780
    %2851 = vmatprep.subr.mxu0 %v1778
    %2852 = vmatpush1.msra.mxu0 %v1777
    %2853 = vmatprep.subr.mxu0 %v1775
    %2854 = vmatpush1.msra.mxu0 %v1774
    %2855 = vmatprep.subr.mxu0 %v1772
    %2856 = vmatpush1.msra.mxu0 %v1771
    %2857 = vmatprep.subr.mxu0 %v1769
    %2858 = vmatpush1.msra.mxu0 %v1768
    %2859 = vmatprep.subr.mxu0 %v1766
    %2860 = vmatpush1.msra.mxu0 %v1765
    %2861 = vmatprep.subr.mxu0 %v1763
    %2862 = vmatpush1.msra.mxu0 %v1762
    %2863 = vmatprep.subr.mxu0 0.0
    %2864 = vmatpush2.msra.mxu0 0.0
    %2865 = vmatprep.subr.mxu0 0.0
    %2866 = vmatpush2.msra.mxu0 0.0
    %2867 = vmatprep.subr.mxu0 0.0
    %2868 = vmatpush2.msra.mxu0 0.0
    %2869 = vmatprep.subr.mxu0 0.0
    %2870 = vmatpush2.msra.mxu0 0.0
    %2871 = vmatprep.subr.mxu0 0.0
    %2872 = vmatpush2.msra.mxu0 0.0
    %2873 = vmatprep.subr.mxu0 0.0
    %2874 = vmatpush2.msra.mxu0 0.0
    %2875 = vmatprep.subr.mxu0 0.0
    %2876 = vmatpush2.msra.mxu0 0.0
    %2877 = vmatprep.subr.mxu0 0.0
    %2878 = vmatpush2.msra.mxu0 0.0
    %2879 = vmatprep.subr.mxu0 0.0
    %2880 = vmatpush2.msra.mxu0 0.0
    %2881 = vmatprep.subr.mxu0 0.0
    %2882 = vmatpush2.msra.mxu0 0.0
    %2883 = vmatprep.subr.mxu0 0.0
    %2884 = vmatpush2.msra.mxu0 0.0
    %2885 = vmatprep.subr.mxu0 0.0
    %2886 = vmatpush2.msra.mxu0 0.0
    %2887 = vmatprep.subr.mxu0 0.0
    %2888 = vmatpush2.msra.mxu0 0.0
    %2889 = vmatprep.subr.mxu0 0.0
    %2890 = vmatpush2.msra.mxu0 0.0
    %2891 = vmatprep.subr.mxu0 0.0
    %2892 = vmatpush2.msra.mxu0 0.0
    %2893 = vmatprep.subr.mxu0 0.0
    %2894 = vmatpush2.msra.mxu0 0.0
    %2895 = vmatprep.mubr.f32.mxu0 0.0
    %2896 = vmatmul.mubr.f32.gmra.mxu0 %v2825
    %v2897 = vpop.f32.mrf.mxu0
    %v2898 = vadd.f32 0.0, %v2897
    %v2899 = vpop.f32.mrf.mxu0
    %v2900 = vadd.f32 0.0, %v2899
    %2901 = vdwg.mxu0
    %2902 = vmatprep.subr.mxu0 0.0
    %2903 = vmatpush1.msra.mxu0 %v1809
    %2904 = vmatprep.subr.mxu0 0.0
    %2905 = vmatpush1.msra.mxu0 %v1806
    %2906 = vmatprep.subr.mxu0 0.0
    %2907 = vmatpush1.msra.mxu0 %v1803
    %2908 = vmatprep.subr.mxu0 0.0
    %2909 = vmatpush1.msra.mxu0 %v1800
    %2910 = vmatprep.subr.mxu0 0.0
    %2911 = vmatpush1.msra.mxu0 %v1797
    %2912 = vmatprep.subr.mxu0 0.0
    %2913 = vmatpush1.msra.mxu0 %v1794
    %2914 = vmatprep.subr.mxu0 0.0
    %2915 = vmatpush1.msra.mxu0 %v1791
    %2916 = vmatprep.subr.mxu0 0.0
    %2917 = vmatpush1.msra.mxu0 %v1788
    %2918 = vmatprep.subr.mxu0 0.0
    %2919 = vmatpush1.msra.mxu0 %v1785
    %2920 = vmatprep.subr.mxu0 0.0
    %2921 = vmatpush1.msra.mxu0 %v1782
    %2922 = vmatprep.subr.mxu0 0.0
    %2923 = vmatpush1.msra.mxu0 %v1779
    %2924 = vmatprep.subr.mxu0 0.0
    %2925 = vmatpush1.msra.mxu0 %v1776
    %2926 = vmatprep.subr.mxu0 0.0
    %2927 = vmatpush1.msra.mxu0 %v1773
    %2928 = vmatprep.subr.mxu0 0.0
    %2929 = vmatpush1.msra.mxu0 %v1770
    %2930 = vmatprep.subr.mxu0 0.0
    %2931 = vmatpush1.msra.mxu0 %v1767
    %2932 = vmatprep.subr.mxu0 0.0
    %2933 = vmatpush1.msra.mxu0 %v1764
    %2934 = vmatprep.subr.mxu0 0.0
    %2935 = vmatpush2.msra.mxu0 0.0
    %2936 = vmatprep.subr.mxu0 0.0
    %2937 = vmatpush2.msra.mxu0 0.0
    %2938 = vmatprep.subr.mxu0 0.0
    %2939 = vmatpush2.msra.mxu0 0.0
    %2940 = vmatprep.subr.mxu0 0.0
    %2941 = vmatpush2.msra.mxu0 0.0
    %2942 = vmatprep.subr.mxu0 0.0
    %2943 = vmatpush2.msra.mxu0 0.0
    %2944 = vmatprep.subr.mxu0 0.0
    %2945 = vmatpush2.msra.mxu0 0.0
    %2946 = vmatprep.subr.mxu0 0.0
    %2947 = vmatpush2.msra.mxu0 0.0
    %2948 = vmatprep.subr.mxu0 0.0
    %2949 = vmatpush2.msra.mxu0 0.0
    %2950 = vmatprep.subr.mxu0 0.0
    %2951 = vmatpush2.msra.mxu0 0.0
    %2952 = vmatprep.subr.mxu0 0.0
    %2953 = vmatpush2.msra.mxu0 0.0
    %2954 = vmatprep.subr.mxu0 0.0
    %2955 = vmatpush2.msra.mxu0 0.0
    %2956 = vmatprep.subr.mxu0 0.0
    %2957 = vmatpush2.msra.mxu0 0.0
    %2958 = vmatprep.subr.mxu0 0.0
    %2959 = vmatpush2.msra.mxu0 0.0
    %2960 = vmatprep.subr.mxu0 0.0
    %2961 = vmatpush2.msra.mxu0 0.0
    %2962 = vmatprep.subr.mxu0 0.0
    %2963 = vmatpush2.msra.mxu0 0.0
    %2964 = vmatprep.subr.mxu0 0.0
    %2965 = vmatpush2.msra.mxu0 0.0
    %2966 = vmatprep.mubr.f32.mxu0 0.0
    %2967 = vmatmul.mubr.f32.gmra.mxu0 %v2825
    %v2968 = vpop.f32.mrf.mxu0
    %v2969 = vadd.f32 0.0, %v2968
    %v2970 = vpop.f32.mrf.mxu0
    %2971 = vdwg.mxu0
    %v2972 = vadd.f32 %v2828, %v2898
    %v2973 = vxor.u32 %v2972, 2147483648
    %v2974 = vmul.f32 %v2973, 1.442695
    %v2975 = vpow.pop %v2974
    %v2976 = vadd.f32 %v2975, 1.0
    %v2977 = vrcp.pop %v2976
    %v2978 = vmul.f32 1.0, %v2977
    %v2979 = vadd.f32 %v2829, %v2900
    %v2980 = vxor.u32 %v2979, 2147483648
    %v2981 = vmul.f32 %v2980, 1.442695
    %v2982 = vpow.pop %v2981
    %v2983 = vadd.f32 %v2982, 1.0
    %v2984 = vrcp.pop %v2983
    %v2985 = vmul.f32 1.0, %v2984
    %v2986 = vadd.f32 %v2969, %v1816
    %v2987 = vmul.f32 %v2978, %v2986
    %v2988 = vadd.f32 %v2830, %v2987
    %v2989 = vtanh.pop %v2988
    %v2990 = vsub.f32 1.0, %v2985
    %v2991 = vmul.f32 %v2990, %v2989
    %v2992 = vmul.f32 %v2985, %v2825
    %v2993 = vadd.f32 %v2991, %v2992
    %2994 = vst [vmem:[%s1274] sm:$0xff] %v2993
    %s2995 = scalar_lea.vmem [#allocation2], 168
    %v2996 = vld [vmem:[%s2995] sm:$0xff]
    %v2997 = vld [vmem:[%s2995 + $0x8] sm:$0xff]
    %v2998 = vld [vmem:[%s2995 + $0x10] sm:$0xff]
    %2999 = vmatprep.subr.mxu0 %v1808
    %3000 = vmatpush1.msra.mxu0 %v1807
    %3001 = vmatprep.subr.mxu0 %v1805
    %3002 = vmatpush1.msra.mxu0 %v1804
    %3003 = vmatprep.subr.mxu0 %v1802
    %3004 = vmatpush1.msra.mxu0 %v1801
    %3005 = vmatprep.subr.mxu0 %v1799
    %3006 = vmatpush1.msra.mxu0 %v1798
    %3007 = vmatprep.subr.mxu0 %v1796
    %3008 = vmatpush1.msra.mxu0 %v1795
    %3009 = vmatprep.subr.mxu0 %v1793
    %3010 = vmatpush1.msra.mxu0 %v1792
    %3011 = vmatprep.subr.mxu0 %v1790
    %3012 = vmatpush1.msra.mxu0 %v1789
    %3013 = vmatprep.subr.mxu0 %v1787
    %3014 = vmatpush1.msra.mxu0 %v1786
    %3015 = vmatprep.subr.mxu0 %v1784
    %3016 = vmatpush1.msra.mxu0 %v1783
    %3017 = vmatprep.subr.mxu0 %v1781
    %3018 = vmatpush1.msra.mxu0 %v1780
    %3019 = vmatprep.subr.mxu0 %v1778
    %3020 = vmatpush1.msra.mxu0 %v1777
    %3021 = vmatprep.subr.mxu0 %v1775
    %3022 = vmatpush1.msra.mxu0 %v1774
    %3023 = vmatprep.subr.mxu0 %v1772
    %3024 = vmatpush1.msra.mxu0 %v1771
    %3025 = vmatprep.subr.mxu0 %v1769
    %3026 = vmatpush1.msra.mxu0 %v1768
    %3027 = vmatprep.subr.mxu0 %v1766
    %3028 = vmatpush1.msra.mxu0 %v1765
    %3029 = vmatprep.subr.mxu0 %v1763
    %3030 = vmatpush1.msra.mxu0 %v1762
    %3031 = vmatprep.subr.mxu0 0.0
    %3032 = vmatpush2.msra.mxu0 0.0
    %3033 = vmatprep.subr.mxu0 0.0
    %3034 = vmatpush2.msra.mxu0 0.0
    %3035 = vmatprep.subr.mxu0 0.0
    %3036 = vmatpush2.msra.mxu0 0.0
    %3037 = vmatprep.subr.mxu0 0.0
    %3038 = vmatpush2.msra.mxu0 0.0
    %3039 = vmatprep.subr.mxu0 0.0
    %3040 = vmatpush2.msra.mxu0 0.0
    %3041 = vmatprep.subr.mxu0 0.0
    %3042 = vmatpush2.msra.mxu0 0.0
    %3043 = vmatprep.subr.mxu0 0.0
    %3044 = vmatpush2.msra.mxu0 0.0
    %3045 = vmatprep.subr.mxu0 0.0
    %3046 = vmatpush2.msra.mxu0 0.0
    %3047 = vmatprep.subr.mxu0 0.0
    %3048 = vmatpush2.msra.mxu0 0.0
    %3049 = vmatprep.subr.mxu0 0.0
    %3050 = vmatpush2.msra.mxu0 0.0
    %3051 = vmatprep.subr.mxu0 0.0
    %3052 = vmatpush2.msra.mxu0 0.0
    %3053 = vmatprep.subr.mxu0 0.0
    %3054 = vmatpush2.msra.mxu0 0.0
    %3055 = vmatprep.subr.mxu0 0.0
    %3056 = vmatpush2.msra.mxu0 0.0
    %3057 = vmatprep.subr.mxu0 0.0
    %3058 = vmatpush2.msra.mxu0 0.0
    %3059 = vmatprep.subr.mxu0 0.0
    %3060 = vmatpush2.msra.mxu0 0.0
    %3061 = vmatprep.subr.mxu0 0.0
    %3062 = vmatpush2.msra.mxu0 0.0
    %3063 = vmatprep.mubr.f32.mxu0 0.0
    %3064 = vmatmul.mubr.f32.gmra.mxu0 %v2993
    %v3065 = vpop.f32.mrf.mxu0
    %v3066 = vadd.f32 0.0, %v3065
    %v3067 = vpop.f32.mrf.mxu0
    %v3068 = vadd.f32 0.0, %v3067
    %3069 = vdwg.mxu0
    %3070 = vmatprep.subr.mxu0 0.0
    %3071 = vmatpush1.msra.mxu0 %v1809
    %3072 = vmatprep.subr.mxu0 0.0
    %3073 = vmatpush1.msra.mxu0 %v1806
    %3074 = vmatprep.subr.mxu0 0.0
    %3075 = vmatpush1.msra.mxu0 %v1803
    %3076 = vmatprep.subr.mxu0 0.0
    %3077 = vmatpush1.msra.mxu0 %v1800
    %3078 = vmatprep.subr.mxu0 0.0
    %3079 = vmatpush1.msra.mxu0 %v1797
    %3080 = vmatprep.subr.mxu0 0.0
    %3081 = vmatpush1.msra.mxu0 %v1794
    %3082 = vmatprep.subr.mxu0 0.0
    %3083 = vmatpush1.msra.mxu0 %v1791
    %3084 = vmatprep.subr.mxu0 0.0
    %3085 = vmatpush1.msra.mxu0 %v1788
    %3086 = vmatprep.subr.mxu0 0.0
    %3087 = vmatpush1.msra.mxu0 %v1785
    %3088 = vmatprep.subr.mxu0 0.0
    %3089 = vmatpush1.msra.mxu0 %v1782
    %3090 = vmatprep.subr.mxu0 0.0
    %3091 = vmatpush1.msra.mxu0 %v1779
    %3092 = vmatprep.subr.mxu0 0.0
    %3093 = vmatpush1.msra.mxu0 %v1776
    %3094 = vmatprep.subr.mxu0 0.0
    %3095 = vmatpush1.msra.mxu0 %v1773
    %3096 = vmatprep.subr.mxu0 0.0
    %3097 = vmatpush1.msra.mxu0 %v1770
    %3098 = vmatprep.subr.mxu0 0.0
    %3099 = vmatpush1.msra.mxu0 %v1767
    %3100 = vmatprep.subr.mxu0 0.0
    %3101 = vmatpush1.msra.mxu0 %v1764
    %3102 = vmatprep.subr.mxu0 0.0
    %3103 = vmatpush2.msra.mxu0 0.0
    %3104 = vmatprep.subr.mxu0 0.0
    %3105 = vmatpush2.msra.mxu0 0.0
    %3106 = vmatprep.subr.mxu0 0.0
    %3107 = vmatpush2.msra.mxu0 0.0
    %3108 = vmatprep.subr.mxu0 0.0
    %3109 = vmatpush2.msra.mxu0 0.0
    %3110 = vmatprep.subr.mxu0 0.0
    %3111 = vmatpush2.msra.mxu0 0.0
    %3112 = vmatprep.subr.mxu0 0.0
    %3113 = vmatpush2.msra.mxu0 0.0
    %3114 = vmatprep.subr.mxu0 0.0
    %3115 = vmatpush2.msra.mxu0 0.0
    %3116 = vmatprep.subr.mxu0 0.0
    %3117 = vmatpush2.msra.mxu0 0.0
    %3118 = vmatprep.subr.mxu0 0.0
    %3119 = vmatpush2.msra.mxu0 0.0
    %3120 = vmatprep.subr.mxu0 0.0
    %3121 = vmatpush2.msra.mxu0 0.0
    %3122 = vmatprep.subr.mxu0 0.0
    %3123 = vmatpush2.msra.mxu0 0.0
    %3124 = vmatprep.subr.mxu0 0.0
    %3125 = vmatpush2.msra.mxu0 0.0
    %3126 = vmatprep.subr.mxu0 0.0
    %3127 = vmatpush2.msra.mxu0 0.0
    %3128 = vmatprep.subr.mxu0 0.0
    %3129 = vmatpush2.msra.mxu0 0.0
    %3130 = vmatprep.subr.mxu0 0.0
    %3131 = vmatpush2.msra.mxu0 0.0
    %3132 = vmatprep.subr.mxu0 0.0
    %3133 = vmatpush2.msra.mxu0 0.0
    %3134 = vmatprep.mubr.f32.mxu0 0.0
    %3135 = vmatmul.mubr.f32.gmra.mxu0 %v2993
    %v3136 = vpop.f32.mrf.mxu0
    %v3137 = vadd.f32 0.0, %v3136
    %v3138 = vpop.f32.mrf.mxu0
    %3139 = vdwg.mxu0
    %v3140 = vadd.f32 %v2996, %v3066
    %v3141 = vxor.u32 %v3140, 2147483648
    %v3142 = vmul.f32 %v3141, 1.442695
    %v3143 = vpow.pop %v3142
    %v3144 = vadd.f32 %v3143, 1.0
    %v3145 = vrcp.pop %v3144
    %v3146 = vmul.f32 1.0, %v3145
    %v3147 = vadd.f32 %v2997, %v3068
    %v3148 = vxor.u32 %v3147, 2147483648
    %v3149 = vmul.f32 %v3148, 1.442695
    %v3150 = vpow.pop %v3149
    %v3151 = vadd.f32 %v3150, 1.0
    %v3152 = vrcp.pop %v3151
    %v3153 = vmul.f32 1.0, %v3152
    %v3154 = vadd.f32 %v3137, %v1816
    %v3155 = vmul.f32 %v3146, %v3154
    %v3156 = vadd.f32 %v2998, %v3155
    %v3157 = vtanh.pop %v3156
    %v3158 = vsub.f32 1.0, %v3153
    %v3159 = vmul.f32 %v3158, %v3157
    %v3160 = vmul.f32 %v3153, %v2993
    %v3161 = vadd.f32 %v3159, %v3160
    %3162 = vst [vmem:[%s1443] sm:$0xff] %v3161
    %s3163 = scalar_lea.vmem %s7, 8
    %3164 = vst [vmem:[%s3163] sm:$0xff] %v3161
    // Predicated region
    $region30: #{sequence_encoder_forward.1} parent=1 // pred_check
      _
    $region31: #{sequence_encoder_forward.1} parent=1 // pred_check_branch
      %3166 = sbr.rel (0) target = $region33
    $region32: #{sequence_encoder_forward.1} parent=1 // pred_region
      _
    $region33: #{sequence_encoder_forward.1} parent=1 // pred_fallthru
      _
    // Predicated region
    $region34: #{sequence_encoder_forward.1} parent=1 // pred_check
      _
    $region35: #{sequence_encoder_forward.1} parent=1 // pred_check_branch
      %3168 = sbr.rel (0) target = $region37
    $region36: #{sequence_encoder_forward.1} parent=1 // pred_region
      _
    $region37: #{sequence_encoder_forward.1} parent=1 // pred_fallthru
      _
    // Predicated region
    $region38: #{sequence_encoder_forward.1} parent=1 // pred_check
      _
    $region39: #{sequence_encoder_forward.1} parent=1 // pred_check_branch
      %3170 = sbr.rel (0) target = $region41
    $region40: #{sequence_encoder_forward.1} parent=1 // pred_region
      _
    $region41: #{sequence_encoder_forward.1} parent=1 // pred_fallthru
      _
    // Predicated region
    $region42: #{sequence_encoder_forward.1} parent=1 // pred_check
      _
    $region43: #{sequence_encoder_forward.1} parent=1 // pred_check_branch
      %3172 = sbr.rel (0) target = $region45
    $region44: #{sequence_encoder_forward.1} parent=1 // pred_region
      _
    $region45: #{sequence_encoder_forward.1} parent=1 // pred_fallthru
      _
    %3173 = vsyncpa [#allocation4], 1

</llo_original>
